<compile_context>
chip_gen: v7x
topology: tpu7x:2x2x1
jax: 0.10.0
libtpu: 0.0.40
codegen_flags: <defaults>
</compile_context>

<pallas_src>
import functools

import jax
import jax.numpy as jnp
import numpy as np
from jax import lax
from jax.experimental import pallas as pl
from jax.experimental.pallas import tpu as pltpu


def _ggnn_kernel(a_ref, x_ref, mask_ref, w_ref, uh_ref, bias_ref, out_ref, *,
                 iterations, num_styles):
    """One tile of B_tile graphs per grid step; the whole recurrence runs in VMEM.

    Per iteration: 3 MXU matmuls (identity edge style carries the recurrent x@uz / x@ur):
      1. act2  = A_lane_bd @ X_bd      (BN, EE*BN) @ (EE*BN, EE*size) -> (BN, EE*size)
      2. gates = act2 @ W_ext + bias   (BN, EE*size) @ (EE*size, 3*sec)
      3. hh    = (r*x) @ uh            (BN, sec)    @ (sec, sec)
    X_bd (block-diagonal over edge styles) = tile(x) * mask  -- one VPU multiply, no
    slice+concat repack on the matmul critical path.
    """
    ee = num_styles                      # E + 1 (incl. identity edge style)
    bn, _ = x_ref.shape                  # B_tile * N rows per step
    sec = uh_ref.shape[0]

    def body(_, x):
        # re-read refs each (unrolled) iteration: compiler may reload from VMEM
        # instead of pinning them in vregs across the whole recurrence.
        a = a_ref[...]                   # (BN, EE*BN)   lane-dense, block-diag over graphs
        w = w_ref[...]                   # (EE*size, 3*sec)
        mask = mask_ref[...]             # (EE*BN, EE*size) 0/1 block-diag over edge styles
        bias = bias_ref[...]             # (BN, 3*sec)   iteration-invariant

        # block-diagonal x over edge styles: sublane tile + lane tile + one VPU multiply
        x_rep = jnp.concatenate([x] * ee, axis=0)          # (EE*BN, size)
        x_wide = jnp.concatenate([x_rep] * ee, axis=1)     # (EE*BN, EE*size)
        x_bd = x_wide * mask

        act2 = jnp.dot(a, x_bd, preferred_element_type=jnp.float32)      # (BN, EE*size)
        gates = jnp.dot(act2, w, preferred_element_type=jnp.float32) + bias

        zr = jax.nn.sigmoid(gates[:, :2 * sec])            # one wide EUP push for z and r
        z = zr[:, :sec]
        r = zr[:, sec:]
        h = jnp.tanh(gates[:, 2 * sec:]
                     + jnp.dot(r * x, uh_ref[...], preferred_element_type=jnp.float32))
        return (1.0 - z) * x + r * h

    x0 = x_ref[...].astype(jnp.float32)
    # static small trip count -> fully unroll so the scheduler sees across iterations
    out_ref[...] = lax.fori_loop(0, iterations, body, x0, unroll=True).astype(out_ref.dtype)


def gated_graph_forward(x, edge_matrix, params, iterations=10, target_rows=256):
    """x: (B, N, size); edge_matrix: (B, E, N, N). secondary_size == size only."""
    b, n, size = x.shape
    e = edge_matrix.shape[1]
    sec = params["uh"].shape[0]
    assert sec == size  # TODO(synk): secondary_size != size branch not implemented.
    ee = e + 1
    f32 = jnp.float32

    # ---- tiling: stack graphs along the sublane (M) axis, keep >= 2 grid steps ----
    b_tile = max(1, min(b, target_rows // max(n, 1)))
    if b > 1:
        b_tile = min(b_tile, -(-b // 2))       # v7x: don't collapse the batch into 1 step
    g = -(-b // b_tile)
    b_pad = g * b_tile
    bn = b_tile * n

    # ---- iteration-invariant restructuring (wrapper-side, zero per-iteration cost) ----
    x_p = x.astype(f32)
    edge_p = edge_matrix.astype(f32)
    if b_pad > b:
        x_p = jnp.pad(x_p, ((0, b_pad - b), (0, 0), (0, 0)))
        edge_p = jnp.pad(edge_p, ((0, b_pad - b), (0, 0), (0, 0), (0, 0)))

    # append the "identity edge style" that carries the recurrent x@uz / x@ur terms
    eye_n = jnp.broadcast_to(jnp.eye(n, dtype=f32)[None, None], (b_pad, 1, n, n))
    a_hat = jnp.concatenate([edge_p, eye_n], axis=1)                    # (Bp, EE, N, N)
    a_t = jnp.swapaxes(a_hat, 2, 3).reshape(g, b_tile, ee, n, n)        # [..., n, m] = A[m, n]
    # block-diagonal over the graphs of a tile; columns ordered (edge, graph, node)
    a_bd = jnp.einsum("gbenm,bc->gbnecm", a_t, jnp.eye(b_tile, dtype=f32))
    a_bd = a_bd.reshape(g, bn, ee * bn)                                  # (G, BN, EE*BN)

    # stacked gate weights: [wz_e|wr_e|wh_e] for each real edge, then [uz|ur|0] (identity edge)
    w_cat = jnp.concatenate([params["wz"], params["wr"], params["wh"]], axis=2).astype(f32)
    u_cat = jnp.concatenate(
        [params["uz"], params["ur"], jnp.zeros((size, sec), f32)], axis=1).astype(f32)
    w_ext = jnp.concatenate([w_cat, u_cat[None]], axis=0).reshape(ee * size, 3 * sec)

    # bias hoisted: sum_e (ba @ [wz_e|wr_e|wh_e]), pre-broadcast to (BN, 3*sec)
    bias_vec = jnp.einsum("d,eds->s", params["ba"].astype(f32), w_cat)
    bias = jnp.broadcast_to(bias_vec[None, :], (bn, 3 * sec))

    # 0/1 block-diagonal-over-edge-styles mask used to build X_bd in the kernel
    mask = jnp.kron(jnp.eye(ee, dtype=f32), jnp.ones((bn, size), f32))   # (EE*BN, EE*size)

    x_tiles = x_p.reshape(g, bn, size)

    kernel = functools.partial(_ggnn_kernel, iterations=iterations, num_styles=ee)
    out = pl.pallas_call(
        kernel,
        out_shape=jax.ShapeDtypeStruct((g, bn, size), x.dtype),
        grid=(g,),  # one tile of graphs per step; "parallel" -> both TCs on v7x
        in_specs=[
            pl.BlockSpec((None, bn, ee * bn), lambda i: (i, 0, 0)),   # A_lane_bd (per tile)
            pl.BlockSpec((None, bn, size), lambda i: (i, 0, 0)),      # x tile
            pl.BlockSpec((ee * bn, ee * size), lambda i: (0, 0)),     # edge-style mask
            pl.BlockSpec((ee * size, 3 * sec), lambda i: (0, 0)),     # W_ext
            pl.BlockSpec((sec, sec), lambda i: (0, 0)),               # uh
            pl.BlockSpec((bn, 3 * sec), lambda i: (0, 0)),            # bias
        ],
        out_specs=pl.BlockSpec((None, bn, size), lambda i: (i, 0, 0)),
        compiler_params=pltpu.CompilerParams(dimension_semantics=("parallel",)),
    )(a_bd, x_tiles, mask, w_ext, params["uh"].astype(f32), bias)

    return out.reshape(b_pad, n, size)[:b]


def gated_graph_reference(x, edge_matrix, params, iterations=10):
    """Pure-JAX single-graph reference matching the PyTorch forward (secondary_size == size)."""
    ba = params["ba"]
    wz, wr, wh = params["wz"], params["wr"], params["wh"]
    uz, ur, uh = params["uz"], params["ur"], params["uh"]
    for _ in range(iterations):
        act = jnp.einsum("emn,md->end", edge_matrix, x) + ba          # (E, N, size) = A_e^T x + ba
        z = jax.nn.sigmoid(jnp.einsum("end,eds->ns", act, wz) + x @ uz)
        r = jax.nn.sigmoid(jnp.einsum("end,eds->ns", act, wr) + x @ ur)
        h = jnp.tanh(jnp.einsum("end,eds->ns", act, wh) + (r * x) @ uh)
        x = (1.0 - z) * x + r * h
    return x


def init_params(key, size, num_edge_style, secondary_size):
    """Deterministic xavier-normal-style init (matches shapes of the PyTorch module)."""
    ks = jax.random.split(key, 6)

    def xavier(k, shape, fan_in, fan_out):
        std = np.sqrt(2.0 / (fan_in + fan_out))
        return (std * jax.random.normal(k, shape)).astype(jnp.float32)

    sec = secondary_size
    return {
        "ba": jnp.zeros((size,), jnp.float32),
        "wz": xavier(ks[0], (num_edge_style, size, sec), size * sec, num_edge_style * sec),
        "wr": xavier(ks[1], (num_edge_style, size, sec), size * sec, num_edge_style * sec),
        "wh": xavier(ks[2], (num_edge_style, size, sec), size * sec, num_edge_style * sec),
        "uz": xavier(ks[3], (size, sec), sec, size),
        "ur": xavier(ks[4], (size, sec), sec, size),
        "uh": xavier(ks[5], (sec, sec), sec, sec),
    }


if __name__ == "__main__":
    SIZE = 32            # node feature size
    SEC = SIZE           # secondary_size == 0 in __init__ -> secondary_size = size
    NUM_EDGE = 4         # num_edge_style
    N_NODES = 16
    BATCH = 2            # batch of graphs -> tiled/parallel grid axis
    ITERS = 10

    key = jax.random.PRNGKey(0)
    k_p, k_x, k_e, k_b = jax.random.split(key, 4)

    params = init_params(k_p, SIZE, NUM_EDGE, SEC)
    # nonzero ba so the hoisted-bias path is actually exercised (review correctness note);
    # the PyTorch module inits ba to zero, but any trained value is nonzero.
    params["ba"] = (0.1 * jax.random.normal(k_b, (SIZE,))).astype(jnp.float32)

    x = jax.random.normal(k_x, (BATCH, N_NODES, SIZE), dtype=jnp.float32)
    # sparse-ish adjacency matrices per graph / edge style
    edge = (jax.random.uniform(k_e, (BATCH, NUM_EDGE, N_NODES, N_NODES)) < 0.2).astype(jnp.float32)

    out = jax.block_until_ready(gated_graph_forward(x, edge, params, iterations=ITERS))

    ref = jnp.stack([gated_graph_reference(x[i], edge[i], params, iterations=ITERS)
                     for i in range(BATCH)])
    ref = jax.block_until_ready(ref)
    np.testing.assert_allclose(np.asarray(out), np.asarray(ref), rtol=1e-3, atol=1e-3)

    print("KERNEL_OK")
</pallas_src>

<mosaic_0001>
module attributes {stable_mosaic.version = 11 : i64} {
  func.func @_ggnn_kernel(%arg0: i32, %arg1: memref<1x16x80xf32, #tpu.memory_space<vmem>>, %arg2: memref<1x16x32xf32, #tpu.memory_space<vmem>>, %arg3: memref<80x160xf32, #tpu.memory_space<vmem>>, %arg4: memref<160x96xf32, #tpu.memory_space<vmem>>, %arg5: memref<32x32xf32, #tpu.memory_space<vmem>>, %arg6: memref<16x96xf32, #tpu.memory_space<vmem>>, %arg7: memref<1x16x32xf32, #tpu.memory_space<vmem>>) attributes {dimension_semantics = [#tpu.dimension_semantics<parallel>], iteration_bounds = array<i64: 2>, scalar_prefetch = 0 : i64, scratch_operands = 0 : i64, tpu.core_type = #tpu.core_type<tc>, window_params = [{transform_indices = @transform_0, window_bounds = array<i64: 1, 16, 80>}, {transform_indices = @transform_1, window_bounds = array<i64: 1, 16, 32>}, {pipeline_mode = #tpu.pipeline_mode<synchronous>, transform_indices = @transform_2, window_bounds = array<i64: 80, 160>}, {pipeline_mode = #tpu.pipeline_mode<synchronous>, transform_indices = @transform_3, window_bounds = array<i64: 160, 96>}, {pipeline_mode = #tpu.pipeline_mode<synchronous>, transform_indices = @transform_4, window_bounds = array<i64: 32, 32>}, {pipeline_mode = #tpu.pipeline_mode<synchronous>, transform_indices = @transform_5, window_bounds = array<i64: 16, 96>}, {transform_indices = @transform_6, window_bounds = array<i64: 1, 16, 32>}]} {
    %c0 = arith.constant 0 : index
    %c0_0 = arith.constant 0 : index
    %c0_1 = arith.constant 0 : index
    %0 = vector.load %arg2[%c0, %c0_0, %c0_1] : memref<1x16x32xf32, #tpu.memory_space<vmem>>, vector<1x16x32xf32>
    %1 = vector.shape_cast %0 : vector<1x16x32xf32> to vector<16x32xf32>
    %c0_i32 = arith.constant 0 : i32
    %c0_2 = arith.constant 0 : index
    %c0_3 = arith.constant 0 : index
    %c0_4 = arith.constant 0 : index
    %2 = vector.load %arg1[%c0_2, %c0_3, %c0_4] : memref<1x16x80xf32, #tpu.memory_space<vmem>>, vector<1x16x80xf32>
    %3 = vector.shape_cast %2 : vector<1x16x80xf32> to vector<16x80xf32>
    %c0_5 = arith.constant 0 : index
    %c0_6 = arith.constant 0 : index
    %4 = vector.load %arg4[%c0_5, %c0_6] : memref<160x96xf32, #tpu.memory_space<vmem>>, vector<160x96xf32>
    %c0_7 = arith.constant 0 : index
    %c0_8 = arith.constant 0 : index
    %5 = vector.load %arg3[%c0_7, %c0_8] : memref<80x160xf32, #tpu.memory_space<vmem>>, vector<80x160xf32>
    %c0_9 = arith.constant 0 : index
    %c0_10 = arith.constant 0 : index
    %6 = vector.load %arg6[%c0_9, %c0_10] : memref<16x96xf32, #tpu.memory_space<vmem>>, vector<16x96xf32>
    %7 = tpu.concatenate %1, %1, %1, %1, %1 in 0 : vector<16x32xf32>, vector<16x32xf32>, vector<16x32xf32>, vector<16x32xf32>, vector<16x32xf32> -> vector<80x32xf32>
    %8 = tpu.concatenate %7, %7, %7, %7, %7 in 1 : vector<80x32xf32>, vector<80x32xf32>, vector<80x32xf32>, vector<80x32xf32>, vector<80x32xf32> -> vector<80x160xf32>
    %9 = arith.mulf %8, %5 : vector<80x160xf32>
    %cst = arith.constant dense<0.000000e+00> : vector<16x160xf32>
    %10 = tpu.matmul %3, %9, %cst {dimension_numbers = #tpu.dot_dimension_numbers<[1], [0], [0], [1], [0, 0, 1, 1], [], []>} : vector<16x80xf32>, vector<80x160xf32>, vector<16x160xf32> -> vector<16x160xf32>
    %cst_11 = arith.constant dense<0.000000e+00> : vector<16x96xf32>
    %11 = tpu.matmul %10, %4, %cst_11 {dimension_numbers = #tpu.dot_dimension_numbers<[1], [0], [0], [1], [0, 0, 1, 1], [], []>} : vector<16x160xf32>, vector<160x96xf32>, vector<16x96xf32> -> vector<16x96xf32>
    %12 = arith.addf %11, %6 : vector<16x96xf32>
    %13 = vector.extract_strided_slice %12 {offsets = [0, 0], sizes = [16, 64], strides = [1, 1]} : vector<16x96xf32> to vector<16x64xf32>
    %14 = arith.negf %13 : vector<16x64xf32>
    %15 = math.exp %14 : vector<16x64xf32>
    %cst_12 = arith.constant 1.000000e+00 : f32
    %16 = vector.broadcast %cst_12 : f32 to vector<16x64xf32>
    %17 = arith.addf %16, %15 : vector<16x64xf32>
    %18 = arith.divf %16, %17 : vector<16x64xf32>
    %19 = vector.extract_strided_slice %18 {offsets = [0, 0], sizes = [16, 32], strides = [1, 1]} : vector<16x64xf32> to vector<16x32xf32>
    %20 = vector.extract_strided_slice %18 {offsets = [0, 32], sizes = [16, 32], strides = [1, 1]} : vector<16x64xf32> to vector<16x32xf32>
    %21 = vector.extract_strided_slice %12 {offsets = [0, 64], sizes = [16, 32], strides = [1, 1]} : vector<16x96xf32> to vector<16x32xf32>
    %22 = arith.mulf %20, %1 : vector<16x32xf32>
    %c0_13 = arith.constant 0 : index
    %c0_14 = arith.constant 0 : index
    %23 = vector.load %arg5[%c0_13, %c0_14] : memref<32x32xf32, #tpu.memory_space<vmem>>, vector<32x32xf32>
    %cst_15 = arith.constant dense<0.000000e+00> : vector<16x32xf32>
    %24 = tpu.matmul %22, %23, %cst_15 {dimension_numbers = #tpu.dot_dimension_numbers<[1], [0], [0], [1], [0, 0, 1, 1], [], []>} : vector<16x32xf32>, vector<32x32xf32>, vector<16x32xf32> -> vector<16x32xf32>
    %25 = arith.addf %21, %24 : vector<16x32xf32>
    %26 = math.tanh %25 : vector<16x32xf32>
    %cst_16 = arith.constant 1.000000e+00 : f32
    %27 = vector.broadcast %cst_16 : f32 to vector<16x32xf32>
    %28 = arith.subf %27, %19 : vector<16x32xf32>
    %29 = arith.mulf %28, %1 : vector<16x32xf32>
    %30 = arith.mulf %20, %26 : vector<16x32xf32>
    %31 = arith.addf %29, %30 : vector<16x32xf32>
    %c1_i32 = arith.constant 1 : i32
    %c0_17 = arith.constant 0 : index
    %c0_18 = arith.constant 0 : index
    %c0_19 = arith.constant 0 : index
    %32 = vector.load %arg1[%c0_17, %c0_18, %c0_19] : memref<1x16x80xf32, #tpu.memory_space<vmem>>, vector<1x16x80xf32>
    %33 = vector.shape_cast %32 : vector<1x16x80xf32> to vector<16x80xf32>
    %c0_20 = arith.constant 0 : index
    %c0_21 = arith.constant 0 : index
    %34 = vector.load %arg4[%c0_20, %c0_21] : memref<160x96xf32, #tpu.memory_space<vmem>>, vector<160x96xf32>
    %c0_22 = arith.constant 0 : index
    %c0_23 = arith.constant 0 : index
    %35 = vector.load %arg3[%c0_22, %c0_23] : memref<80x160xf32, #tpu.memory_space<vmem>>, vector<80x160xf32>
    %c0_24 = arith.constant 0 : index
    %c0_25 = arith.constant 0 : index
    %36 = vector.load %arg6[%c0_24, %c0_25] : memref<16x96xf32, #tpu.memory_space<vmem>>, vector<16x96xf32>
    %37 = tpu.concatenate %31, %31, %31, %31, %31 in 0 : vector<16x32xf32>, vector<16x32xf32>, vector<16x32xf32>, vector<16x32xf32>, vector<16x32xf32> -> vector<80x32xf32>
    %38 = tpu.concatenate %37, %37, %37, %37, %37 in 1 : vector<80x32xf32>, vector<80x32xf32>, vector<80x32xf32>, vector<80x32xf32>, vector<80x32xf32> -> vector<80x160xf32>
    %39 = arith.mulf %38, %35 : vector<80x160xf32>
    %cst_26 = arith.constant dense<0.000000e+00> : vector<16x160xf32>
    %40 = tpu.matmul %33, %39, %cst_26 {dimension_numbers = #tpu.dot_dimension_numbers<[1], [0], [0], [1], [0, 0, 1, 1], [], []>} : vector<16x80xf32>, vector<80x160xf32>, vector<16x160xf32> -> vector<16x160xf32>
    %cst_27 = arith.constant dense<0.000000e+00> : vector<16x96xf32>
    %41 = tpu.matmul %40, %34, %cst_27 {dimension_numbers = #tpu.dot_dimension_numbers<[1], [0], [0], [1], [0, 0, 1, 1], [], []>} : vector<16x160xf32>, vector<160x96xf32>, vector<16x96xf32> -> vector<16x96xf32>
    %42 = arith.addf %41, %36 : vector<16x96xf32>
    %43 = vector.extract_strided_slice %42 {offsets = [0, 0], sizes = [16, 64], strides = [1, 1]} : vector<16x96xf32> to vector<16x64xf32>
    %44 = arith.negf %43 : vector<16x64xf32>
    %45 = math.exp %44 : vector<16x64xf32>
    %cst_28 = arith.constant 1.000000e+00 : f32
    %46 = vector.broadcast %cst_28 : f32 to vector<16x64xf32>
    %47 = arith.addf %46, %45 : vector<16x64xf32>
    %48 = arith.divf %46, %47 : vector<16x64xf32>
    %49 = vector.extract_strided_slice %48 {offsets = [0, 0], sizes = [16, 32], strides = [1, 1]} : vector<16x64xf32> to vector<16x32xf32>
    %50 = vector.extract_strided_slice %48 {offsets = [0, 32], sizes = [16, 32], strides = [1, 1]} : vector<16x64xf32> to vector<16x32xf32>
    %51 = vector.extract_strided_slice %42 {offsets = [0, 64], sizes = [16, 32], strides = [1, 1]} : vector<16x96xf32> to vector<16x32xf32>
    %52 = arith.mulf %50, %31 : vector<16x32xf32>
    %c0_29 = arith.constant 0 : index
    %c0_30 = arith.constant 0 : index
    %53 = vector.load %arg5[%c0_29, %c0_30] : memref<32x32xf32, #tpu.memory_space<vmem>>, vector<32x32xf32>
    %cst_31 = arith.constant dense<0.000000e+00> : vector<16x32xf32>
    %54 = tpu.matmul %52, %53, %cst_31 {dimension_numbers = #tpu.dot_dimension_numbers<[1], [0], [0], [1], [0, 0, 1, 1], [], []>} : vector<16x32xf32>, vector<32x32xf32>, vector<16x32xf32> -> vector<16x32xf32>
    %55 = arith.addf %51, %54 : vector<16x32xf32>
    %56 = math.tanh %55 : vector<16x32xf32>
    %cst_32 = arith.constant 1.000000e+00 : f32
    %57 = vector.broadcast %cst_32 : f32 to vector<16x32xf32>
    %58 = arith.subf %57, %49 : vector<16x32xf32>
    %59 = arith.mulf %58, %31 : vector<16x32xf32>
    %60 = arith.mulf %50, %56 : vector<16x32xf32>
    %61 = arith.addf %59, %60 : vector<16x32xf32>
    %c2_i32 = arith.constant 2 : i32
    %c0_33 = arith.constant 0 : index
    %c0_34 = arith.constant 0 : index
    %c0_35 = arith.constant 0 : index
    %62 = vector.load %arg1[%c0_33, %c0_34, %c0_35] : memref<1x16x80xf32, #tpu.memory_space<vmem>>, vector<1x16x80xf32>
    %63 = vector.shape_cast %62 : vector<1x16x80xf32> to vector<16x80xf32>
    %c0_36 = arith.constant 0 : index
    %c0_37 = arith.constant 0 : index
    %64 = vector.load %arg4[%c0_36, %c0_37] : memref<160x96xf32, #tpu.memory_space<vmem>>, vector<160x96xf32>
    %c0_38 = arith.constant 0 : index
    %c0_39 = arith.constant 0 : index
    %65 = vector.load %arg3[%c0_38, %c0_39] : memref<80x160xf32, #tpu.memory_space<vmem>>, vector<80x160xf32>
    %c0_40 = arith.constant 0 : index
    %c0_41 = arith.constant 0 : index
    %66 = vector.load %arg6[%c0_40, %c0_41] : memref<16x96xf32, #tpu.memory_space<vmem>>, vector<16x96xf32>
    %67 = tpu.concatenate %61, %61, %61, %61, %61 in 0 : vector<16x32xf32>, vector<16x32xf32>, vector<16x32xf32>, vector<16x32xf32>, vector<16x32xf32> -> vector<80x32xf32>
    %68 = tpu.concatenate %67, %67, %67, %67, %67 in 1 : vector<80x32xf32>, vector<80x32xf32>, vector<80x32xf32>, vector<80x32xf32>, vector<80x32xf32> -> vector<80x160xf32>
    %69 = arith.mulf %68, %65 : vector<80x160xf32>
    %cst_42 = arith.constant dense<0.000000e+00> : vector<16x160xf32>
    %70 = tpu.matmul %63, %69, %cst_42 {dimension_numbers = #tpu.dot_dimension_numbers<[1], [0], [0], [1], [0, 0, 1, 1], [], []>} : vector<16x80xf32>, vector<80x160xf32>, vector<16x160xf32> -> vector<16x160xf32>
    %cst_43 = arith.constant dense<0.000000e+00> : vector<16x96xf32>
    %71 = tpu.matmul %70, %64, %cst_43 {dimension_numbers = #tpu.dot_dimension_numbers<[1], [0], [0], [1], [0, 0, 1, 1], [], []>} : vector<16x160xf32>, vector<160x96xf32>, vector<16x96xf32> -> vector<16x96xf32>
    %72 = arith.addf %71, %66 : vector<16x96xf32>
    %73 = vector.extract_strided_slice %72 {offsets = [0, 0], sizes = [16, 64], strides = [1, 1]} : vector<16x96xf32> to vector<16x64xf32>
    %74 = arith.negf %73 : vector<16x64xf32>
    %75 = math.exp %74 : vector<16x64xf32>
    %cst_44 = arith.constant 1.000000e+00 : f32
    %76 = vector.broadcast %cst_44 : f32 to vector<16x64xf32>
    %77 = arith.addf %76, %75 : vector<16x64xf32>
    %78 = arith.divf %76, %77 : vector<16x64xf32>
    %79 = vector.extract_strided_slice %78 {offsets = [0, 0], sizes = [16, 32], strides = [1, 1]} : vector<16x64xf32> to vector<16x32xf32>
    %80 = vector.extract_strided_slice %78 {offsets = [0, 32], sizes = [16, 32], strides = [1, 1]} : vector<16x64xf32> to vector<16x32xf32>
    %81 = vector.extract_strided_slice %72 {offsets = [0, 64], sizes = [16, 32], strides = [1, 1]} : vector<16x96xf32> to vector<16x32xf32>
    %82 = arith.mulf %80, %61 : vector<16x32xf32>
    %c0_45 = arith.constant 0 : index
    %c0_46 = arith.constant 0 : index
    %83 = vector.load %arg5[%c0_45, %c0_46] : memref<32x32xf32, #tpu.memory_space<vmem>>, vector<32x32xf32>
    %cst_47 = arith.constant dense<0.000000e+00> : vector<16x32xf32>
    %84 = tpu.matmul %82, %83, %cst_47 {dimension_numbers = #tpu.dot_dimension_numbers<[1], [0], [0], [1], [0, 0, 1, 1], [], []>} : vector<16x32xf32>, vector<32x32xf32>, vector<16x32xf32> -> vector<16x32xf32>
    %85 = arith.addf %81, %84 : vector<16x32xf32>
    %86 = math.tanh %85 : vector<16x32xf32>
    %cst_48 = arith.constant 1.000000e+00 : f32
    %87 = vector.broadcast %cst_48 : f32 to vector<16x32xf32>
    %88 = arith.subf %87, %79 : vector<16x32xf32>
    %89 = arith.mulf %88, %61 : vector<16x32xf32>
    %90 = arith.mulf %80, %86 : vector<16x32xf32>
    %91 = arith.addf %89, %90 : vector<16x32xf32>
    %c3_i32 = arith.constant 3 : i32
    %c0_49 = arith.constant 0 : index
    %c0_50 = arith.constant 0 : index
    %c0_51 = arith.constant 0 : index
    %92 = vector.load %arg1[%c0_49, %c0_50, %c0_51] : memref<1x16x80xf32, #tpu.memory_space<vmem>>, vector<1x16x80xf32>
    %93 = vector.shape_cast %92 : vector<1x16x80xf32> to vector<16x80xf32>
    %c0_52 = arith.constant 0 : index
    %c0_53 = arith.constant 0 : index
    %94 = vector.load %arg4[%c0_52, %c0_53] : memref<160x96xf32, #tpu.memory_space<vmem>>, vector<160x96xf32>
    %c0_54 = arith.constant 0 : index
    %c0_55 = arith.constant 0 : index
    %95 = vector.load %arg3[%c0_54, %c0_55] : memref<80x160xf32, #tpu.memory_space<vmem>>, vector<80x160xf32>
    %c0_56 = arith.constant 0 : index
    %c0_57 = arith.constant 0 : index
    %96 = vector.load %arg6[%c0_56, %c0_57] : memref<16x96xf32, #tpu.memory_space<vmem>>, vector<16x96xf32>
    %97 = tpu.concatenate %91, %91, %91, %91, %91 in 0 : vector<16x32xf32>, vector<16x32xf32>, vector<16x32xf32>, vector<16x32xf32>, vector<16x32xf32> -> vector<80x32xf32>
    %98 = tpu.concatenate %97, %97, %97, %97, %97 in 1 : vector<80x32xf32>, vector<80x32xf32>, vector<80x32xf32>, vector<80x32xf32>, vector<80x32xf32> -> vector<80x160xf32>
    %99 = arith.mulf %98, %95 : vector<80x160xf32>
    %cst_58 = arith.constant dense<0.000000e+00> : vector<16x160xf32>
    %100 = tpu.matmul %93, %99, %cst_58 {dimension_numbers = #tpu.dot_dimension_numbers<[1], [0], [0], [1], [0, 0, 1, 1], [], []>} : vector<16x80xf32>, vector<80x160xf32>, vector<16x160xf32> -> vector<16x160xf32>
    %cst_59 = arith.constant dense<0.000000e+00> : vector<16x96xf32>
    %101 = tpu.matmul %100, %94, %cst_59 {dimension_numbers = #tpu.dot_dimension_numbers<[1], [0], [0], [1], [0, 0, 1, 1], [], []>} : vector<16x160xf32>, vector<160x96xf32>, vector<16x96xf32> -> vector<16x96xf32>
    %102 = arith.addf %101, %96 : vector<16x96xf32>
    %103 = vector.extract_strided_slice %102 {offsets = [0, 0], sizes = [16, 64], strides = [1, 1]} : vector<16x96xf32> to vector<16x64xf32>
    %104 = arith.negf %103 : vector<16x64xf32>
    %105 = math.exp %104 : vector<16x64xf32>
    %cst_60 = arith.constant 1.000000e+00 : f32
    %106 = vector.broadcast %cst_60 : f32 to vector<16x64xf32>
    %107 = arith.addf %106, %105 : vector<16x64xf32>
    %108 = arith.divf %106, %107 : vector<16x64xf32>
    %109 = vector.extract_strided_slice %108 {offsets = [0, 0], sizes = [16, 32], strides = [1, 1]} : vector<16x64xf32> to vector<16x32xf32>
    %110 = vector.extract_strided_slice %108 {offsets = [0, 32], sizes = [16, 32], strides = [1, 1]} : vector<16x64xf32> to vector<16x32xf32>
    %111 = vector.extract_strided_slice %102 {offsets = [0, 64], sizes = [16, 32], strides = [1, 1]} : vector<16x96xf32> to vector<16x32xf32>
    %112 = arith.mulf %110, %91 : vector<16x32xf32>
    %c0_61 = arith.constant 0 : index
    %c0_62 = arith.constant 0 : index
    %113 = vector.load %arg5[%c0_61, %c0_62] : memref<32x32xf32, #tpu.memory_space<vmem>>, vector<32x32xf32>
    %cst_63 = arith.constant dense<0.000000e+00> : vector<16x32xf32>
    %114 = tpu.matmul %112, %113, %cst_63 {dimension_numbers = #tpu.dot_dimension_numbers<[1], [0], [0], [1], [0, 0, 1, 1], [], []>} : vector<16x32xf32>, vector<32x32xf32>, vector<16x32xf32> -> vector<16x32xf32>
    %115 = arith.addf %111, %114 : vector<16x32xf32>
    %116 = math.tanh %115 : vector<16x32xf32>
    %cst_64 = arith.constant 1.000000e+00 : f32
    %117 = vector.broadcast %cst_64 : f32 to vector<16x32xf32>
    %118 = arith.subf %117, %109 : vector<16x32xf32>
    %119 = arith.mulf %118, %91 : vector<16x32xf32>
    %120 = arith.mulf %110, %116 : vector<16x32xf32>
    %121 = arith.addf %119, %120 : vector<16x32xf32>
    %c4_i32 = arith.constant 4 : i32
    %c0_65 = arith.constant 0 : index
    %c0_66 = arith.constant 0 : index
    %c0_67 = arith.constant 0 : index
    %122 = vector.load %arg1[%c0_65, %c0_66, %c0_67] : memref<1x16x80xf32, #tpu.memory_space<vmem>>, vector<1x16x80xf32>
    %123 = vector.shape_cast %122 : vector<1x16x80xf32> to vector<16x80xf32>
    %c0_68 = arith.constant 0 : index
    %c0_69 = arith.constant 0 : index
    %124 = vector.load %arg4[%c0_68, %c0_69] : memref<160x96xf32, #tpu.memory_space<vmem>>, vector<160x96xf32>
    %c0_70 = arith.constant 0 : index
    %c0_71 = arith.constant 0 : index
    %125 = vector.load %arg3[%c0_70, %c0_71] : memref<80x160xf32, #tpu.memory_space<vmem>>, vector<80x160xf32>
    %c0_72 = arith.constant 0 : index
    %c0_73 = arith.constant 0 : index
    %126 = vector.load %arg6[%c0_72, %c0_73] : memref<16x96xf32, #tpu.memory_space<vmem>>, vector<16x96xf32>
    %127 = tpu.concatenate %121, %121, %121, %121, %121 in 0 : vector<16x32xf32>, vector<16x32xf32>, vector<16x32xf32>, vector<16x32xf32>, vector<16x32xf32> -> vector<80x32xf32>
    %128 = tpu.concatenate %127, %127, %127, %127, %127 in 1 : vector<80x32xf32>, vector<80x32xf32>, vector<80x32xf32>, vector<80x32xf32>, vector<80x32xf32> -> vector<80x160xf32>
    %129 = arith.mulf %128, %125 : vector<80x160xf32>
    %cst_74 = arith.constant dense<0.000000e+00> : vector<16x160xf32>
    %130 = tpu.matmul %123, %129, %cst_74 {dimension_numbers = #tpu.dot_dimension_numbers<[1], [0], [0], [1], [0, 0, 1, 1], [], []>} : vector<16x80xf32>, vector<80x160xf32>, vector<16x160xf32> -> vector<16x160xf32>
    %cst_75 = arith.constant dense<0.000000e+00> : vector<16x96xf32>
    %131 = tpu.matmul %130, %124, %cst_75 {dimension_numbers = #tpu.dot_dimension_numbers<[1], [0], [0], [1], [0, 0, 1, 1], [], []>} : vector<16x160xf32>, vector<160x96xf32>, vector<16x96xf32> -> vector<16x96xf32>
    %132 = arith.addf %131, %126 : vector<16x96xf32>
    %133 = vector.extract_strided_slice %132 {offsets = [0, 0], sizes = [16, 64], strides = [1, 1]} : vector<16x96xf32> to vector<16x64xf32>
    %134 = arith.negf %133 : vector<16x64xf32>
    %135 = math.exp %134 : vector<16x64xf32>
    %cst_76 = arith.constant 1.000000e+00 : f32
    %136 = vector.broadcast %cst_76 : f32 to vector<16x64xf32>
    %137 = arith.addf %136, %135 : vector<16x64xf32>
    %138 = arith.divf %136, %137 : vector<16x64xf32>
    %139 = vector.extract_strided_slice %138 {offsets = [0, 0], sizes = [16, 32], strides = [1, 1]} : vector<16x64xf32> to vector<16x32xf32>
    %140 = vector.extract_strided_slice %138 {offsets = [0, 32], sizes = [16, 32], strides = [1, 1]} : vector<16x64xf32> to vector<16x32xf32>
    %141 = vector.extract_strided_slice %132 {offsets = [0, 64], sizes = [16, 32], strides = [1, 1]} : vector<16x96xf32> to vector<16x32xf32>
    %142 = arith.mulf %140, %121 : vector<16x32xf32>
    %c0_77 = arith.constant 0 : index
    %c0_78 = arith.constant 0 : index
    %143 = vector.load %arg5[%c0_77, %c0_78] : memref<32x32xf32, #tpu.memory_space<vmem>>, vector<32x32xf32>
    %cst_79 = arith.constant dense<0.000000e+00> : vector<16x32xf32>
    %144 = tpu.matmul %142, %143, %cst_79 {dimension_numbers = #tpu.dot_dimension_numbers<[1], [0], [0], [1], [0, 0, 1, 1], [], []>} : vector<16x32xf32>, vector<32x32xf32>, vector<16x32xf32> -> vector<16x32xf32>
    %145 = arith.addf %141, %144 : vector<16x32xf32>
    %146 = math.tanh %145 : vector<16x32xf32>
    %cst_80 = arith.constant 1.000000e+00 : f32
    %147 = vector.broadcast %cst_80 : f32 to vector<16x32xf32>
    %148 = arith.subf %147, %139 : vector<16x32xf32>
    %149 = arith.mulf %148, %121 : vector<16x32xf32>
    %150 = arith.mulf %140, %146 : vector<16x32xf32>
    %151 = arith.addf %149, %150 : vector<16x32xf32>
    %c5_i32 = arith.constant 5 : i32
    %c0_81 = arith.constant 0 : index
    %c0_82 = arith.constant 0 : index
    %c0_83 = arith.constant 0 : index
    %152 = vector.load %arg1[%c0_81, %c0_82, %c0_83] : memref<1x16x80xf32, #tpu.memory_space<vmem>>, vector<1x16x80xf32>
    %153 = vector.shape_cast %152 : vector<1x16x80xf32> to vector<16x80xf32>
    %c0_84 = arith.constant 0 : index
    %c0_85 = arith.constant 0 : index
    %154 = vector.load %arg4[%c0_84, %c0_85] : memref<160x96xf32, #tpu.memory_space<vmem>>, vector<160x96xf32>
    %c0_86 = arith.constant 0 : index
    %c0_87 = arith.constant 0 : index
    %155 = vector.load %arg3[%c0_86, %c0_87] : memref<80x160xf32, #tpu.memory_space<vmem>>, vector<80x160xf32>
    %c0_88 = arith.constant 0 : index
    %c0_89 = arith.constant 0 : index
    %156 = vector.load %arg6[%c0_88, %c0_89] : memref<16x96xf32, #tpu.memory_space<vmem>>, vector<16x96xf32>
    %157 = tpu.concatenate %151, %151, %151, %151, %151 in 0 : vector<16x32xf32>, vector<16x32xf32>, vector<16x32xf32>, vector<16x32xf32>, vector<16x32xf32> -> vector<80x32xf32>
    %158 = tpu.concatenate %157, %157, %157, %157, %157 in 1 : vector<80x32xf32>, vector<80x32xf32>, vector<80x32xf32>, vector<80x32xf32>, vector<80x32xf32> -> vector<80x160xf32>
    %159 = arith.mulf %158, %155 : vector<80x160xf32>
    %cst_90 = arith.constant dense<0.000000e+00> : vector<16x160xf32>
    %160 = tpu.matmul %153, %159, %cst_90 {dimension_numbers = #tpu.dot_dimension_numbers<[1], [0], [0], [1], [0, 0, 1, 1], [], []>} : vector<16x80xf32>, vector<80x160xf32>, vector<16x160xf32> -> vector<16x160xf32>
    %cst_91 = arith.constant dense<0.000000e+00> : vector<16x96xf32>
    %161 = tpu.matmul %160, %154, %cst_91 {dimension_numbers = #tpu.dot_dimension_numbers<[1], [0], [0], [1], [0, 0, 1, 1], [], []>} : vector<16x160xf32>, vector<160x96xf32>, vector<16x96xf32> -> vector<16x96xf32>
    %162 = arith.addf %161, %156 : vector<16x96xf32>
    %163 = vector.extract_strided_slice %162 {offsets = [0, 0], sizes = [16, 64], strides = [1, 1]} : vector<16x96xf32> to vector<16x64xf32>
    %164 = arith.negf %163 : vector<16x64xf32>
    %165 = math.exp %164 : vector<16x64xf32>
    %cst_92 = arith.constant 1.000000e+00 : f32
    %166 = vector.broadcast %cst_92 : f32 to vector<16x64xf32>
    %167 = arith.addf %166, %165 : vector<16x64xf32>
    %168 = arith.divf %166, %167 : vector<16x64xf32>
    %169 = vector.extract_strided_slice %168 {offsets = [0, 0], sizes = [16, 32], strides = [1, 1]} : vector<16x64xf32> to vector<16x32xf32>
    %170 = vector.extract_strided_slice %168 {offsets = [0, 32], sizes = [16, 32], strides = [1, 1]} : vector<16x64xf32> to vector<16x32xf32>
    %171 = vector.extract_strided_slice %162 {offsets = [0, 64], sizes = [16, 32], strides = [1, 1]} : vector<16x96xf32> to vector<16x32xf32>
    %172 = arith.mulf %170, %151 : vector<16x32xf32>
    %c0_93 = arith.constant 0 : index
    %c0_94 = arith.constant 0 : index
    %173 = vector.load %arg5[%c0_93, %c0_94] : memref<32x32xf32, #tpu.memory_space<vmem>>, vector<32x32xf32>
    %cst_95 = arith.constant dense<0.000000e+00> : vector<16x32xf32>
    %174 = tpu.matmul %172, %173, %cst_95 {dimension_numbers = #tpu.dot_dimension_numbers<[1], [0], [0], [1], [0, 0, 1, 1], [], []>} : vector<16x32xf32>, vector<32x32xf32>, vector<16x32xf32> -> vector<16x32xf32>
    %175 = arith.addf %171, %174 : vector<16x32xf32>
    %176 = math.tanh %175 : vector<16x32xf32>
    %cst_96 = arith.constant 1.000000e+00 : f32
    %177 = vector.broadcast %cst_96 : f32 to vector<16x32xf32>
    %178 = arith.subf %177, %169 : vector<16x32xf32>
    %179 = arith.mulf %178, %151 : vector<16x32xf32>
    %180 = arith.mulf %170, %176 : vector<16x32xf32>
    %181 = arith.addf %179, %180 : vector<16x32xf32>
    %c6_i32 = arith.constant 6 : i32
    %c0_97 = arith.constant 0 : index
    %c0_98 = arith.constant 0 : index
    %c0_99 = arith.constant 0 : index
    %182 = vector.load %arg1[%c0_97, %c0_98, %c0_99] : memref<1x16x80xf32, #tpu.memory_space<vmem>>, vector<1x16x80xf32>
    %183 = vector.shape_cast %182 : vector<1x16x80xf32> to vector<16x80xf32>
    %c0_100 = arith.constant 0 : index
    %c0_101 = arith.constant 0 : index
    %184 = vector.load %arg4[%c0_100, %c0_101] : memref<160x96xf32, #tpu.memory_space<vmem>>, vector<160x96xf32>
    %c0_102 = arith.constant 0 : index
    %c0_103 = arith.constant 0 : index
    %185 = vector.load %arg3[%c0_102, %c0_103] : memref<80x160xf32, #tpu.memory_space<vmem>>, vector<80x160xf32>
    %c0_104 = arith.constant 0 : index
    %c0_105 = arith.constant 0 : index
    %186 = vector.load %arg6[%c0_104, %c0_105] : memref<16x96xf32, #tpu.memory_space<vmem>>, vector<16x96xf32>
    %187 = tpu.concatenate %181, %181, %181, %181, %181 in 0 : vector<16x32xf32>, vector<16x32xf32>, vector<16x32xf32>, vector<16x32xf32>, vector<16x32xf32> -> vector<80x32xf32>
    %188 = tpu.concatenate %187, %187, %187, %187, %187 in 1 : vector<80x32xf32>, vector<80x32xf32>, vector<80x32xf32>, vector<80x32xf32>, vector<80x32xf32> -> vector<80x160xf32>
    %189 = arith.mulf %188, %185 : vector<80x160xf32>
    %cst_106 = arith.constant dense<0.000000e+00> : vector<16x160xf32>
    %190 = tpu.matmul %183, %189, %cst_106 {dimension_numbers = #tpu.dot_dimension_numbers<[1], [0], [0], [1], [0, 0, 1, 1], [], []>} : vector<16x80xf32>, vector<80x160xf32>, vector<16x160xf32> -> vector<16x160xf32>
    %cst_107 = arith.constant dense<0.000000e+00> : vector<16x96xf32>
    %191 = tpu.matmul %190, %184, %cst_107 {dimension_numbers = #tpu.dot_dimension_numbers<[1], [0], [0], [1], [0, 0, 1, 1], [], []>} : vector<16x160xf32>, vector<160x96xf32>, vector<16x96xf32> -> vector<16x96xf32>
    %192 = arith.addf %191, %186 : vector<16x96xf32>
    %193 = vector.extract_strided_slice %192 {offsets = [0, 0], sizes = [16, 64], strides = [1, 1]} : vector<16x96xf32> to vector<16x64xf32>
    %194 = arith.negf %193 : vector<16x64xf32>
    %195 = math.exp %194 : vector<16x64xf32>
    %cst_108 = arith.constant 1.000000e+00 : f32
    %196 = vector.broadcast %cst_108 : f32 to vector<16x64xf32>
    %197 = arith.addf %196, %195 : vector<16x64xf32>
    %198 = arith.divf %196, %197 : vector<16x64xf32>
    %199 = vector.extract_strided_slice %198 {offsets = [0, 0], sizes = [16, 32], strides = [1, 1]} : vector<16x64xf32> to vector<16x32xf32>
    %200 = vector.extract_strided_slice %198 {offsets = [0, 32], sizes = [16, 32], strides = [1, 1]} : vector<16x64xf32> to vector<16x32xf32>
    %201 = vector.extract_strided_slice %192 {offsets = [0, 64], sizes = [16, 32], strides = [1, 1]} : vector<16x96xf32> to vector<16x32xf32>
    %202 = arith.mulf %200, %181 : vector<16x32xf32>
    %c0_109 = arith.constant 0 : index
    %c0_110 = arith.constant 0 : index
    %203 = vector.load %arg5[%c0_109, %c0_110] : memref<32x32xf32, #tpu.memory_space<vmem>>, vector<32x32xf32>
    %cst_111 = arith.constant dense<0.000000e+00> : vector<16x32xf32>
    %204 = tpu.matmul %202, %203, %cst_111 {dimension_numbers = #tpu.dot_dimension_numbers<[1], [0], [0], [1], [0, 0, 1, 1], [], []>} : vector<16x32xf32>, vector<32x32xf32>, vector<16x32xf32> -> vector<16x32xf32>
    %205 = arith.addf %201, %204 : vector<16x32xf32>
    %206 = math.tanh %205 : vector<16x32xf32>
    %cst_112 = arith.constant 1.000000e+00 : f32
    %207 = vector.broadcast %cst_112 : f32 to vector<16x32xf32>
    %208 = arith.subf %207, %199 : vector<16x32xf32>
    %209 = arith.mulf %208, %181 : vector<16x32xf32>
    %210 = arith.mulf %200, %206 : vector<16x32xf32>
    %211 = arith.addf %209, %210 : vector<16x32xf32>
    %c7_i32 = arith.constant 7 : i32
    %c0_113 = arith.constant 0 : index
    %c0_114 = arith.constant 0 : index
    %c0_115 = arith.constant 0 : index
    %212 = vector.load %arg1[%c0_113, %c0_114, %c0_115] : memref<1x16x80xf32, #tpu.memory_space<vmem>>, vector<1x16x80xf32>
    %213 = vector.shape_cast %212 : vector<1x16x80xf32> to vector<16x80xf32>
    %c0_116 = arith.constant 0 : index
    %c0_117 = arith.constant 0 : index
    %214 = vector.load %arg4[%c0_116, %c0_117] : memref<160x96xf32, #tpu.memory_space<vmem>>, vector<160x96xf32>
    %c0_118 = arith.constant 0 : index
    %c0_119 = arith.constant 0 : index
    %215 = vector.load %arg3[%c0_118, %c0_119] : memref<80x160xf32, #tpu.memory_space<vmem>>, vector<80x160xf32>
    %c0_120 = arith.constant 0 : index
    %c0_121 = arith.constant 0 : index
    %216 = vector.load %arg6[%c0_120, %c0_121] : memref<16x96xf32, #tpu.memory_space<vmem>>, vector<16x96xf32>
    %217 = tpu.concatenate %211, %211, %211, %211, %211 in 0 : vector<16x32xf32>, vector<16x32xf32>, vector<16x32xf32>, vector<16x32xf32>, vector<16x32xf32> -> vector<80x32xf32>
    %218 = tpu.concatenate %217, %217, %217, %217, %217 in 1 : vector<80x32xf32>, vector<80x32xf32>, vector<80x32xf32>, vector<80x32xf32>, vector<80x32xf32> -> vector<80x160xf32>
    %219 = arith.mulf %218, %215 : vector<80x160xf32>
    %cst_122 = arith.constant dense<0.000000e+00> : vector<16x160xf32>
    %220 = tpu.matmul %213, %219, %cst_122 {dimension_numbers = #tpu.dot_dimension_numbers<[1], [0], [0], [1], [0, 0, 1, 1], [], []>} : vector<16x80xf32>, vector<80x160xf32>, vector<16x160xf32> -> vector<16x160xf32>
    %cst_123 = arith.constant dense<0.000000e+00> : vector<16x96xf32>
    %221 = tpu.matmul %220, %214, %cst_123 {dimension_numbers = #tpu.dot_dimension_numbers<[1], [0], [0], [1], [0, 0, 1, 1], [], []>} : vector<16x160xf32>, vector<160x96xf32>, vector<16x96xf32> -> vector<16x96xf32>
    %222 = arith.addf %221, %216 : vector<16x96xf32>
    %223 = vector.extract_strided_slice %222 {offsets = [0, 0], sizes = [16, 64], strides = [1, 1]} : vector<16x96xf32> to vector<16x64xf32>
    %224 = arith.negf %223 : vector<16x64xf32>
    %225 = math.exp %224 : vector<16x64xf32>
    %cst_124 = arith.constant 1.000000e+00 : f32
    %226 = vector.broadcast %cst_124 : f32 to vector<16x64xf32>
    %227 = arith.addf %226, %225 : vector<16x64xf32>
    %228 = arith.divf %226, %227 : vector<16x64xf32>
    %229 = vector.extract_strided_slice %228 {offsets = [0, 0], sizes = [16, 32], strides = [1, 1]} : vector<16x64xf32> to vector<16x32xf32>
    %230 = vector.extract_strided_slice %228 {offsets = [0, 32], sizes = [16, 32], strides = [1, 1]} : vector<16x64xf32> to vector<16x32xf32>
    %231 = vector.extract_strided_slice %222 {offsets = [0, 64], sizes = [16, 32], strides = [1, 1]} : vector<16x96xf32> to vector<16x32xf32>
    %232 = arith.mulf %230, %211 : vector<16x32xf32>
    %c0_125 = arith.constant 0 : index
    %c0_126 = arith.constant 0 : index
    %233 = vector.load %arg5[%c0_125, %c0_126] : memref<32x32xf32, #tpu.memory_space<vmem>>, vector<32x32xf32>
    %cst_127 = arith.constant dense<0.000000e+00> : vector<16x32xf32>
    %234 = tpu.matmul %232, %233, %cst_127 {dimension_numbers = #tpu.dot_dimension_numbers<[1], [0], [0], [1], [0, 0, 1, 1], [], []>} : vector<16x32xf32>, vector<32x32xf32>, vector<16x32xf32> -> vector<16x32xf32>
    %235 = arith.addf %231, %234 : vector<16x32xf32>
    %236 = math.tanh %235 : vector<16x32xf32>
    %cst_128 = arith.constant 1.000000e+00 : f32
    %237 = vector.broadcast %cst_128 : f32 to vector<16x32xf32>
    %238 = arith.subf %237, %229 : vector<16x32xf32>
    %239 = arith.mulf %238, %211 : vector<16x32xf32>
    %240 = arith.mulf %230, %236 : vector<16x32xf32>
    %241 = arith.addf %239, %240 : vector<16x32xf32>
    %c8_i32 = arith.constant 8 : i32
    %c0_129 = arith.constant 0 : index
    %c0_130 = arith.constant 0 : index
    %c0_131 = arith.constant 0 : index
    %242 = vector.load %arg1[%c0_129, %c0_130, %c0_131] : memref<1x16x80xf32, #tpu.memory_space<vmem>>, vector<1x16x80xf32>
    %243 = vector.shape_cast %242 : vector<1x16x80xf32> to vector<16x80xf32>
    %c0_132 = arith.constant 0 : index
    %c0_133 = arith.constant 0 : index
    %244 = vector.load %arg4[%c0_132, %c0_133] : memref<160x96xf32, #tpu.memory_space<vmem>>, vector<160x96xf32>
    %c0_134 = arith.constant 0 : index
    %c0_135 = arith.constant 0 : index
    %245 = vector.load %arg3[%c0_134, %c0_135] : memref<80x160xf32, #tpu.memory_space<vmem>>, vector<80x160xf32>
    %c0_136 = arith.constant 0 : index
    %c0_137 = arith.constant 0 : index
    %246 = vector.load %arg6[%c0_136, %c0_137] : memref<16x96xf32, #tpu.memory_space<vmem>>, vector<16x96xf32>
    %247 = tpu.concatenate %241, %241, %241, %241, %241 in 0 : vector<16x32xf32>, vector<16x32xf32>, vector<16x32xf32>, vector<16x32xf32>, vector<16x32xf32> -> vector<80x32xf32>
    %248 = tpu.concatenate %247, %247, %247, %247, %247 in 1 : vector<80x32xf32>, vector<80x32xf32>, vector<80x32xf32>, vector<80x32xf32>, vector<80x32xf32> -> vector<80x160xf32>
    %249 = arith.mulf %248, %245 : vector<80x160xf32>
    %cst_138 = arith.constant dense<0.000000e+00> : vector<16x160xf32>
    %250 = tpu.matmul %243, %249, %cst_138 {dimension_numbers = #tpu.dot_dimension_numbers<[1], [0], [0], [1], [0, 0, 1, 1], [], []>} : vector<16x80xf32>, vector<80x160xf32>, vector<16x160xf32> -> vector<16x160xf32>
    %cst_139 = arith.constant dense<0.000000e+00> : vector<16x96xf32>
    %251 = tpu.matmul %250, %244, %cst_139 {dimension_numbers = #tpu.dot_dimension_numbers<[1], [0], [0], [1], [0, 0, 1, 1], [], []>} : vector<16x160xf32>, vector<160x96xf32>, vector<16x96xf32> -> vector<16x96xf32>
    %252 = arith.addf %251, %246 : vector<16x96xf32>
    %253 = vector.extract_strided_slice %252 {offsets = [0, 0], sizes = [16, 64], strides = [1, 1]} : vector<16x96xf32> to vector<16x64xf32>
    %254 = arith.negf %253 : vector<16x64xf32>
    %255 = math.exp %254 : vector<16x64xf32>
    %cst_140 = arith.constant 1.000000e+00 : f32
    %256 = vector.broadcast %cst_140 : f32 to vector<16x64xf32>
    %257 = arith.addf %256, %255 : vector<16x64xf32>
    %258 = arith.divf %256, %257 : vector<16x64xf32>
    %259 = vector.extract_strided_slice %258 {offsets = [0, 0], sizes = [16, 32], strides = [1, 1]} : vector<16x64xf32> to vector<16x32xf32>
    %260 = vector.extract_strided_slice %258 {offsets = [0, 32], sizes = [16, 32], strides = [1, 1]} : vector<16x64xf32> to vector<16x32xf32>
    %261 = vector.extract_strided_slice %252 {offsets = [0, 64], sizes = [16, 32], strides = [1, 1]} : vector<16x96xf32> to vector<16x32xf32>
    %262 = arith.mulf %260, %241 : vector<16x32xf32>
    %c0_141 = arith.constant 0 : index
    %c0_142 = arith.constant 0 : index
    %263 = vector.load %arg5[%c0_141, %c0_142] : memref<32x32xf32, #tpu.memory_space<vmem>>, vector<32x32xf32>
    %cst_143 = arith.constant dense<0.000000e+00> : vector<16x32xf32>
    %264 = tpu.matmul %262, %263, %cst_143 {dimension_numbers = #tpu.dot_dimension_numbers<[1], [0], [0], [1], [0, 0, 1, 1], [], []>} : vector<16x32xf32>, vector<32x32xf32>, vector<16x32xf32> -> vector<16x32xf32>
    %265 = arith.addf %261, %264 : vector<16x32xf32>
    %266 = math.tanh %265 : vector<16x32xf32>
    %cst_144 = arith.constant 1.000000e+00 : f32
    %267 = vector.broadcast %cst_144 : f32 to vector<16x32xf32>
    %268 = arith.subf %267, %259 : vector<16x32xf32>
    %269 = arith.mulf %268, %241 : vector<16x32xf32>
    %270 = arith.mulf %260, %266 : vector<16x32xf32>
    %271 = arith.addf %269, %270 : vector<16x32xf32>
    %c9_i32 = arith.constant 9 : i32
    %c0_145 = arith.constant 0 : index
    %c0_146 = arith.constant 0 : index
    %c0_147 = arith.constant 0 : index
    %272 = vector.load %arg1[%c0_145, %c0_146, %c0_147] : memref<1x16x80xf32, #tpu.memory_space<vmem>>, vector<1x16x80xf32>
    %273 = vector.shape_cast %272 : vector<1x16x80xf32> to vector<16x80xf32>
    %c0_148 = arith.constant 0 : index
    %c0_149 = arith.constant 0 : index
    %274 = vector.load %arg4[%c0_148, %c0_149] : memref<160x96xf32, #tpu.memory_space<vmem>>, vector<160x96xf32>
    %c0_150 = arith.constant 0 : index
    %c0_151 = arith.constant 0 : index
    %275 = vector.load %arg3[%c0_150, %c0_151] : memref<80x160xf32, #tpu.memory_space<vmem>>, vector<80x160xf32>
    %c0_152 = arith.constant 0 : index
    %c0_153 = arith.constant 0 : index
    %276 = vector.load %arg6[%c0_152, %c0_153] : memref<16x96xf32, #tpu.memory_space<vmem>>, vector<16x96xf32>
    %277 = tpu.concatenate %271, %271, %271, %271, %271 in 0 : vector<16x32xf32>, vector<16x32xf32>, vector<16x32xf32>, vector<16x32xf32>, vector<16x32xf32> -> vector<80x32xf32>
    %278 = tpu.concatenate %277, %277, %277, %277, %277 in 1 : vector<80x32xf32>, vector<80x32xf32>, vector<80x32xf32>, vector<80x32xf32>, vector<80x32xf32> -> vector<80x160xf32>
    %279 = arith.mulf %278, %275 : vector<80x160xf32>
    %cst_154 = arith.constant dense<0.000000e+00> : vector<16x160xf32>
    %280 = tpu.matmul %273, %279, %cst_154 {dimension_numbers = #tpu.dot_dimension_numbers<[1], [0], [0], [1], [0, 0, 1, 1], [], []>} : vector<16x80xf32>, vector<80x160xf32>, vector<16x160xf32> -> vector<16x160xf32>
    %cst_155 = arith.constant dense<0.000000e+00> : vector<16x96xf32>
    %281 = tpu.matmul %280, %274, %cst_155 {dimension_numbers = #tpu.dot_dimension_numbers<[1], [0], [0], [1], [0, 0, 1, 1], [], []>} : vector<16x160xf32>, vector<160x96xf32>, vector<16x96xf32> -> vector<16x96xf32>
    %282 = arith.addf %281, %276 : vector<16x96xf32>
    %283 = vector.extract_strided_slice %282 {offsets = [0, 0], sizes = [16, 64], strides = [1, 1]} : vector<16x96xf32> to vector<16x64xf32>
    %284 = arith.negf %283 : vector<16x64xf32>
    %285 = math.exp %284 : vector<16x64xf32>
    %cst_156 = arith.constant 1.000000e+00 : f32
    %286 = vector.broadcast %cst_156 : f32 to vector<16x64xf32>
    %287 = arith.addf %286, %285 : vector<16x64xf32>
    %288 = arith.divf %286, %287 : vector<16x64xf32>
    %289 = vector.extract_strided_slice %288 {offsets = [0, 0], sizes = [16, 32], strides = [1, 1]} : vector<16x64xf32> to vector<16x32xf32>
    %290 = vector.extract_strided_slice %288 {offsets = [0, 32], sizes = [16, 32], strides = [1, 1]} : vector<16x64xf32> to vector<16x32xf32>
    %291 = vector.extract_strided_slice %282 {offsets = [0, 64], sizes = [16, 32], strides = [1, 1]} : vector<16x96xf32> to vector<16x32xf32>
    %292 = arith.mulf %290, %271 : vector<16x32xf32>
    %c0_157 = arith.constant 0 : index
    %c0_158 = arith.constant 0 : index
    %293 = vector.load %arg5[%c0_157, %c0_158] : memref<32x32xf32, #tpu.memory_space<vmem>>, vector<32x32xf32>
    %cst_159 = arith.constant dense<0.000000e+00> : vector<16x32xf32>
    %294 = tpu.matmul %292, %293, %cst_159 {dimension_numbers = #tpu.dot_dimension_numbers<[1], [0], [0], [1], [0, 0, 1, 1], [], []>} : vector<16x32xf32>, vector<32x32xf32>, vector<16x32xf32> -> vector<16x32xf32>
    %295 = arith.addf %291, %294 : vector<16x32xf32>
    %296 = math.tanh %295 : vector<16x32xf32>
    %cst_160 = arith.constant 1.000000e+00 : f32
    %297 = vector.broadcast %cst_160 : f32 to vector<16x32xf32>
    %298 = arith.subf %297, %289 : vector<16x32xf32>
    %299 = arith.mulf %298, %271 : vector<16x32xf32>
    %300 = arith.mulf %290, %296 : vector<16x32xf32>
    %301 = arith.addf %299, %300 : vector<16x32xf32>
    %c0_161 = arith.constant 0 : index
    %c0_162 = arith.constant 0 : index
    %c0_163 = arith.constant 0 : index
    %302 = vector.load %arg7[%c0_161, %c0_162, %c0_163] : memref<1x16x32xf32, #tpu.memory_space<vmem>>, vector<1x16x32xf32>
    %303 = vector.shape_cast %302 : vector<1x16x32xf32> to vector<16x32xf32>
    %304 = vector.shape_cast %301 : vector<16x32xf32> to vector<1x16x32xf32>
    tpu.vector_store %arg7[%c0_161, %c0_162, %c0_163], %304 {strides = array<i32>} : memref<1x16x32xf32, #tpu.memory_space<vmem>>, vector<1x16x32xf32>,
    return
  }
  func.func @transform_0(%arg0: i32) -> (i32, i32, i32) {
    %c0_i32 = arith.constant 0 : i32
    %c0_i32_0 = arith.constant 0 : i32
    %c0_i32_1 = arith.constant 0 : i32
    return %arg0, %c0_i32, %c0_i32_0 : i32, i32, i32
  }
  func.func @transform_1(%arg0: i32) -> (i32, i32, i32) {
    %c0_i32 = arith.constant 0 : i32
    %c0_i32_0 = arith.constant 0 : i32
    %c0_i32_1 = arith.constant 0 : i32
    return %arg0, %c0_i32, %c0_i32_0 : i32, i32, i32
  }
  func.func @transform_2(%arg0: i32) -> (i32, i32) {
    %c0_i32 = arith.constant 0 : i32
    %c0_i32_0 = arith.constant 0 : i32
    %c0_i32_1 = arith.constant 0 : i32
    return %c0_i32, %c0_i32_0 : i32, i32
  }
  func.func @transform_3(%arg0: i32) -> (i32, i32) {
    %c0_i32 = arith.constant 0 : i32
    %c0_i32_0 = arith.constant 0 : i32
    %c0_i32_1 = arith.constant 0 : i32
    return %c0_i32, %c0_i32_0 : i32, i32
  }
  func.func @transform_4(%arg0: i32) -> (i32, i32) {
    %c0_i32 = arith.constant 0 : i32
    %c0_i32_0 = arith.constant 0 : i32
    %c0_i32_1 = arith.constant 0 : i32
    return %c0_i32, %c0_i32_0 : i32, i32
  }
  func.func @transform_5(%arg0: i32) -> (i32, i32) {
    %c0_i32 = arith.constant 0 : i32
    %c0_i32_0 = arith.constant 0 : i32
    %c0_i32_1 = arith.constant 0 : i32
    return %c0_i32, %c0_i32_0 : i32, i32
  }
  func.func @transform_6(%arg0: i32) -> (i32, i32, i32) {
    %c0_i32 = arith.constant 0 : i32
    %c0_i32_0 = arith.constant 0 : i32
    %c0_i32_1 = arith.constant 0 : i32
    return %arg0, %c0_i32, %c0_i32_0 : i32, i32, i32
  }
}

</mosaic_0001>

<llo_original>
// kernel: tpu_custom_call.1
$region0: #{tpu_custom_call.1}
  #allocation0 [shape = 'u32[]', space=smem, size = 0x4, offset = 0x4, fixed_abs, tag = 'smem constant byte address 0x4 - core index']
  #allocation1 [shape = 'u32[144,128]{1,0:T(1,128)}', space=vmem, size = 0x12000, scoped, tag = 'internal scratch']
  %s0 = inlined_call_operand.hbm [shape: f32[2,16,80], index: 0, kind: input, shape index: {}]
  %s1 = inlined_call_operand.hbm [shape: f32[2,16,32], index: 1, kind: input, shape index: {}]
  %s2 = inlined_call_operand.hbm [shape: f32[80,160], index: 2, kind: input, shape index: {}]
  %s3 = inlined_call_operand.hbm [shape: f32[160,96], index: 3, kind: input, shape index: {}]
  %s4 = inlined_call_operand.hbm [shape: f32[32,32], index: 4, kind: input, shape index: {}]
  %s5 = inlined_call_operand.vmem [shape: f32[16,96], index: 5, kind: input, shape index: {}]
  %s6 = inlined_call_operand.hbm [shape: f32[2,16,32], index: 6, kind: output, shape index: {}]
  %s7 = sld [smem:[#allocation0]]
  $region77: #{tpu_custom_call.1} parent=0
    _
  %s9 = ssub.s32 1, %s7
  %s10 = scalar_select 0, %s9, %s7
  $region1: #{tpu_custom_call.1} parent=0
    #allocation2 [shape = 'u8[16384]{0}', space=vmem, size = 0x4000, scoped, tag = 'input window, operand 0']
    #allocation3 [shape = 's32[2]{0}', space=sflag, size = 0x8, scoped, tag = 'scoped memory for tpu_custom_call.1']
    #allocation4 [shape = 's32[2]{0}', space=sflag, size = 0x8, scoped, tag = 'scoped memory for tpu_custom_call.1']
    #allocation5 [shape = 'u8[16384]{0}', space=vmem, size = 0x4000, scoped, tag = 'input window, operand 1']
    #allocation6 [shape = 's32[2]{0}', space=sflag, size = 0x8, scoped, tag = 'scoped memory for tpu_custom_call.1']
    #allocation7 [shape = 'u8[81920]{0}', space=vmem, size = 0x14000, scoped, tag = 'input window, operand 2, single buffered']
    #allocation8 [shape = 'u8[81920]{0}', space=vmem, size = 0x14000, scoped, tag = 'input window, operand 3, single buffered']
    #allocation9 [shape = 's32[1]{0}', space=sflag, size = 0x4, scoped, tag = 'scoped memory for tpu_custom_call.1']
    #allocation10 [shape = 'u8[16384]{0}', space=vmem, size = 0x4000, scoped, tag = 'input window, operand 4, single buffered']
    #allocation11 [shape = 'u8[16384]{0}', space=vmem, size = 0x4000, scoped, tag = 'output window, operand 0']
    %11 = vsyncpa [#allocation3], 0
    %s12 = scalar_lea.sflag [#allocation3], 1
    %13 = vsyncpa %s12, 0
    %14 = vsyncpa [#allocation6], 0
    %s15 = scalar_lea.sflag [#allocation6], 1
    %16 = vsyncpa %s15, 0
    %17 = vsyncpa [#allocation9], 0
    %18 = vsyncpa [#allocation4], 0
    %s19 = scalar_lea.sflag [#allocation4], 1
    %20 = vsyncpa %s19, 0
    loop: start=0, step=1, limit=4
    $region2: #{tpu_custom_call.1} parent=1 // loop_pre_header
      _
    $region3: #{tpu_custom_call.1} parent=1 // loop_header
      %s22 = sphi 0, %s26
      %p23 = scmp.ge.s32.totalorder %s22, 4
      %s32 = sphi 0, %s34
      %s35 = sphi 0, %s32
      %s36 = sphi 0, %s35
      %s52 = sphi 0, %s36
      %s58 = sphi 0, %s60
      %s61 = sphi 0, %s58
      %s62 = sphi 0, %s61
      %s78 = sphi 0, %s62
      %s82 = sphi 0, %s82
      %s84 = sphi 0, %s82
      %s85 = sphi 0, %s84
      %s99 = sphi 0, %s85
      %s103 = sphi 0, %s103
      %s105 = sphi 0, %s103
      %s106 = sphi 0, %s105
      %s120 = sphi 0, %s106
      %s124 = sphi 0, %s124
      %s126 = sphi 0, %s124
      %s127 = sphi 0, %s126
      %s141 = sphi 0, %s127
      %s145 = sphi 0, %s145
      %s147 = sphi 0, %s145
      %s148 = sphi 0, %s147
      %s162 = sphi 0, %s148
      %s168 = sphi 0, %s170
      %s171 = sphi 0, %s168
      %s172 = sphi 0, %s171
      %s188 = sphi 0, %s172
    $region4: #{tpu_custom_call.1} parent=1 // loop_header_branch
      %25 = sbr.rel (%p23) target = $region8
    $region5: #{tpu_custom_call.1} parent=1 // loop_body
      %s27 = ssub.s32 %s22, 1
      %s28 = ssub.s32 %s22, 2
      %s29 = sadd.s32 %s22, 1
      %s30 = ssub.s32 %s22, %s29
      %p31 = scmp.eq.s32.totalorder %s30, 0
      %s33 = sadd.s32 %s32, 1
      %s34 = scalar_select %p31, %s32, %s33
      %p37 = pneg %p31
      %p38 = scmp.eq.s32.totalorder %s22, 1
      %p39 = por %p37, %p38
      %p40 = scmp.ne.s32.totalorder %s32, %s35
      %p41 = scmp.eq.s32.totalorder %s22, 0
      %p42 = por %p40, %p41
      %p43 = scmp.ne.s32.totalorder %s32, %s35
      %p44 = scmp.eq.s32.totalorder %s27, 1
      %p45 = por %p43, %p44
      %p46 = scmp.ne.s32.totalorder %s35, %s36
      %p47 = scmp.eq.s32.totalorder %s27, 0
      %p48 = por %p46, %p47
      %p49 = scmp.ne.s32.totalorder %s35, %s36
      %p50 = scmp.eq.s32.totalorder %s28, 1
      %p51 = por %p49, %p50
      %p53 = scmp.ne.s32.totalorder %s36, %s52
      %p54 = scmp.eq.s32.totalorder %s28, 0
      %p55 = por %p53, %p54
      %s56 = ssub.s32 %s22, %s29
      %p57 = scmp.eq.s32.totalorder %s56, 0
      %s59 = sadd.s32 %s58, 1
      %s60 = scalar_select %p57, %s58, %s59
      %p63 = pneg %p57
      %p64 = scmp.eq.s32.totalorder %s22, 1
      %p65 = por %p63, %p64
      %p66 = scmp.ne.s32.totalorder %s58, %s61
      %p67 = scmp.eq.s32.totalorder %s22, 0
      %p68 = por %p66, %p67
      %p69 = scmp.ne.s32.totalorder %s58, %s61
      %p70 = scmp.eq.s32.totalorder %s27, 1
      %p71 = por %p69, %p70
      %p72 = scmp.ne.s32.totalorder %s61, %s62
      %p73 = scmp.eq.s32.totalorder %s27, 0
      %p74 = por %p72, %p73
      %p75 = scmp.ne.s32.totalorder %s61, %s62
      %p76 = scmp.eq.s32.totalorder %s28, 1
      %p77 = por %p75, %p76
      %p79 = scmp.ne.s32.totalorder %s62, %s78
      %p80 = scmp.eq.s32.totalorder %s28, 0
      %p81 = por %p79, %p80
      %s83 = sadd.s32 %s82, 1
      %p86 = scmp.eq.s32.totalorder %s22, 1
      %p87 = scmp.ne.s32.totalorder %s82, %s84
      %p88 = scmp.eq.s32.totalorder %s22, 0
      %p89 = por %p87, %p88
      %p90 = scmp.ne.s32.totalorder %s82, %s84
      %p91 = scmp.eq.s32.totalorder %s27, 1
      %p92 = por %p90, %p91
      %p93 = scmp.ne.s32.totalorder %s84, %s85
      %p94 = scmp.eq.s32.totalorder %s27, 0
      %p95 = por %p93, %p94
      %p96 = scmp.ne.s32.totalorder %s84, %s85
      %p97 = scmp.eq.s32.totalorder %s28, 1
      %p98 = por %p96, %p97
      %p100 = scmp.ne.s32.totalorder %s85, %s99
      %p101 = scmp.eq.s32.totalorder %s28, 0
      %p102 = por %p100, %p101
      %s104 = sadd.s32 %s103, 1
      %p107 = scmp.eq.s32.totalorder %s22, 1
      %p108 = scmp.ne.s32.totalorder %s103, %s105
      %p109 = scmp.eq.s32.totalorder %s22, 0
      %p110 = por %p108, %p109
      %p111 = scmp.ne.s32.totalorder %s103, %s105
      %p112 = scmp.eq.s32.totalorder %s27, 1
      %p113 = por %p111, %p112
      %p114 = scmp.ne.s32.totalorder %s105, %s106
      %p115 = scmp.eq.s32.totalorder %s27, 0
      %p116 = por %p114, %p115
      %p117 = scmp.ne.s32.totalorder %s105, %s106
      %p118 = scmp.eq.s32.totalorder %s28, 1
      %p119 = por %p117, %p118
      %p121 = scmp.ne.s32.totalorder %s106, %s120
      %p122 = scmp.eq.s32.totalorder %s28, 0
      %p123 = por %p121, %p122
      %s125 = sadd.s32 %s124, 1
      %p128 = scmp.eq.s32.totalorder %s22, 1
      %p129 = scmp.ne.s32.totalorder %s124, %s126
      %p130 = scmp.eq.s32.totalorder %s22, 0
      %p131 = por %p129, %p130
      %p132 = scmp.ne.s32.totalorder %s124, %s126
      %p133 = scmp.eq.s32.totalorder %s27, 1
      %p134 = por %p132, %p133
      %p135 = scmp.ne.s32.totalorder %s126, %s127
      %p136 = scmp.eq.s32.totalorder %s27, 0
      %p137 = por %p135, %p136
      %p138 = scmp.ne.s32.totalorder %s126, %s127
      %p139 = scmp.eq.s32.totalorder %s28, 1
      %p140 = por %p138, %p139
      %p142 = scmp.ne.s32.totalorder %s127, %s141
      %p143 = scmp.eq.s32.totalorder %s28, 0
      %p144 = por %p142, %p143
      %s146 = sadd.s32 %s145, 1
      %p149 = scmp.eq.s32.totalorder %s22, 1
      %p150 = scmp.ne.s32.totalorder %s145, %s147
      %p151 = scmp.eq.s32.totalorder %s22, 0
      %p152 = por %p150, %p151
      %p153 = scmp.ne.s32.totalorder %s145, %s147
      %p154 = scmp.eq.s32.totalorder %s27, 1
      %p155 = por %p153, %p154
      %p156 = scmp.ne.s32.totalorder %s147, %s148
      %p157 = scmp.eq.s32.totalorder %s27, 0
      %p158 = por %p156, %p157
      %p159 = scmp.ne.s32.totalorder %s147, %s148
      %p160 = scmp.eq.s32.totalorder %s28, 1
      %p161 = por %p159, %p160
      %p163 = scmp.ne.s32.totalorder %s148, %s162
      %p164 = scmp.eq.s32.totalorder %s28, 0
      %p165 = por %p163, %p164
      %s166 = ssub.s32 %s22, %s29
      %p167 = scmp.eq.s32.totalorder %s166, 0
      %s169 = sadd.s32 %s168, 1
      %s170 = scalar_select %p167, %s168, %s169
      %p173 = pneg %p167
      %p174 = scmp.eq.s32.totalorder %s22, 1
      %p175 = por %p173, %p174
      %p176 = scmp.ne.s32.totalorder %s168, %s171
      %p177 = scmp.eq.s32.totalorder %s22, 0
      %p178 = por %p176, %p177
      %p179 = scmp.ne.s32.totalorder %s168, %s171
      %p180 = scmp.eq.s32.totalorder %s27, 1
      %p181 = por %p179, %p180
      %p182 = scmp.ne.s32.totalorder %s171, %s172
      %p183 = scmp.eq.s32.totalorder %s27, 0
      %p184 = por %p182, %p183
      %p185 = scmp.ne.s32.totalorder %s171, %s172
      %p186 = scmp.eq.s32.totalorder %s28, 1
      %p187 = por %p185, %p186
      %p189 = scmp.ne.s32.totalorder %s172, %s188
      %p190 = scmp.eq.s32.totalorder %s28, 0
      %p191 = por %p189, %p190
      %p192 = scmp.le.s32.totalorder 1, %s22
      %p193 = scmp.lt.s32.totalorder %s22, 3
      %p194 = pnand %p192, %p193
      %p195 = pneg %p194
      // Predicated region
      $region9: #{tpu_custom_call.1} parent=5 // pred_check
        _
      $region10: #{tpu_custom_call.1} parent=5 // pred_check_branch
        %197 = sbr.rel (%p194) target = $region12
      $region11: #{tpu_custom_call.1} parent=5 // pred_region
        %s198 = ssub.s32 %s22, 1
        // Predicated region
        $region13: #{tpu_custom_call.1} parent=11 // pred_check
          %p199 = pneg %p95
        $region14: #{tpu_custom_call.1} parent=11 // pred_check_branch
          %201 = sbr.rel (%p199) target = $region16
        $region15: #{tpu_custom_call.1} parent=11 // pred_region
          %s203 = ssub.s32 2560, 2560
          %204 = vsyncadd [#allocation6], %s203
          %s205 = sshll.u32 [#allocation7], 4
          %s206 = int_to_ptr.vmem [resolvable:$true] %s205
          %211 = dma.hbm_to_vmem [thread:$0]  %s2, 2560, %s206, [#allocation6], 256, 256, 16
        $region16: #{tpu_custom_call.1} parent=11 // pred_fallthru
          _
        // Predicated region
        $region17: #{tpu_custom_call.1} parent=11 // pred_check
          %p212 = pneg %p116
        $region18: #{tpu_custom_call.1} parent=11 // pred_check_branch
          %214 = sbr.rel (%p212) target = $region20
        $region19: #{tpu_custom_call.1} parent=11 // pred_region
          %s216 = ssub.s32 2560, 2560
          %217 = vsyncadd [#allocation9], %s216
          %s218 = sshll.u32 [#allocation8], 4
          %s219 = int_to_ptr.vmem [resolvable:$true] %s218
          %224 = dma.hbm_to_vmem [thread:$0]  %s3, 2560, %s219, [#allocation9], 128, 128, 8
        $region20: #{tpu_custom_call.1} parent=11 // pred_fallthru
          _
        // Predicated region
        $region21: #{tpu_custom_call.1} parent=11 // pred_check
          %p225 = pneg %p137
        $region22: #{tpu_custom_call.1} parent=11 // pred_check_branch
          %227 = sbr.rel (%p225) target = $region24
        $region23: #{tpu_custom_call.1} parent=11 // pred_region
          %s229 = ssub.s32 512, 512
          %230 = vsyncadd [#allocation9], %s229
          %s231 = sshll.u32 [#allocation10], 4
          %s232 = int_to_ptr.vmem [resolvable:$true] %s231
          %237 = dma.hbm_to_vmem [thread:$0]  %s4, 512, %s232, [#allocation9], 128, 128, 8
        $region24: #{tpu_custom_call.1} parent=11 // pred_fallthru
          _
        // Predicated region
        $region25: #{tpu_custom_call.1} parent=11 // pred_check
          %p238 = pneg %p158
        $region26: #{tpu_custom_call.1} parent=11 // pred_check_branch
          %240 = sbr.rel (%p238) target = $region28
        $region27: #{tpu_custom_call.1} parent=11 // pred_region
          _
        $region28: #{tpu_custom_call.1} parent=11 // pred_fallthru
          _
      $region12: #{tpu_custom_call.1} parent=5 // pred_fallthru
        _
      %p241 = scmp.lt.s32.totalorder %s22, 2
      // Predicated region
      $region29: #{tpu_custom_call.1} parent=5 // pred_check
        %p242 = pneg %p241
      $region30: #{tpu_custom_call.1} parent=5 // pred_check_branch
        %244 = sbr.rel (%p242) target = $region32
      $region31: #{tpu_custom_call.1} parent=5 // pred_region
        // Predicated region
        $region33: #{tpu_custom_call.1} parent=31 // pred_check
          %p245 = pneg %p42
        $region34: #{tpu_custom_call.1} parent=31 // pred_check_branch
          %247 = sbr.rel (%p245) target = $region36
        $region35: #{tpu_custom_call.1} parent=31 // pred_region
          %s248 = sand.u32 %s32, 1
          %s249 = scalar_lea.sflag [#allocation3], %s248
          %s250 = sand.u32 %s32, 1
          %s251 = smul.addr %s250, 16
          %s252 = scalar_lea.vmem [#allocation2], %s251
          %s254 = ssub.s32 256, 256
          %255 = vsyncadd %s249, %s254
          %s256 = smul.addr %s22, 2
          %s257 = smul.addr %s256, 128
          %s258 = scalar_lea.hbm %s0, %s257
          %s259 = sshll.u32 %s252, 4
          %s260 = int_to_ptr.vmem [resolvable:$true] %s259
          %265 = dma.hbm_to_vmem [thread:$0]  %s258, 256, %s260, %s249, 128, 128, 8
        $region36: #{tpu_custom_call.1} parent=31 // pred_fallthru
          _
        // Predicated region
        $region37: #{tpu_custom_call.1} parent=31 // pred_check
          %p266 = pneg %p68
        $region38: #{tpu_custom_call.1} parent=31 // pred_check_branch
          %268 = sbr.rel (%p266) target = $region40
        $region39: #{tpu_custom_call.1} parent=31 // pred_region
          %s269 = sand.u32 %s22, 1
          %s270 = scalar_lea.sflag [#allocation6], %s269
          %s271 = sand.u32 %s58, 1
          %s272 = smul.addr %s271, 16
          %s273 = scalar_lea.vmem [#allocation5], %s272
          %s275 = ssub.s32 256, 256
          %276 = vsyncadd %s270, %s275
          %s277 = smul.addr %s22, 2
          %s278 = smul.addr %s277, 128
          %s279 = scalar_lea.hbm %s1, %s278
          %s280 = sshll.u32 %s273, 4
          %s281 = int_to_ptr.vmem [resolvable:$true] %s280
          %286 = dma.hbm_to_vmem [thread:$0]  %s279, 256, %s281, %s270, 128, 128, 8
        $region40: #{tpu_custom_call.1} parent=31 // pred_fallthru
          _
      $region32: #{tpu_custom_call.1} parent=5 // pred_fallthru
        _
      %p287 = scmp.le.s32.totalorder 1, %s22
      %p288 = scmp.lt.s32.totalorder %s22, 3
      %p289 = pnand %p287, %p288
      %p290 = pneg %p289
      // Predicated region
      $region41: #{tpu_custom_call.1} parent=5 // pred_check
        _
      $region42: #{tpu_custom_call.1} parent=5 // pred_check_branch
        %292 = sbr.rel (%p289) target = $region44
      $region43: #{tpu_custom_call.1} parent=5 // pred_region
        %s293 = ssub.s32 %s22, 1
        %s294 = sand.u32 %s35, 1
        %s295 = scalar_lea.sflag [#allocation3], %s294
        %s296 = sand.u32 %s35, 1
        %s297 = smul.addr %s296, 16
        %s298 = scalar_lea.vmem [#allocation2], %s297
        // Predicated region
        $region45: #{tpu_custom_call.1} parent=43 // pred_check
          %p299 = pneg %p48
        $region46: #{tpu_custom_call.1} parent=43 // pred_check_branch
          %301 = sbr.rel (%p299) target = $region48
        $region47: #{tpu_custom_call.1} parent=43 // pred_region
          %302 = dma.done %s295, 256
        $region48: #{tpu_custom_call.1} parent=43 // pred_fallthru
          _
        %s303 = sand.u32 %s27, 1
        %s304 = scalar_lea.sflag [#allocation6], %s303
        %s305 = sand.u32 %s61, 1
        %s306 = smul.addr %s305, 16
        %s307 = scalar_lea.vmem [#allocation5], %s306
        // Predicated region
        $region49: #{tpu_custom_call.1} parent=43 // pred_check
          %p308 = pneg %p74
        $region50: #{tpu_custom_call.1} parent=43 // pred_check_branch
          %310 = sbr.rel (%p308) target = $region52
        $region51: #{tpu_custom_call.1} parent=43 // pred_region
          %311 = dma.done %s304, 256
        $region52: #{tpu_custom_call.1} parent=43 // pred_fallthru
          _
        // Predicated region
        $region53: #{tpu_custom_call.1} parent=43 // pred_check
          %p312 = pneg %p95
        $region54: #{tpu_custom_call.1} parent=43 // pred_check_branch
          %314 = sbr.rel (%p312) target = $region56
        $region55: #{tpu_custom_call.1} parent=43 // pred_region
          %315 = dma.done [#allocation6], 2560
        $region56: #{tpu_custom_call.1} parent=43 // pred_fallthru
          _
        // Predicated region
        $region57: #{tpu_custom_call.1} parent=43 // pred_check
          %p316 = pneg %p116
        $region58: #{tpu_custom_call.1} parent=43 // pred_check_branch
          %318 = sbr.rel (%p316) target = $region60
        $region59: #{tpu_custom_call.1} parent=43 // pred_region
          %319 = dma.done [#allocation9], 2560
        $region60: #{tpu_custom_call.1} parent=43 // pred_fallthru
          _
        // Predicated region
        $region61: #{tpu_custom_call.1} parent=43 // pred_check
          %p320 = pneg %p137
        $region62: #{tpu_custom_call.1} parent=43 // pred_check_branch
          %322 = sbr.rel (%p320) target = $region64
        $region63: #{tpu_custom_call.1} parent=43 // pred_region
          %323 = dma.done [#allocation9], 512
        $region64: #{tpu_custom_call.1} parent=43 // pred_fallthru
          _
        %s324 = sand.u32 %s35, 1
        %s325 = scalar_lea.sflag [#allocation3], %s324
        %s326 = sand.u32 %s35, 1
        %s327 = smul.addr %s326, 16
        %s328 = scalar_lea.vmem [#allocation2], %s327
        %p329 = pneg %p48
        %p330 = pneg %p45
        %s331 = sand.u32 %s27, 1
        %s332 = scalar_lea.sflag [#allocation6], %s331
        %s333 = sand.u32 %s61, 1
        %s334 = smul.addr %s333, 16
        %s335 = scalar_lea.vmem [#allocation5], %s334
        %p336 = pneg %p74
        %p337 = pneg %p71
        %p338 = pneg %p95
        %p339 = pneg %p92
        %p340 = pneg %p116
        %p341 = pneg %p113
        %p342 = pneg %p137
        %p343 = pneg %p134
        %p344 = pneg %p158
        %p345 = pneg %p155
        %p346 = pneg %p184
        %p347 = pneg %p181
        %s348 = sand.u32 %s171, 1
        %s349 = scalar_lea.sflag [#allocation4], %s348
        %s350 = sand.u32 %s171, 1
        %s351 = smul.addr %s350, 16
        %s352 = scalar_lea.vmem [#allocation11], %s351
        %v353 = vld [vmem:[%s307] sm:$0xff]
        %v354 = vld [vmem:[%s307 + $0x8] sm:$0xff]
        %v355 = vld [vmem:[%s298] sm:$0xff]
        %v356 = vld [vmem:[%s298 + $0x8] sm:$0xff]
        %v357 = vld [vmem:[#allocation8] sm:$0xff]
        %v358 = vld [vmem:[#allocation8 + $0x8] sm:$0xff]
        %v359 = vld [vmem:[#allocation8 + $0x10] sm:$0xff]
        %v360 = vld [vmem:[#allocation8 + $0x18] sm:$0xff]
        %v361 = vld [vmem:[#allocation8 + $0x20] sm:$0xff]
        %v362 = vld [vmem:[#allocation8 + $0x28] sm:$0xff]
        %v363 = vld [vmem:[#allocation8 + $0x30] sm:$0xff]
        %v364 = vld [vmem:[#allocation8 + $0x38] sm:$0xff]
        %v365 = vld [vmem:[#allocation8 + $0x40] sm:$0xff]
        %v366 = vld [vmem:[#allocation8 + $0x48] sm:$0xff]
        %v367 = vld [vmem:[#allocation8 + $0x50] sm:$0xff]
        %v368 = vld [vmem:[#allocation8 + $0x58] sm:$0xff]
        %v369 = vld [vmem:[#allocation8 + $0x60] sm:$0xff]
        %v370 = vld [vmem:[#allocation8 + $0x68] sm:$0xff]
        %v371 = vld [vmem:[#allocation8 + $0x70] sm:$0xff]
        %v372 = vld [vmem:[#allocation8 + $0x78] sm:$0xff]
        %v373 = vld [vmem:[#allocation8 + $0x80] sm:$0xff]
        %v374 = vld [vmem:[#allocation8 + $0x88] sm:$0xff]
        %v375 = vld [vmem:[#allocation8 + $0x90] sm:$0xff]
        %v376 = vld [vmem:[#allocation8 + $0x98] sm:$0xff]
        %v377 = vld [vmem:[#allocation7] sm:$0xff]
        %v378 = vld [vmem:[#allocation7 + $0x8] sm:$0xff]
        %v379 = vld [vmem:[#allocation7 + $0x10] sm:$0xff]
        %v380 = vld [vmem:[#allocation7 + $0x18] sm:$0xff]
        %v381 = vld [vmem:[#allocation7 + $0x20] sm:$0xff]
        %v382 = vld [vmem:[#allocation7 + $0x28] sm:$0xff]
        %v383 = vld [vmem:[#allocation7 + $0x30] sm:$0xff]
        %v384 = vld [vmem:[#allocation7 + $0x38] sm:$0xff]
        %v385 = vld [vmem:[#allocation7 + $0x40] sm:$0xff]
        %v386 = vld [vmem:[#allocation7 + $0x48] sm:$0xff]
        %v387 = vld [vmem:[#allocation7 + $0x50] sm:$0xff]
        %v388 = vld [vmem:[#allocation7 + $0x58] sm:$0xff]
        %v389 = vld [vmem:[#allocation7 + $0x60] sm:$0xff]
        %v390 = vld [vmem:[#allocation7 + $0x68] sm:$0xff]
        %v391 = vld [vmem:[#allocation7 + $0x70] sm:$0xff]
        %v392 = vld [vmem:[#allocation7 + $0x78] sm:$0xff]
        %v393 = vld [vmem:[#allocation7 + $0x80] sm:$0xff]
        %v394 = vld [vmem:[#allocation7 + $0x88] sm:$0xff]
        %v395 = vld [vmem:[#allocation7 + $0x90] sm:$0xff]
        %v396 = vld [vmem:[#allocation7 + $0x98] sm:$0xff]
        %v397 = vld [vmem:[%s5] sm:$0xff]
        %v398 = vld [vmem:[%s5 + $0x8] sm:$0xff]
        %401 = vrot.lane.b32.xlu0 %v353, 32
        %v402 = vpop.permute.xlu0 %401
        %403 = vrot.lane.b32.xlu0 %v354, 32
        %v404 = vpop.permute.xlu0 %403
        %407 = vrot.lane.b32.xlu0 %v353, 64
        %v408 = vpop.permute.xlu0 %407
        %409 = vrot.lane.b32.xlu0 %v354, 64
        %v410 = vpop.permute.xlu0 %409
        %413 = vrot.lane.b32.xlu0 %v353, 96
        %v414 = vpop.permute.xlu0 %413
        %415 = vrot.lane.b32.xlu0 %v354, 96
        %v416 = vpop.permute.xlu0 %415
        %vm419 = vcmask 261120
        %v420 = vsel %vm419, %v353, %v402
        %v421 = vsel %vm419, %v354, %v404
        %vm422 = vcmask 523264
        %v423 = vsel %vm422, %v420, %v408
        %v424 = vsel %vm422, %v421, %v410
        %vm425 = vcmask 785408
        %v426 = vsel %vm425, %v423, %v414
        %v427 = vsel %vm425, %v424, %v416
        %v428 = vmul.f32 %v426, %v377
        %v429 = vmul.f32 %v353, %v378
        %v430 = vmul.f32 %v427, %v379
        %v431 = vmul.f32 %v354, %v380
        %v432 = vmul.f32 %v426, %v381
        %v433 = vmul.f32 %v353, %v382
        %v434 = vmul.f32 %v427, %v383
        %v435 = vmul.f32 %v354, %v384
        %v436 = vmul.f32 %v426, %v385
        %v437 = vmul.f32 %v353, %v386
        %v438 = vmul.f32 %v427, %v387
        %v439 = vmul.f32 %v354, %v388
        %v440 = vmul.f32 %v426, %v389
        %v441 = vmul.f32 %v353, %v390
        %v442 = vmul.f32 %v427, %v391
        %v443 = vmul.f32 %v354, %v392
        %v444 = vmul.f32 %v426, %v393
        %v445 = vmul.f32 %v353, %v394
        %v446 = vmul.f32 %v427, %v395
        %v447 = vmul.f32 %v354, %v396
        %vm448 = vcmask 654336
        %v450 = vsel %vm448, %v355, 0
        %v453 = vsel %vm448, %v356, 0
        %455 = vmatprep.subr.mxu0 %v429
        %456 = vmatpush1.msra.mxu0 %v428
        %457 = vmatprep.subr.mxu0 %v431
        %458 = vmatpush1.msra.mxu0 %v430
        %459 = vmatprep.subr.mxu0 %v433
        %460 = vmatpush1.msra.mxu0 %v432
        %461 = vmatprep.subr.mxu0 %v435
        %462 = vmatpush1.msra.mxu0 %v434
        %463 = vmatprep.subr.mxu0 %v437
        %464 = vmatpush1.msra.mxu0 %v436
        %465 = vmatprep.subr.mxu0 %v439
        %466 = vmatpush1.msra.mxu0 %v438
        %467 = vmatprep.subr.mxu0 %v441
        %468 = vmatpush1.msra.mxu0 %v440
        %469 = vmatprep.subr.mxu0 %v443
        %470 = vmatpush1.msra.mxu0 %v442
        %471 = vmatprep.subr.mxu0 %v445
        %472 = vmatpush1.msra.mxu0 %v444
        %473 = vmatprep.subr.mxu0 %v447
        %474 = vmatpush1.msra.mxu0 %v446
        %475 = vmatprep.subr.mxu0 0.0
        %476 = vmatpush1.msra.mxu0 0.0
        %477 = vmatprep.subr.mxu0 0.0
        %478 = vmatpush1.msra.mxu0 0.0
        %479 = vmatprep.subr.mxu0 0.0
        %480 = vmatpush1.msra.mxu0 0.0
        %481 = vmatprep.subr.mxu0 0.0
        %482 = vmatpush1.msra.mxu0 0.0
        %483 = vmatprep.subr.mxu0 0.0
        %484 = vmatpush1.msra.mxu0 0.0
        %485 = vmatprep.subr.mxu0 0.0
        %486 = vmatpush1.msra.mxu0 0.0
        %487 = vmatprep.subr.mxu0 0.0
        %488 = vmatpush1.msra.mxu0 0.0
        %489 = vmatprep.subr.mxu0 0.0
        %490 = vmatpush1.msra.mxu0 0.0
        %491 = vmatprep.subr.mxu0 0.0
        %492 = vmatpush1.msra.mxu0 0.0
        %493 = vmatprep.subr.mxu0 0.0
        %494 = vmatpush1.msra.mxu0 0.0
        %495 = vmatprep.subr.mxu0 0.0
        %496 = vmatpush1.msra.mxu0 0.0
        %497 = vmatprep.subr.mxu0 0.0
        %498 = vmatpush1.msra.mxu0 0.0
        %499 = vmatprep.subr.mxu0 0.0
        %500 = vmatpush1.msra.mxu0 0.0
        %501 = vmatprep.subr.mxu0 0.0
        %502 = vmatpush1.msra.mxu0 0.0
        %503 = vmatprep.subr.mxu0 0.0
        %504 = vmatpush1.msra.mxu0 0.0
        %505 = vmatprep.subr.mxu0 0.0
        %506 = vmatpush1.msra.mxu0 0.0
        %507 = vmatprep.subr.mxu0 0.0
        %508 = vmatpush1.msra.mxu0 0.0
        %509 = vmatprep.subr.mxu0 0.0
        %510 = vmatpush1.msra.mxu0 0.0
        %511 = vmatprep.subr.mxu0 0.0
        %512 = vmatpush1.msra.mxu0 0.0
        %513 = vmatprep.subr.mxu0 0.0
        %514 = vmatpush1.msra.mxu0 0.0
        %515 = vmatprep.subr.mxu0 0.0
        %516 = vmatpush1.msra.mxu0 0.0
        %517 = vmatprep.subr.mxu0 0.0
        %518 = vmatpush1.msra.mxu0 0.0
        %519 = vmatprep.mubr.f32.mxu0 0.0
        %520 = vmatmul.mubr.f32.gmra.mrb[0].mxu0 %v450
        %v521 = vpop.f32.mrb[0].mxu0
        %v522 = vadd.f32 0.0, %v521
        %v523 = vpop.f32.mrb[0].mxu0
        %v524 = vadd.f32 0.0, %v523
        %525 = vmatprep.mubr.f32.mxu0 0.0
        %526 = vmatmul.mubr.f32.gmra.mrb[0].mxu0 %v453
        %v527 = vpop.f32.mrb[0].mxu0
        %v528 = vadd.f32 0.0, %v527
        %v529 = vpop.f32.mrb[0].mxu0
        %v530 = vadd.f32 0.0, %v529
        %531 = vdwg.mxu0
        %v533 = vsel %vm419, %v524, 0
        %v536 = vsel %vm419, %v530, 0
        %538 = vmatprep.subr.mxu0 0.0
        %539 = vmatpush1.msra.mxu0 %v357
        %540 = vmatprep.subr.mxu0 0.0
        %541 = vmatpush1.msra.mxu0 %v358
        %542 = vmatprep.subr.mxu0 0.0
        %543 = vmatpush1.msra.mxu0 %v359
        %544 = vmatprep.subr.mxu0 0.0
        %545 = vmatpush1.msra.mxu0 %v360
        %546 = vmatprep.subr.mxu0 0.0
        %547 = vmatpush1.msra.mxu0 %v361
        %548 = vmatprep.subr.mxu0 0.0
        %549 = vmatpush1.msra.mxu0 %v362
        %550 = vmatprep.subr.mxu0 0.0
        %551 = vmatpush1.msra.mxu0 %v363
        %552 = vmatprep.subr.mxu0 0.0
        %553 = vmatpush1.msra.mxu0 %v364
        %554 = vmatprep.subr.mxu0 0.0
        %555 = vmatpush1.msra.mxu0 %v365
        %556 = vmatprep.subr.mxu0 0.0
        %557 = vmatpush1.msra.mxu0 %v366
        %558 = vmatprep.subr.mxu0 0.0
        %559 = vmatpush1.msra.mxu0 %v367
        %560 = vmatprep.subr.mxu0 0.0
        %561 = vmatpush1.msra.mxu0 %v368
        %562 = vmatprep.subr.mxu0 0.0
        %563 = vmatpush1.msra.mxu0 %v369
        %564 = vmatprep.subr.mxu0 0.0
        %565 = vmatpush1.msra.mxu0 %v370
        %566 = vmatprep.subr.mxu0 0.0
        %567 = vmatpush1.msra.mxu0 %v371
        %568 = vmatprep.subr.mxu0 0.0
        %569 = vmatpush1.msra.mxu0 %v372
        %570 = vmatprep.subr.mxu0 0.0
        %571 = vmatpush1.msra.mxu0 %v373
        %572 = vmatprep.subr.mxu0 0.0
        %573 = vmatpush1.msra.mxu0 %v374
        %574 = vmatprep.subr.mxu0 0.0
        %575 = vmatpush1.msra.mxu0 %v375
        %576 = vmatprep.subr.mxu0 0.0
        %577 = vmatpush1.msra.mxu0 %v376
        %578 = vmatprep.subr.mxu0 0.0
        %579 = vmatpush1.msra.mxu0 0.0
        %580 = vmatprep.subr.mxu0 0.0
        %581 = vmatpush1.msra.mxu0 0.0
        %582 = vmatprep.subr.mxu0 0.0
        %583 = vmatpush1.msra.mxu0 0.0
        %584 = vmatprep.subr.mxu0 0.0
        %585 = vmatpush1.msra.mxu0 0.0
        %586 = vmatprep.subr.mxu0 0.0
        %587 = vmatpush1.msra.mxu0 0.0
        %588 = vmatprep.subr.mxu0 0.0
        %589 = vmatpush1.msra.mxu0 0.0
        %590 = vmatprep.subr.mxu0 0.0
        %591 = vmatpush1.msra.mxu0 0.0
        %592 = vmatprep.subr.mxu0 0.0
        %593 = vmatpush1.msra.mxu0 0.0
        %594 = vmatprep.subr.mxu0 0.0
        %595 = vmatpush1.msra.mxu0 0.0
        %596 = vmatprep.subr.mxu0 0.0
        %597 = vmatpush1.msra.mxu0 0.0
        %598 = vmatprep.subr.mxu0 0.0
        %599 = vmatpush1.msra.mxu0 0.0
        %600 = vmatprep.subr.mxu0 0.0
        %601 = vmatpush1.msra.mxu0 0.0
        %602 = vmatprep.mubr.f32.mxu0 %v533
        %603 = vmatmul.mubr.f32.gmra.mrb[0].mxu0 %v522
        %v604 = vpop.f32.mrb[0].mxu0
        %v605 = vadd.f32 %v397, %v604
        %v606 = vpop.f32.mrb[0].mxu0
        %607 = vmatprep.mubr.f32.mxu0 %v536
        %608 = vmatmul.mubr.f32.gmra.mrb[0].mxu0 %v528
        %v609 = vpop.f32.mrb[0].mxu0
        %v610 = vadd.f32 %v398, %v609
        %v611 = vpop.f32.mrb[0].mxu0
        %612 = vdwg.mxu0
        %v613 = vxor.u32 %v605, 2147483648
        %v614 = vxor.u32 %v610, 2147483648
        %v615 = vmul.f32 %v613, 1.442695
        %v616 = vpow.pop %v615
        %v617 = vmul.f32 %v614, 1.442695
        %v618 = vpow.pop %v617
        %v619 = vadd.f32 %v616, 1.0
        %v620 = vadd.f32 %v618, 1.0
        %v621 = vrcp.pop %v619
        %v622 = vmul.f32 1.0, %v621
        %v623 = vrcp.pop %v620
        %v624 = vmul.f32 1.0, %v623
        %v625 = vmul.f32 %v622, %v402
        %v626 = vmul.f32 %v624, %v404
        %v627 = vld [vmem:[#allocation10] sm:$0xff]
        %v628 = vld [vmem:[#allocation10 + $0x8] sm:$0xff]
        %v629 = vld [vmem:[#allocation10 + $0x10] sm:$0xff]
        %v630 = vld [vmem:[#allocation10 + $0x18] sm:$0xff]
        %633 = vrot.lane.b32.xlu0 %v625, 96
        %v634 = vpop.permute.xlu0 %633
        %635 = vrot.lane.b32.xlu0 %v626, 96
        %v636 = vpop.permute.xlu0 %635
        %v637 = vsel %vm419, %v634, 0
        %v639 = vsel %vm419, %v636, 0
        %641 = vmatprep.subr.mxu0 0.0
        %642 = vmatpush1.msra.mxu0 %v627
        %643 = vmatprep.subr.mxu0 0.0
        %644 = vmatpush1.msra.mxu0 %v628
        %645 = vmatprep.subr.mxu0 0.0
        %646 = vmatpush1.msra.mxu0 %v629
        %647 = vmatprep.subr.mxu0 0.0
        %648 = vmatpush1.msra.mxu0 %v630
        %649 = vmatprep.subr.mxu0 0.0
        %650 = vmatpush1.msra.mxu0 0.0
        %651 = vmatprep.subr.mxu0 0.0
        %652 = vmatpush1.msra.mxu0 0.0
        %653 = vmatprep.subr.mxu0 0.0
        %654 = vmatpush1.msra.mxu0 0.0
        %655 = vmatprep.subr.mxu0 0.0
        %656 = vmatpush1.msra.mxu0 0.0
        %657 = vmatprep.subr.mxu0 0.0
        %658 = vmatpush1.msra.mxu0 0.0
        %659 = vmatprep.subr.mxu0 0.0
        %660 = vmatpush1.msra.mxu0 0.0
        %661 = vmatprep.subr.mxu0 0.0
        %662 = vmatpush1.msra.mxu0 0.0
        %663 = vmatprep.subr.mxu0 0.0
        %664 = vmatpush1.msra.mxu0 0.0
        %665 = vmatprep.subr.mxu0 0.0
        %666 = vmatpush1.msra.mxu0 0.0
        %667 = vmatprep.subr.mxu0 0.0
        %668 = vmatpush1.msra.mxu0 0.0
        %669 = vmatprep.subr.mxu0 0.0
        %670 = vmatpush1.msra.mxu0 0.0
        %671 = vmatprep.subr.mxu0 0.0
        %672 = vmatpush1.msra.mxu0 0.0
        %673 = vmatprep.subr.mxu0 0.0
        %674 = vmatpush1.msra.mxu0 0.0
        %675 = vmatprep.subr.mxu0 0.0
        %676 = vmatpush1.msra.mxu0 0.0
        %677 = vmatprep.subr.mxu0 0.0
        %678 = vmatpush1.msra.mxu0 0.0
        %679 = vmatprep.subr.mxu0 0.0
        %680 = vmatpush1.msra.mxu0 0.0
        %681 = vmatprep.subr.mxu0 0.0
        %682 = vmatpush1.msra.mxu0 0.0
        %683 = vmatprep.subr.mxu0 0.0
        %684 = vmatpush1.msra.mxu0 0.0
        %685 = vmatprep.subr.mxu0 0.0
        %686 = vmatpush1.msra.mxu0 0.0
        %687 = vmatprep.subr.mxu0 0.0
        %688 = vmatpush1.msra.mxu0 0.0
        %689 = vmatprep.subr.mxu0 0.0
        %690 = vmatpush1.msra.mxu0 0.0
        %691 = vmatprep.subr.mxu0 0.0
        %692 = vmatpush1.msra.mxu0 0.0
        %693 = vmatprep.subr.mxu0 0.0
        %694 = vmatpush1.msra.mxu0 0.0
        %695 = vmatprep.subr.mxu0 0.0
        %696 = vmatpush1.msra.mxu0 0.0
        %697 = vmatprep.subr.mxu0 0.0
        %698 = vmatpush1.msra.mxu0 0.0
        %699 = vmatprep.subr.mxu0 0.0
        %700 = vmatpush1.msra.mxu0 0.0
        %701 = vmatprep.subr.mxu0 0.0
        %702 = vmatpush1.msra.mxu0 0.0
        %703 = vmatprep.subr.mxu0 0.0
        %704 = vmatpush1.msra.mxu0 0.0
        %705 = vmatprep.mubr.f32.mxu0 0.0
        %706 = vmatmul.mubr.f32.gmra.mrb[0].mxu0 %v637
        %v707 = vpop.f32.mrb[0].mxu0
        %v708 = vadd.f32 0.0, %v707
        %v709 = vpop.f32.mrb[0].mxu0
        %710 = vmatprep.mubr.f32.mxu0 0.0
        %711 = vmatmul.mubr.f32.gmra.mrb[0].mxu0 %v639
        %v712 = vpop.f32.mrb[0].mxu0
        %v713 = vadd.f32 0.0, %v712
        %v714 = vpop.f32.mrb[0].mxu0
        %715 = vdwg.mxu0
        %718 = vrot.lane.b32.xlu0 %v708, 64
        %v719 = vpop.permute.xlu0 %718
        %720 = vrot.lane.b32.xlu0 %v713, 64
        %v721 = vpop.permute.xlu0 %720
        %v724 = vadd.f32 %v605, %v719
        %v725 = vadd.f32 %v610, %v721
        %v726 = vtanh.pop %v724
        %v727 = vtanh.pop %v725
        %v728 = vsub.f32 1.0, %v622
        %v729 = vsub.f32 1.0, %v624
        %v730 = vmul.f32 %v728, %v353
        %v731 = vmul.f32 %v729, %v354
        %734 = vrot.lane.b32.xlu0 %v726, 96
        %v735 = vpop.permute.xlu0 %734
        %736 = vrot.lane.b32.xlu0 %v727, 96
        %v737 = vpop.permute.xlu0 %736
        %v740 = vmul.f32 %v622, %v735
        %v741 = vmul.f32 %v624, %v737
        %744 = vrot.lane.b32.xlu0 %v740, 96
        %v745 = vpop.permute.xlu0 %744
        %746 = vrot.lane.b32.xlu0 %v741, 96
        %v747 = vpop.permute.xlu0 %746
        %v750 = vadd.f32 %v730, %v745
        %v751 = vadd.f32 %v731, %v747
        %754 = vrot.lane.b32.xlu0 %v750, 32
        %v755 = vpop.permute.xlu0 %754
        %756 = vrot.lane.b32.xlu0 %v751, 32
        %v757 = vpop.permute.xlu0 %756
        %760 = vrot.lane.b32.xlu0 %v750, 64
        %v761 = vpop.permute.xlu0 %760
        %762 = vrot.lane.b32.xlu0 %v751, 64
        %v763 = vpop.permute.xlu0 %762
        %766 = vrot.lane.b32.xlu0 %v750, 96
        %v767 = vpop.permute.xlu0 %766
        %768 = vrot.lane.b32.xlu0 %v751, 96
        %v769 = vpop.permute.xlu0 %768
        %v772 = vsel %vm419, %v750, %v755
        %v773 = vsel %vm419, %v751, %v757
        %v774 = vsel %vm422, %v772, %v761
        %v775 = vsel %vm422, %v773, %v763
        %v776 = vsel %vm425, %v774, %v767
        %v777 = vsel %vm425, %v775, %v769
        %v778 = vmul.f32 %v776, %v377
        %v779 = vmul.f32 %v750, %v378
        %v780 = vmul.f32 %v777, %v379
        %v781 = vmul.f32 %v751, %v380
        %v782 = vmul.f32 %v776, %v381
        %v783 = vmul.f32 %v750, %v382
        %v784 = vmul.f32 %v777, %v383
        %v785 = vmul.f32 %v751, %v384
        %v786 = vmul.f32 %v776, %v385
        %v787 = vmul.f32 %v750, %v386
        %v788 = vmul.f32 %v777, %v387
        %v789 = vmul.f32 %v751, %v388
        %v790 = vmul.f32 %v776, %v389
        %v791 = vmul.f32 %v750, %v390
        %v792 = vmul.f32 %v777, %v391
        %v793 = vmul.f32 %v751, %v392
        %v794 = vmul.f32 %v776, %v393
        %v795 = vmul.f32 %v750, %v394
        %v796 = vmul.f32 %v777, %v395
        %v797 = vmul.f32 %v751, %v396
        %798 = vmatprep.subr.mxu0 %v779
        %799 = vmatpush1.msra.mxu0 %v778
        %800 = vmatprep.subr.mxu0 %v781
        %801 = vmatpush1.msra.mxu0 %v780
        %802 = vmatprep.subr.mxu0 %v783
        %803 = vmatpush1.msra.mxu0 %v782
        %804 = vmatprep.subr.mxu0 %v785
        %805 = vmatpush1.msra.mxu0 %v784
        %806 = vmatprep.subr.mxu0 %v787
        %807 = vmatpush1.msra.mxu0 %v786
        %808 = vmatprep.subr.mxu0 %v789
        %809 = vmatpush1.msra.mxu0 %v788
        %810 = vmatprep.subr.mxu0 %v791
        %811 = vmatpush1.msra.mxu0 %v790
        %812 = vmatprep.subr.mxu0 %v793
        %813 = vmatpush1.msra.mxu0 %v792
        %814 = vmatprep.subr.mxu0 %v795
        %815 = vmatpush1.msra.mxu0 %v794
        %816 = vmatprep.subr.mxu0 %v797
        %817 = vmatpush1.msra.mxu0 %v796
        %818 = vmatprep.subr.mxu0 0.0
        %819 = vmatpush1.msra.mxu0 0.0
        %820 = vmatprep.subr.mxu0 0.0
        %821 = vmatpush1.msra.mxu0 0.0
        %822 = vmatprep.subr.mxu0 0.0
        %823 = vmatpush1.msra.mxu0 0.0
        %824 = vmatprep.subr.mxu0 0.0
        %825 = vmatpush1.msra.mxu0 0.0
        %826 = vmatprep.subr.mxu0 0.0
        %827 = vmatpush1.msra.mxu0 0.0
        %828 = vmatprep.subr.mxu0 0.0
        %829 = vmatpush1.msra.mxu0 0.0
        %830 = vmatprep.subr.mxu0 0.0
        %831 = vmatpush1.msra.mxu0 0.0
        %832 = vmatprep.subr.mxu0 0.0
        %833 = vmatpush1.msra.mxu0 0.0
        %834 = vmatprep.subr.mxu0 0.0
        %835 = vmatpush1.msra.mxu0 0.0
        %836 = vmatprep.subr.mxu0 0.0
        %837 = vmatpush1.msra.mxu0 0.0
        %838 = vmatprep.subr.mxu0 0.0
        %839 = vmatpush1.msra.mxu0 0.0
        %840 = vmatprep.subr.mxu0 0.0
        %841 = vmatpush1.msra.mxu0 0.0
        %842 = vmatprep.subr.mxu0 0.0
        %843 = vmatpush1.msra.mxu0 0.0
        %844 = vmatprep.subr.mxu0 0.0
        %845 = vmatpush1.msra.mxu0 0.0
        %846 = vmatprep.subr.mxu0 0.0
        %847 = vmatpush1.msra.mxu0 0.0
        %848 = vmatprep.subr.mxu0 0.0
        %849 = vmatpush1.msra.mxu0 0.0
        %850 = vmatprep.subr.mxu0 0.0
        %851 = vmatpush1.msra.mxu0 0.0
        %852 = vmatprep.subr.mxu0 0.0
        %853 = vmatpush1.msra.mxu0 0.0
        %854 = vmatprep.subr.mxu0 0.0
        %855 = vmatpush1.msra.mxu0 0.0
        %856 = vmatprep.subr.mxu0 0.0
        %857 = vmatpush1.msra.mxu0 0.0
        %858 = vmatprep.subr.mxu0 0.0
        %859 = vmatpush1.msra.mxu0 0.0
        %860 = vmatprep.subr.mxu0 0.0
        %861 = vmatpush1.msra.mxu0 0.0
        %862 = vmatprep.mubr.f32.mxu0 0.0
        %863 = vmatmul.mubr.f32.gmra.mrb[0].mxu0 %v450
        %v864 = vpop.f32.mrb[0].mxu0
        %v865 = vadd.f32 0.0, %v864
        %v866 = vpop.f32.mrb[0].mxu0
        %v867 = vadd.f32 0.0, %v866
        %868 = vmatprep.mubr.f32.mxu0 0.0
        %869 = vmatmul.mubr.f32.gmra.mrb[0].mxu0 %v453
        %v870 = vpop.f32.mrb[0].mxu0
        %v871 = vadd.f32 0.0, %v870
        %v872 = vpop.f32.mrb[0].mxu0
        %v873 = vadd.f32 0.0, %v872
        %874 = vdwg.mxu0
        %v876 = vsel %vm419, %v867, 0
        %v879 = vsel %vm419, %v873, 0
        %881 = vmatprep.subr.mxu0 0.0
        %882 = vmatpush1.msra.mxu0 %v357
        %883 = vmatprep.subr.mxu0 0.0
        %884 = vmatpush1.msra.mxu0 %v358
        %885 = vmatprep.subr.mxu0 0.0
        %886 = vmatpush1.msra.mxu0 %v359
        %887 = vmatprep.subr.mxu0 0.0
        %888 = vmatpush1.msra.mxu0 %v360
        %889 = vmatprep.subr.mxu0 0.0
        %890 = vmatpush1.msra.mxu0 %v361
        %891 = vmatprep.subr.mxu0 0.0
        %892 = vmatpush1.msra.mxu0 %v362
        %893 = vmatprep.subr.mxu0 0.0
        %894 = vmatpush1.msra.mxu0 %v363
        %895 = vmatprep.subr.mxu0 0.0
        %896 = vmatpush1.msra.mxu0 %v364
        %897 = vmatprep.subr.mxu0 0.0
        %898 = vmatpush1.msra.mxu0 %v365
        %899 = vmatprep.subr.mxu0 0.0
        %900 = vmatpush1.msra.mxu0 %v366
        %901 = vmatprep.subr.mxu0 0.0
        %902 = vmatpush1.msra.mxu0 %v367
        %903 = vmatprep.subr.mxu0 0.0
        %904 = vmatpush1.msra.mxu0 %v368
        %905 = vmatprep.subr.mxu0 0.0
        %906 = vmatpush1.msra.mxu0 %v369
        %907 = vmatprep.subr.mxu0 0.0
        %908 = vmatpush1.msra.mxu0 %v370
        %909 = vmatprep.subr.mxu0 0.0
        %910 = vmatpush1.msra.mxu0 %v371
        %911 = vmatprep.subr.mxu0 0.0
        %912 = vmatpush1.msra.mxu0 %v372
        %913 = vmatprep.subr.mxu0 0.0
        %914 = vmatpush1.msra.mxu0 %v373
        %915 = vmatprep.subr.mxu0 0.0
        %916 = vmatpush1.msra.mxu0 %v374
        %917 = vmatprep.subr.mxu0 0.0
        %918 = vmatpush1.msra.mxu0 %v375
        %919 = vmatprep.subr.mxu0 0.0
        %920 = vmatpush1.msra.mxu0 %v376
        %921 = vmatprep.subr.mxu0 0.0
        %922 = vmatpush1.msra.mxu0 0.0
        %923 = vmatprep.subr.mxu0 0.0
        %924 = vmatpush1.msra.mxu0 0.0
        %925 = vmatprep.subr.mxu0 0.0
        %926 = vmatpush1.msra.mxu0 0.0
        %927 = vmatprep.subr.mxu0 0.0
        %928 = vmatpush1.msra.mxu0 0.0
        %929 = vmatprep.subr.mxu0 0.0
        %930 = vmatpush1.msra.mxu0 0.0
        %931 = vmatprep.subr.mxu0 0.0
        %932 = vmatpush1.msra.mxu0 0.0
        %933 = vmatprep.subr.mxu0 0.0
        %934 = vmatpush1.msra.mxu0 0.0
        %935 = vmatprep.subr.mxu0 0.0
        %936 = vmatpush1.msra.mxu0 0.0
        %937 = vmatprep.subr.mxu0 0.0
        %938 = vmatpush1.msra.mxu0 0.0
        %939 = vmatprep.subr.mxu0 0.0
        %940 = vmatpush1.msra.mxu0 0.0
        %941 = vmatprep.subr.mxu0 0.0
        %942 = vmatpush1.msra.mxu0 0.0
        %943 = vmatprep.subr.mxu0 0.0
        %944 = vmatpush1.msra.mxu0 0.0
        %945 = vmatprep.mubr.f32.mxu0 %v876
        %946 = vmatmul.mubr.f32.gmra.mrb[0].mxu0 %v865
        %v947 = vpop.f32.mrb[0].mxu0
        %v948 = vadd.f32 %v397, %v947
        %v949 = vpop.f32.mrb[0].mxu0
        %950 = vmatprep.mubr.f32.mxu0 %v879
        %951 = vmatmul.mubr.f32.gmra.mrb[0].mxu0 %v871
        %v952 = vpop.f32.mrb[0].mxu0
        %v953 = vadd.f32 %v398, %v952
        %v954 = vpop.f32.mrb[0].mxu0
        %955 = vdwg.mxu0
        %v956 = vxor.u32 %v948, 2147483648
        %v957 = vxor.u32 %v953, 2147483648
        %v958 = vmul.f32 %v956, 1.442695
        %v959 = vpow.pop %v958
        %v960 = vmul.f32 %v957, 1.442695
        %v961 = vpow.pop %v960
        %v962 = vadd.f32 %v959, 1.0
        %v963 = vadd.f32 %v961, 1.0
        %v964 = vrcp.pop %v962
        %v965 = vmul.f32 1.0, %v964
        %v966 = vrcp.pop %v963
        %v967 = vmul.f32 1.0, %v966
        %v968 = vmul.f32 %v965, %v755
        %v969 = vmul.f32 %v967, %v757
        %972 = vrot.lane.b32.xlu0 %v968, 96
        %v973 = vpop.permute.xlu0 %972
        %974 = vrot.lane.b32.xlu0 %v969, 96
        %v975 = vpop.permute.xlu0 %974
        %v976 = vsel %vm419, %v973, 0
        %v978 = vsel %vm419, %v975, 0
        %980 = vmatprep.subr.mxu0 0.0
        %981 = vmatpush1.msra.mxu0 %v627
        %982 = vmatprep.subr.mxu0 0.0
        %983 = vmatpush1.msra.mxu0 %v628
        %984 = vmatprep.subr.mxu0 0.0
        %985 = vmatpush1.msra.mxu0 %v629
        %986 = vmatprep.subr.mxu0 0.0
        %987 = vmatpush1.msra.mxu0 %v630
        %988 = vmatprep.subr.mxu0 0.0
        %989 = vmatpush1.msra.mxu0 0.0
        %990 = vmatprep.subr.mxu0 0.0
        %991 = vmatpush1.msra.mxu0 0.0
        %992 = vmatprep.subr.mxu0 0.0
        %993 = vmatpush1.msra.mxu0 0.0
        %994 = vmatprep.subr.mxu0 0.0
        %995 = vmatpush1.msra.mxu0 0.0
        %996 = vmatprep.subr.mxu0 0.0
        %997 = vmatpush1.msra.mxu0 0.0
        %998 = vmatprep.subr.mxu0 0.0
        %999 = vmatpush1.msra.mxu0 0.0
        %1000 = vmatprep.subr.mxu0 0.0
        %1001 = vmatpush1.msra.mxu0 0.0
        %1002 = vmatprep.subr.mxu0 0.0
        %1003 = vmatpush1.msra.mxu0 0.0
        %1004 = vmatprep.subr.mxu0 0.0
        %1005 = vmatpush1.msra.mxu0 0.0
        %1006 = vmatprep.subr.mxu0 0.0
        %1007 = vmatpush1.msra.mxu0 0.0
        %1008 = vmatprep.subr.mxu0 0.0
        %1009 = vmatpush1.msra.mxu0 0.0
        %1010 = vmatprep.subr.mxu0 0.0
        %1011 = vmatpush1.msra.mxu0 0.0
        %1012 = vmatprep.subr.mxu0 0.0
        %1013 = vmatpush1.msra.mxu0 0.0
        %1014 = vmatprep.subr.mxu0 0.0
        %1015 = vmatpush1.msra.mxu0 0.0
        %1016 = vmatprep.subr.mxu0 0.0
        %1017 = vmatpush1.msra.mxu0 0.0
        %1018 = vmatprep.subr.mxu0 0.0
        %1019 = vmatpush1.msra.mxu0 0.0
        %1020 = vmatprep.subr.mxu0 0.0
        %1021 = vmatpush1.msra.mxu0 0.0
        %1022 = vmatprep.subr.mxu0 0.0
        %1023 = vmatpush1.msra.mxu0 0.0
        %1024 = vmatprep.subr.mxu0 0.0
        %1025 = vmatpush1.msra.mxu0 0.0
        %1026 = vmatprep.subr.mxu0 0.0
        %1027 = vmatpush1.msra.mxu0 0.0
        %1028 = vmatprep.subr.mxu0 0.0
        %1029 = vmatpush1.msra.mxu0 0.0
        %1030 = vmatprep.subr.mxu0 0.0
        %1031 = vmatpush1.msra.mxu0 0.0
        %1032 = vmatprep.subr.mxu0 0.0
        %1033 = vmatpush1.msra.mxu0 0.0
        %1034 = vmatprep.subr.mxu0 0.0
        %1035 = vmatpush1.msra.mxu0 0.0
        %1036 = vmatprep.subr.mxu0 0.0
        %1037 = vmatpush1.msra.mxu0 0.0
        %1038 = vmatprep.subr.mxu0 0.0
        %1039 = vmatpush1.msra.mxu0 0.0
        %1040 = vmatprep.subr.mxu0 0.0
        %1041 = vmatpush1.msra.mxu0 0.0
        %1042 = vmatprep.subr.mxu0 0.0
        %1043 = vmatpush1.msra.mxu0 0.0
        %1044 = vmatprep.mubr.f32.mxu0 0.0
        %1045 = vmatmul.mubr.f32.gmra.mrb[0].mxu0 %v976
        %v1046 = vpop.f32.mrb[0].mxu0
        %v1047 = vadd.f32 0.0, %v1046
        %v1048 = vpop.f32.mrb[0].mxu0
        %1049 = vmatprep.mubr.f32.mxu0 0.0
        %1050 = vmatmul.mubr.f32.gmra.mrb[0].mxu0 %v978
        %v1051 = vpop.f32.mrb[0].mxu0
        %v1052 = vadd.f32 0.0, %v1051
        %v1053 = vpop.f32.mrb[0].mxu0
        %1054 = vdwg.mxu0
        %1057 = vrot.lane.b32.xlu0 %v1047, 64
        %v1058 = vpop.permute.xlu0 %1057
        %1059 = vrot.lane.b32.xlu0 %v1052, 64
        %v1060 = vpop.permute.xlu0 %1059
        %v1063 = vadd.f32 %v948, %v1058
        %v1064 = vadd.f32 %v953, %v1060
        %v1065 = vtanh.pop %v1063
        %v1066 = vtanh.pop %v1064
        %v1067 = vsub.f32 1.0, %v965
        %v1068 = vsub.f32 1.0, %v967
        %v1069 = vmul.f32 %v1067, %v750
        %v1070 = vmul.f32 %v1068, %v751
        %1073 = vrot.lane.b32.xlu0 %v1065, 96
        %v1074 = vpop.permute.xlu0 %1073
        %1075 = vrot.lane.b32.xlu0 %v1066, 96
        %v1076 = vpop.permute.xlu0 %1075
        %v1079 = vmul.f32 %v965, %v1074
        %v1080 = vmul.f32 %v967, %v1076
        %1083 = vrot.lane.b32.xlu0 %v1079, 96
        %v1084 = vpop.permute.xlu0 %1083
        %1085 = vrot.lane.b32.xlu0 %v1080, 96
        %v1086 = vpop.permute.xlu0 %1085
        %v1089 = vadd.f32 %v1069, %v1084
        %v1090 = vadd.f32 %v1070, %v1086
        %1093 = vrot.lane.b32.xlu0 %v1089, 32
        %v1094 = vpop.permute.xlu0 %1093
        %1095 = vrot.lane.b32.xlu0 %v1090, 32
        %v1096 = vpop.permute.xlu0 %1095
        %1099 = vrot.lane.b32.xlu0 %v1089, 64
        %v1100 = vpop.permute.xlu0 %1099
        %1101 = vrot.lane.b32.xlu0 %v1090, 64
        %v1102 = vpop.permute.xlu0 %1101
        %1105 = vrot.lane.b32.xlu0 %v1089, 96
        %v1106 = vpop.permute.xlu0 %1105
        %1107 = vrot.lane.b32.xlu0 %v1090, 96
        %v1108 = vpop.permute.xlu0 %1107
        %v1111 = vsel %vm419, %v1089, %v1094
        %v1112 = vsel %vm419, %v1090, %v1096
        %v1113 = vsel %vm422, %v1111, %v1100
        %v1114 = vsel %vm422, %v1112, %v1102
        %v1115 = vsel %vm425, %v1113, %v1106
        %v1116 = vsel %vm425, %v1114, %v1108
        %v1117 = vmul.f32 %v1115, %v377
        %v1118 = vmul.f32 %v1089, %v378
        %v1119 = vmul.f32 %v1116, %v379
        %v1120 = vmul.f32 %v1090, %v380
        %v1121 = vmul.f32 %v1115, %v381
        %v1122 = vmul.f32 %v1089, %v382
        %v1123 = vmul.f32 %v1116, %v383
        %v1124 = vmul.f32 %v1090, %v384
        %v1125 = vmul.f32 %v1115, %v385
        %v1126 = vmul.f32 %v1089, %v386
        %v1127 = vmul.f32 %v1116, %v387
        %v1128 = vmul.f32 %v1090, %v388
        %v1129 = vmul.f32 %v1115, %v389
        %v1130 = vmul.f32 %v1089, %v390
        %v1131 = vmul.f32 %v1116, %v391
        %v1132 = vmul.f32 %v1090, %v392
        %v1133 = vmul.f32 %v1115, %v393
        %v1134 = vmul.f32 %v1089, %v394
        %v1135 = vmul.f32 %v1116, %v395
        %v1136 = vmul.f32 %v1090, %v396
        %1137 = vmatprep.subr.mxu0 %v1118
        %1138 = vmatpush1.msra.mxu0 %v1117
        %1139 = vmatprep.subr.mxu0 %v1120
        %1140 = vmatpush1.msra.mxu0 %v1119
        %1141 = vmatprep.subr.mxu0 %v1122
        %1142 = vmatpush1.msra.mxu0 %v1121
        %1143 = vmatprep.subr.mxu0 %v1124
        %1144 = vmatpush1.msra.mxu0 %v1123
        %1145 = vmatprep.subr.mxu0 %v1126
        %1146 = vmatpush1.msra.mxu0 %v1125
        %1147 = vmatprep.subr.mxu0 %v1128
        %1148 = vmatpush1.msra.mxu0 %v1127
        %1149 = vmatprep.subr.mxu0 %v1130
        %1150 = vmatpush1.msra.mxu0 %v1129
        %1151 = vmatprep.subr.mxu0 %v1132
        %1152 = vmatpush1.msra.mxu0 %v1131
        %1153 = vmatprep.subr.mxu0 %v1134
        %1154 = vmatpush1.msra.mxu0 %v1133
        %1155 = vmatprep.subr.mxu0 %v1136
        %1156 = vmatpush1.msra.mxu0 %v1135
        %1157 = vmatprep.subr.mxu0 0.0
        %1158 = vmatpush1.msra.mxu0 0.0
        %1159 = vmatprep.subr.mxu0 0.0
        %1160 = vmatpush1.msra.mxu0 0.0
        %1161 = vmatprep.subr.mxu0 0.0
        %1162 = vmatpush1.msra.mxu0 0.0
        %1163 = vmatprep.subr.mxu0 0.0
        %1164 = vmatpush1.msra.mxu0 0.0
        %1165 = vmatprep.subr.mxu0 0.0
        %1166 = vmatpush1.msra.mxu0 0.0
        %1167 = vmatprep.subr.mxu0 0.0
        %1168 = vmatpush1.msra.mxu0 0.0
        %1169 = vmatprep.subr.mxu0 0.0
        %1170 = vmatpush1.msra.mxu0 0.0
        %1171 = vmatprep.subr.mxu0 0.0
        %1172 = vmatpush1.msra.mxu0 0.0
        %1173 = vmatprep.subr.mxu0 0.0
        %1174 = vmatpush1.msra.mxu0 0.0
        %1175 = vmatprep.subr.mxu0 0.0
        %1176 = vmatpush1.msra.mxu0 0.0
        %1177 = vmatprep.subr.mxu0 0.0
        %1178 = vmatpush1.msra.mxu0 0.0
        %1179 = vmatprep.subr.mxu0 0.0
        %1180 = vmatpush1.msra.mxu0 0.0
        %1181 = vmatprep.subr.mxu0 0.0
        %1182 = vmatpush1.msra.mxu0 0.0
        %1183 = vmatprep.subr.mxu0 0.0
        %1184 = vmatpush1.msra.mxu0 0.0
        %1185 = vmatprep.subr.mxu0 0.0
        %1186 = vmatpush1.msra.mxu0 0.0
        %1187 = vmatprep.subr.mxu0 0.0
        %1188 = vmatpush1.msra.mxu0 0.0
        %1189 = vmatprep.subr.mxu0 0.0
        %1190 = vmatpush1.msra.mxu0 0.0
        %1191 = vmatprep.subr.mxu0 0.0
        %1192 = vmatpush1.msra.mxu0 0.0
        %1193 = vmatprep.subr.mxu0 0.0
        %1194 = vmatpush1.msra.mxu0 0.0
        %1195 = vmatprep.subr.mxu0 0.0
        %1196 = vmatpush1.msra.mxu0 0.0
        %1197 = vmatprep.subr.mxu0 0.0
        %1198 = vmatpush1.msra.mxu0 0.0
        %1199 = vmatprep.subr.mxu0 0.0
        %1200 = vmatpush1.msra.mxu0 0.0
        %1201 = vmatprep.mubr.f32.mxu0 0.0
        %1202 = vmatmul.mubr.f32.gmra.mrb[0].mxu0 %v450
        %v1203 = vpop.f32.mrb[0].mxu0
        %v1204 = vadd.f32 0.0, %v1203
        %v1205 = vpop.f32.mrb[0].mxu0
        %v1206 = vadd.f32 0.0, %v1205
        %1207 = vmatprep.mubr.f32.mxu0 0.0
        %1208 = vmatmul.mubr.f32.gmra.mrb[0].mxu0 %v453
        %v1209 = vpop.f32.mrb[0].mxu0
        %v1210 = vadd.f32 0.0, %v1209
        %v1211 = vpop.f32.mrb[0].mxu0
        %v1212 = vadd.f32 0.0, %v1211
        %1213 = vdwg.mxu0
        %v1215 = vsel %vm419, %v1206, 0
        %v1218 = vsel %vm419, %v1212, 0
        %1220 = vmatprep.subr.mxu0 0.0
        %1221 = vmatpush1.msra.mxu0 %v357
        %1222 = vmatprep.subr.mxu0 0.0
        %1223 = vmatpush1.msra.mxu0 %v358
        %1224 = vmatprep.subr.mxu0 0.0
        %1225 = vmatpush1.msra.mxu0 %v359
        %1226 = vmatprep.subr.mxu0 0.0
        %1227 = vmatpush1.msra.mxu0 %v360
        %1228 = vmatprep.subr.mxu0 0.0
        %1229 = vmatpush1.msra.mxu0 %v361
        %1230 = vmatprep.subr.mxu0 0.0
        %1231 = vmatpush1.msra.mxu0 %v362
        %1232 = vmatprep.subr.mxu0 0.0
        %1233 = vmatpush1.msra.mxu0 %v363
        %1234 = vmatprep.subr.mxu0 0.0
        %1235 = vmatpush1.msra.mxu0 %v364
        %1236 = vmatprep.subr.mxu0 0.0
        %1237 = vmatpush1.msra.mxu0 %v365
        %1238 = vmatprep.subr.mxu0 0.0
        %1239 = vmatpush1.msra.mxu0 %v366
        %1240 = vmatprep.subr.mxu0 0.0
        %1241 = vmatpush1.msra.mxu0 %v367
        %1242 = vmatprep.subr.mxu0 0.0
        %1243 = vmatpush1.msra.mxu0 %v368
        %1244 = vmatprep.subr.mxu0 0.0
        %1245 = vmatpush1.msra.mxu0 %v369
        %1246 = vmatprep.subr.mxu0 0.0
        %1247 = vmatpush1.msra.mxu0 %v370
        %1248 = vmatprep.subr.mxu0 0.0
        %1249 = vmatpush1.msra.mxu0 %v371
        %1250 = vmatprep.subr.mxu0 0.0
        %1251 = vmatpush1.msra.mxu0 %v372
        %1252 = vmatprep.subr.mxu0 0.0
        %1253 = vmatpush1.msra.mxu0 %v373
        %1254 = vmatprep.subr.mxu0 0.0
        %1255 = vmatpush1.msra.mxu0 %v374
        %1256 = vmatprep.subr.mxu0 0.0
        %1257 = vmatpush1.msra.mxu0 %v375
        %1258 = vmatprep.subr.mxu0 0.0
        %1259 = vmatpush1.msra.mxu0 %v376
        %1260 = vmatprep.subr.mxu0 0.0
        %1261 = vmatpush1.msra.mxu0 0.0
        %1262 = vmatprep.subr.mxu0 0.0
        %1263 = vmatpush1.msra.mxu0 0.0
        %1264 = vmatprep.subr.mxu0 0.0
        %1265 = vmatpush1.msra.mxu0 0.0
        %1266 = vmatprep.subr.mxu0 0.0
        %1267 = vmatpush1.msra.mxu0 0.0
        %1268 = vmatprep.subr.mxu0 0.0
        %1269 = vmatpush1.msra.mxu0 0.0
        %1270 = vmatprep.subr.mxu0 0.0
        %1271 = vmatpush1.msra.mxu0 0.0
        %1272 = vmatprep.subr.mxu0 0.0
        %1273 = vmatpush1.msra.mxu0 0.0
        %1274 = vmatprep.subr.mxu0 0.0
        %1275 = vmatpush1.msra.mxu0 0.0
        %1276 = vmatprep.subr.mxu0 0.0
        %1277 = vmatpush1.msra.mxu0 0.0
        %1278 = vmatprep.subr.mxu0 0.0
        %1279 = vmatpush1.msra.mxu0 0.0
        %1280 = vmatprep.subr.mxu0 0.0
        %1281 = vmatpush1.msra.mxu0 0.0
        %1282 = vmatprep.subr.mxu0 0.0
        %1283 = vmatpush1.msra.mxu0 0.0
        %1284 = vmatprep.mubr.f32.mxu0 %v1215
        %1285 = vmatmul.mubr.f32.gmra.mrb[0].mxu0 %v1204
        %v1286 = vpop.f32.mrb[0].mxu0
        %v1287 = vadd.f32 %v397, %v1286
        %v1288 = vpop.f32.mrb[0].mxu0
        %1289 = vmatprep.mubr.f32.mxu0 %v1218
        %1290 = vmatmul.mubr.f32.gmra.mrb[0].mxu0 %v1210
        %v1291 = vpop.f32.mrb[0].mxu0
        %v1292 = vadd.f32 %v398, %v1291
        %v1293 = vpop.f32.mrb[0].mxu0
        %1294 = vdwg.mxu0
        %v1295 = vxor.u32 %v1287, 2147483648
        %v1296 = vxor.u32 %v1292, 2147483648
        %v1297 = vmul.f32 %v1295, 1.442695
        %v1298 = vpow.pop %v1297
        %v1299 = vmul.f32 %v1296, 1.442695
        %v1300 = vpow.pop %v1299
        %v1301 = vadd.f32 %v1298, 1.0
        %v1302 = vadd.f32 %v1300, 1.0
        %v1303 = vrcp.pop %v1301
        %v1304 = vmul.f32 1.0, %v1303
        %v1305 = vrcp.pop %v1302
        %v1306 = vmul.f32 1.0, %v1305
        %v1307 = vmul.f32 %v1304, %v1094
        %v1308 = vmul.f32 %v1306, %v1096
        %1311 = vrot.lane.b32.xlu0 %v1307, 96
        %v1312 = vpop.permute.xlu0 %1311
        %1313 = vrot.lane.b32.xlu0 %v1308, 96
        %v1314 = vpop.permute.xlu0 %1313
        %v1315 = vsel %vm419, %v1312, 0
        %v1317 = vsel %vm419, %v1314, 0
        %1319 = vmatprep.subr.mxu0 0.0
        %1320 = vmatpush1.msra.mxu0 %v627
        %1321 = vmatprep.subr.mxu0 0.0
        %1322 = vmatpush1.msra.mxu0 %v628
        %1323 = vmatprep.subr.mxu0 0.0
        %1324 = vmatpush1.msra.mxu0 %v629
        %1325 = vmatprep.subr.mxu0 0.0
        %1326 = vmatpush1.msra.mxu0 %v630
        %1327 = vmatprep.subr.mxu0 0.0
        %1328 = vmatpush1.msra.mxu0 0.0
        %1329 = vmatprep.subr.mxu0 0.0
        %1330 = vmatpush1.msra.mxu0 0.0
        %1331 = vmatprep.subr.mxu0 0.0
        %1332 = vmatpush1.msra.mxu0 0.0
        %1333 = vmatprep.subr.mxu0 0.0
        %1334 = vmatpush1.msra.mxu0 0.0
        %1335 = vmatprep.subr.mxu0 0.0
        %1336 = vmatpush1.msra.mxu0 0.0
        %1337 = vmatprep.subr.mxu0 0.0
        %1338 = vmatpush1.msra.mxu0 0.0
        %1339 = vmatprep.subr.mxu0 0.0
        %1340 = vmatpush1.msra.mxu0 0.0
        %1341 = vmatprep.subr.mxu0 0.0
        %1342 = vmatpush1.msra.mxu0 0.0
        %1343 = vmatprep.subr.mxu0 0.0
        %1344 = vmatpush1.msra.mxu0 0.0
        %1345 = vmatprep.subr.mxu0 0.0
        %1346 = vmatpush1.msra.mxu0 0.0
        %1347 = vmatprep.subr.mxu0 0.0
        %1348 = vmatpush1.msra.mxu0 0.0
        %1349 = vmatprep.subr.mxu0 0.0
        %1350 = vmatpush1.msra.mxu0 0.0
        %1351 = vmatprep.subr.mxu0 0.0
        %1352 = vmatpush1.msra.mxu0 0.0
        %1353 = vmatprep.subr.mxu0 0.0
        %1354 = vmatpush1.msra.mxu0 0.0
        %1355 = vmatprep.subr.mxu0 0.0
        %1356 = vmatpush1.msra.mxu0 0.0
        %1357 = vmatprep.subr.mxu0 0.0
        %1358 = vmatpush1.msra.mxu0 0.0
        %1359 = vmatprep.subr.mxu0 0.0
        %1360 = vmatpush1.msra.mxu0 0.0
        %1361 = vmatprep.subr.mxu0 0.0
        %1362 = vmatpush1.msra.mxu0 0.0
        %1363 = vmatprep.subr.mxu0 0.0
        %1364 = vmatpush1.msra.mxu0 0.0
        %1365 = vmatprep.subr.mxu0 0.0
        %1366 = vmatpush1.msra.mxu0 0.0
        %1367 = vmatprep.subr.mxu0 0.0
        %1368 = vmatpush1.msra.mxu0 0.0
        %1369 = vmatprep.subr.mxu0 0.0
        %1370 = vmatpush1.msra.mxu0 0.0
        %1371 = vmatprep.subr.mxu0 0.0
        %1372 = vmatpush1.msra.mxu0 0.0
        %1373 = vmatprep.subr.mxu0 0.0
        %1374 = vmatpush1.msra.mxu0 0.0
        %1375 = vmatprep.subr.mxu0 0.0
        %1376 = vmatpush1.msra.mxu0 0.0
        %1377 = vmatprep.subr.mxu0 0.0
        %1378 = vmatpush1.msra.mxu0 0.0
        %1379 = vmatprep.subr.mxu0 0.0
        %1380 = vmatpush1.msra.mxu0 0.0
        %1381 = vmatprep.subr.mxu0 0.0
        %1382 = vmatpush1.msra.mxu0 0.0
        %1383 = vmatprep.mubr.f32.mxu0 0.0
        %1384 = vmatmul.mubr.f32.gmra.mrb[0].mxu0 %v1315
        %v1385 = vpop.f32.mrb[0].mxu0
        %v1386 = vadd.f32 0.0, %v1385
        %v1387 = vpop.f32.mrb[0].mxu0
        %1388 = vmatprep.mubr.f32.mxu0 0.0
        %1389 = vmatmul.mubr.f32.gmra.mrb[0].mxu0 %v1317
        %v1390 = vpop.f32.mrb[0].mxu0
        %v1391 = vadd.f32 0.0, %v1390
        %v1392 = vpop.f32.mrb[0].mxu0
        %1393 = vdwg.mxu0
        %1396 = vrot.lane.b32.xlu0 %v1386, 64
        %v1397 = vpop.permute.xlu0 %1396
        %1398 = vrot.lane.b32.xlu0 %v1391, 64
        %v1399 = vpop.permute.xlu0 %1398
        %v1402 = vadd.f32 %v1287, %v1397
        %v1403 = vadd.f32 %v1292, %v1399
        %v1404 = vtanh.pop %v1402
        %v1405 = vtanh.pop %v1403
        %v1406 = vsub.f32 1.0, %v1304
        %v1407 = vsub.f32 1.0, %v1306
        %v1408 = vmul.f32 %v1406, %v1089
        %v1409 = vmul.f32 %v1407, %v1090
        %1412 = vrot.lane.b32.xlu0 %v1404, 96
        %v1413 = vpop.permute.xlu0 %1412
        %1414 = vrot.lane.b32.xlu0 %v1405, 96
        %v1415 = vpop.permute.xlu0 %1414
        %v1418 = vmul.f32 %v1304, %v1413
        %v1419 = vmul.f32 %v1306, %v1415
        %1422 = vrot.lane.b32.xlu0 %v1418, 96
        %v1423 = vpop.permute.xlu0 %1422
        %1424 = vrot.lane.b32.xlu0 %v1419, 96
        %v1425 = vpop.permute.xlu0 %1424
        %v1428 = vadd.f32 %v1408, %v1423
        %v1429 = vadd.f32 %v1409, %v1425
        %1432 = vrot.lane.b32.xlu0 %v1428, 32
        %v1433 = vpop.permute.xlu0 %1432
        %1434 = vrot.lane.b32.xlu0 %v1429, 32
        %v1435 = vpop.permute.xlu0 %1434
        %1438 = vrot.lane.b32.xlu0 %v1428, 64
        %v1439 = vpop.permute.xlu0 %1438
        %1440 = vrot.lane.b32.xlu0 %v1429, 64
        %v1441 = vpop.permute.xlu0 %1440
        %1444 = vrot.lane.b32.xlu0 %v1428, 96
        %v1445 = vpop.permute.xlu0 %1444
        %1446 = vrot.lane.b32.xlu0 %v1429, 96
        %v1447 = vpop.permute.xlu0 %1446
        %v1450 = vsel %vm419, %v1428, %v1433
        %v1451 = vsel %vm419, %v1429, %v1435
        %v1452 = vsel %vm422, %v1450, %v1439
        %v1453 = vsel %vm422, %v1451, %v1441
        %v1454 = vsel %vm425, %v1452, %v1445
        %v1455 = vsel %vm425, %v1453, %v1447
        %v1456 = vmul.f32 %v1454, %v377
        %v1457 = vmul.f32 %v1428, %v378
        %v1458 = vmul.f32 %v1455, %v379
        %v1459 = vmul.f32 %v1429, %v380
        %v1460 = vmul.f32 %v1454, %v381
        %v1461 = vmul.f32 %v1428, %v382
        %v1462 = vmul.f32 %v1455, %v383
        %v1463 = vmul.f32 %v1429, %v384
        %v1464 = vmul.f32 %v1454, %v385
        %v1465 = vmul.f32 %v1428, %v386
        %v1466 = vmul.f32 %v1455, %v387
        %v1467 = vmul.f32 %v1429, %v388
        %v1468 = vmul.f32 %v1454, %v389
        %v1469 = vmul.f32 %v1428, %v390
        %v1470 = vmul.f32 %v1455, %v391
        %v1471 = vmul.f32 %v1429, %v392
        %v1472 = vmul.f32 %v1454, %v393
        %v1473 = vmul.f32 %v1428, %v394
        %v1474 = vmul.f32 %v1455, %v395
        %v1475 = vmul.f32 %v1429, %v396
        %1476 = vmatprep.subr.mxu0 %v1457
        %1477 = vmatpush1.msra.mxu0 %v1456
        %1478 = vmatprep.subr.mxu0 %v1459
        %1479 = vmatpush1.msra.mxu0 %v1458
        %1480 = vmatprep.subr.mxu0 %v1461
        %1481 = vmatpush1.msra.mxu0 %v1460
        %1482 = vmatprep.subr.mxu0 %v1463
        %1483 = vmatpush1.msra.mxu0 %v1462
        %1484 = vmatprep.subr.mxu0 %v1465
        %1485 = vmatpush1.msra.mxu0 %v1464
        %1486 = vmatprep.subr.mxu0 %v1467
        %1487 = vmatpush1.msra.mxu0 %v1466
        %1488 = vmatprep.subr.mxu0 %v1469
        %1489 = vmatpush1.msra.mxu0 %v1468
        %1490 = vmatprep.subr.mxu0 %v1471
        %1491 = vmatpush1.msra.mxu0 %v1470
        %1492 = vmatprep.subr.mxu0 %v1473
        %1493 = vmatpush1.msra.mxu0 %v1472
        %1494 = vmatprep.subr.mxu0 %v1475
        %1495 = vmatpush1.msra.mxu0 %v1474
        %1496 = vmatprep.subr.mxu0 0.0
        %1497 = vmatpush1.msra.mxu0 0.0
        %1498 = vmatprep.subr.mxu0 0.0
        %1499 = vmatpush1.msra.mxu0 0.0
        %1500 = vmatprep.subr.mxu0 0.0
        %1501 = vmatpush1.msra.mxu0 0.0
        %1502 = vmatprep.subr.mxu0 0.0
        %1503 = vmatpush1.msra.mxu0 0.0
        %1504 = vmatprep.subr.mxu0 0.0
        %1505 = vmatpush1.msra.mxu0 0.0
        %1506 = vmatprep.subr.mxu0 0.0
        %1507 = vmatpush1.msra.mxu0 0.0
        %1508 = vmatprep.subr.mxu0 0.0
        %1509 = vmatpush1.msra.mxu0 0.0
        %1510 = vmatprep.subr.mxu0 0.0
        %1511 = vmatpush1.msra.mxu0 0.0
        %1512 = vmatprep.subr.mxu0 0.0
        %1513 = vmatpush1.msra.mxu0 0.0
        %1514 = vmatprep.subr.mxu0 0.0
        %1515 = vmatpush1.msra.mxu0 0.0
        %1516 = vmatprep.subr.mxu0 0.0
        %1517 = vmatpush1.msra.mxu0 0.0
        %1518 = vmatprep.subr.mxu0 0.0
        %1519 = vmatpush1.msra.mxu0 0.0
        %1520 = vmatprep.subr.mxu0 0.0
        %1521 = vmatpush1.msra.mxu0 0.0
        %1522 = vmatprep.subr.mxu0 0.0
        %1523 = vmatpush1.msra.mxu0 0.0
        %1524 = vmatprep.subr.mxu0 0.0
        %1525 = vmatpush1.msra.mxu0 0.0
        %1526 = vmatprep.subr.mxu0 0.0
        %1527 = vmatpush1.msra.mxu0 0.0
        %1528 = vmatprep.subr.mxu0 0.0
        %1529 = vmatpush1.msra.mxu0 0.0
        %1530 = vmatprep.subr.mxu0 0.0
        %1531 = vmatpush1.msra.mxu0 0.0
        %1532 = vmatprep.subr.mxu0 0.0
        %1533 = vmatpush1.msra.mxu0 0.0
        %1534 = vmatprep.subr.mxu0 0.0
        %1535 = vmatpush1.msra.mxu0 0.0
        %1536 = vmatprep.subr.mxu0 0.0
        %1537 = vmatpush1.msra.mxu0 0.0
        %1538 = vmatprep.subr.mxu0 0.0
        %1539 = vmatpush1.msra.mxu0 0.0
        %1540 = vmatprep.mubr.f32.mxu0 0.0
        %1541 = vmatmul.mubr.f32.gmra.mrb[0].mxu0 %v450
        %v1542 = vpop.f32.mrb[0].mxu0
        %v1543 = vadd.f32 0.0, %v1542
        %v1544 = vpop.f32.mrb[0].mxu0
        %v1545 = vadd.f32 0.0, %v1544
        %1546 = vmatprep.mubr.f32.mxu0 0.0
        %1547 = vmatmul.mubr.f32.gmra.mrb[0].mxu0 %v453
        %v1548 = vpop.f32.mrb[0].mxu0
        %v1549 = vadd.f32 0.0, %v1548
        %v1550 = vpop.f32.mrb[0].mxu0
        %v1551 = vadd.f32 0.0, %v1550
        %1552 = vdwg.mxu0
        %v1554 = vsel %vm419, %v1545, 0
        %v1557 = vsel %vm419, %v1551, 0
        %1559 = vmatprep.subr.mxu0 0.0
        %1560 = vmatpush1.msra.mxu0 %v357
        %1561 = vmatprep.subr.mxu0 0.0
        %1562 = vmatpush1.msra.mxu0 %v358
        %1563 = vmatprep.subr.mxu0 0.0
        %1564 = vmatpush1.msra.mxu0 %v359
        %1565 = vmatprep.subr.mxu0 0.0
        %1566 = vmatpush1.msra.mxu0 %v360
        %1567 = vmatprep.subr.mxu0 0.0
        %1568 = vmatpush1.msra.mxu0 %v361
        %1569 = vmatprep.subr.mxu0 0.0
        %1570 = vmatpush1.msra.mxu0 %v362
        %1571 = vmatprep.subr.mxu0 0.0
        %1572 = vmatpush1.msra.mxu0 %v363
        %1573 = vmatprep.subr.mxu0 0.0
        %1574 = vmatpush1.msra.mxu0 %v364
        %1575 = vmatprep.subr.mxu0 0.0
        %1576 = vmatpush1.msra.mxu0 %v365
        %1577 = vmatprep.subr.mxu0 0.0
        %1578 = vmatpush1.msra.mxu0 %v366
        %1579 = vmatprep.subr.mxu0 0.0
        %1580 = vmatpush1.msra.mxu0 %v367
        %1581 = vmatprep.subr.mxu0 0.0
        %1582 = vmatpush1.msra.mxu0 %v368
        %1583 = vmatprep.subr.mxu0 0.0
        %1584 = vmatpush1.msra.mxu0 %v369
        %1585 = vmatprep.subr.mxu0 0.0
        %1586 = vmatpush1.msra.mxu0 %v370
        %1587 = vmatprep.subr.mxu0 0.0
        %1588 = vmatpush1.msra.mxu0 %v371
        %1589 = vmatprep.subr.mxu0 0.0
        %1590 = vmatpush1.msra.mxu0 %v372
        %1591 = vmatprep.subr.mxu0 0.0
        %1592 = vmatpush1.msra.mxu0 %v373
        %1593 = vmatprep.subr.mxu0 0.0
        %1594 = vmatpush1.msra.mxu0 %v374
        %1595 = vmatprep.subr.mxu0 0.0
        %1596 = vmatpush1.msra.mxu0 %v375
        %1597 = vmatprep.subr.mxu0 0.0
        %1598 = vmatpush1.msra.mxu0 %v376
        %1599 = vmatprep.subr.mxu0 0.0
        %1600 = vmatpush1.msra.mxu0 0.0
        %1601 = vmatprep.subr.mxu0 0.0
        %1602 = vmatpush1.msra.mxu0 0.0
        %1603 = vmatprep.subr.mxu0 0.0
        %1604 = vmatpush1.msra.mxu0 0.0
        %1605 = vmatprep.subr.mxu0 0.0
        %1606 = vmatpush1.msra.mxu0 0.0
        %1607 = vmatprep.subr.mxu0 0.0
        %1608 = vmatpush1.msra.mxu0 0.0
        %1609 = vmatprep.subr.mxu0 0.0
        %1610 = vmatpush1.msra.mxu0 0.0
        %1611 = vmatprep.subr.mxu0 0.0
        %1612 = vmatpush1.msra.mxu0 0.0
        %1613 = vmatprep.subr.mxu0 0.0
        %1614 = vmatpush1.msra.mxu0 0.0
        %1615 = vmatprep.subr.mxu0 0.0
        %1616 = vmatpush1.msra.mxu0 0.0
        %1617 = vmatprep.subr.mxu0 0.0
        %1618 = vmatpush1.msra.mxu0 0.0
        %1619 = vmatprep.subr.mxu0 0.0
        %1620 = vmatpush1.msra.mxu0 0.0
        %1621 = vmatprep.subr.mxu0 0.0
        %1622 = vmatpush1.msra.mxu0 0.0
        %1623 = vmatprep.mubr.f32.mxu0 %v1554
        %1624 = vmatmul.mubr.f32.gmra.mrb[0].mxu0 %v1543
        %v1625 = vpop.f32.mrb[0].mxu0
        %v1626 = vadd.f32 %v397, %v1625
        %v1627 = vpop.f32.mrb[0].mxu0
        %1628 = vmatprep.mubr.f32.mxu0 %v1557
        %1629 = vmatmul.mubr.f32.gmra.mrb[0].mxu0 %v1549
        %v1630 = vpop.f32.mrb[0].mxu0
        %v1631 = vadd.f32 %v398, %v1630
        %v1632 = vpop.f32.mrb[0].mxu0
        %1633 = vdwg.mxu0
        %v1634 = vxor.u32 %v1626, 2147483648
        %v1635 = vxor.u32 %v1631, 2147483648
        %v1636 = vmul.f32 %v1634, 1.442695
        %v1637 = vpow.pop %v1636
        %v1638 = vmul.f32 %v1635, 1.442695
        %v1639 = vpow.pop %v1638
        %v1640 = vadd.f32 %v1637, 1.0
        %v1641 = vadd.f32 %v1639, 1.0
        %v1642 = vrcp.pop %v1640
        %v1643 = vmul.f32 1.0, %v1642
        %v1644 = vrcp.pop %v1641
        %v1645 = vmul.f32 1.0, %v1644
        %v1646 = vmul.f32 %v1643, %v1433
        %v1647 = vmul.f32 %v1645, %v1435
        %1650 = vrot.lane.b32.xlu0 %v1646, 96
        %v1651 = vpop.permute.xlu0 %1650
        %1652 = vrot.lane.b32.xlu0 %v1647, 96
        %v1653 = vpop.permute.xlu0 %1652
        %v1654 = vsel %vm419, %v1651, 0
        %v1656 = vsel %vm419, %v1653, 0
        %1658 = vmatprep.subr.mxu0 0.0
        %1659 = vmatpush1.msra.mxu0 %v627
        %1660 = vmatprep.subr.mxu0 0.0
        %1661 = vmatpush1.msra.mxu0 %v628
        %1662 = vmatprep.subr.mxu0 0.0
        %1663 = vmatpush1.msra.mxu0 %v629
        %1664 = vmatprep.subr.mxu0 0.0
        %1665 = vmatpush1.msra.mxu0 %v630
        %1666 = vmatprep.subr.mxu0 0.0
        %1667 = vmatpush1.msra.mxu0 0.0
        %1668 = vmatprep.subr.mxu0 0.0
        %1669 = vmatpush1.msra.mxu0 0.0
        %1670 = vmatprep.subr.mxu0 0.0
        %1671 = vmatpush1.msra.mxu0 0.0
        %1672 = vmatprep.subr.mxu0 0.0
        %1673 = vmatpush1.msra.mxu0 0.0
        %1674 = vmatprep.subr.mxu0 0.0
        %1675 = vmatpush1.msra.mxu0 0.0
        %1676 = vmatprep.subr.mxu0 0.0
        %1677 = vmatpush1.msra.mxu0 0.0
        %1678 = vmatprep.subr.mxu0 0.0
        %1679 = vmatpush1.msra.mxu0 0.0
        %1680 = vmatprep.subr.mxu0 0.0
        %1681 = vmatpush1.msra.mxu0 0.0
        %1682 = vmatprep.subr.mxu0 0.0
        %1683 = vmatpush1.msra.mxu0 0.0
        %1684 = vmatprep.subr.mxu0 0.0
        %1685 = vmatpush1.msra.mxu0 0.0
        %1686 = vmatprep.subr.mxu0 0.0
        %1687 = vmatpush1.msra.mxu0 0.0
        %1688 = vmatprep.subr.mxu0 0.0
        %1689 = vmatpush1.msra.mxu0 0.0
        %1690 = vmatprep.subr.mxu0 0.0
        %1691 = vmatpush1.msra.mxu0 0.0
        %1692 = vmatprep.subr.mxu0 0.0
        %1693 = vmatpush1.msra.mxu0 0.0
        %1694 = vmatprep.subr.mxu0 0.0
        %1695 = vmatpush1.msra.mxu0 0.0
        %1696 = vmatprep.subr.mxu0 0.0
        %1697 = vmatpush1.msra.mxu0 0.0
        %1698 = vmatprep.subr.mxu0 0.0
        %1699 = vmatpush1.msra.mxu0 0.0
        %1700 = vmatprep.subr.mxu0 0.0
        %1701 = vmatpush1.msra.mxu0 0.0
        %1702 = vmatprep.subr.mxu0 0.0
        %1703 = vmatpush1.msra.mxu0 0.0
        %1704 = vmatprep.subr.mxu0 0.0
        %1705 = vmatpush1.msra.mxu0 0.0
        %1706 = vmatprep.subr.mxu0 0.0
        %1707 = vmatpush1.msra.mxu0 0.0
        %1708 = vmatprep.subr.mxu0 0.0
        %1709 = vmatpush1.msra.mxu0 0.0
        %1710 = vmatprep.subr.mxu0 0.0
        %1711 = vmatpush1.msra.mxu0 0.0
        %1712 = vmatprep.subr.mxu0 0.0
        %1713 = vmatpush1.msra.mxu0 0.0
        %1714 = vmatprep.subr.mxu0 0.0
        %1715 = vmatpush1.msra.mxu0 0.0
        %1716 = vmatprep.subr.mxu0 0.0
        %1717 = vmatpush1.msra.mxu0 0.0
        %1718 = vmatprep.subr.mxu0 0.0
        %1719 = vmatpush1.msra.mxu0 0.0
        %1720 = vmatprep.subr.mxu0 0.0
        %1721 = vmatpush1.msra.mxu0 0.0
        %1722 = vmatprep.mubr.f32.mxu0 0.0
        %1723 = vmatmul.mubr.f32.gmra.mrb[0].mxu0 %v1654
        %v1724 = vpop.f32.mrb[0].mxu0
        %v1725 = vadd.f32 0.0, %v1724
        %v1726 = vpop.f32.mrb[0].mxu0
        %1727 = vmatprep.mubr.f32.mxu0 0.0
        %1728 = vmatmul.mubr.f32.gmra.mrb[0].mxu0 %v1656
        %v1729 = vpop.f32.mrb[0].mxu0
        %v1730 = vadd.f32 0.0, %v1729
        %v1731 = vpop.f32.mrb[0].mxu0
        %1732 = vdwg.mxu0
        %1735 = vrot.lane.b32.xlu0 %v1725, 64
        %v1736 = vpop.permute.xlu0 %1735
        %1737 = vrot.lane.b32.xlu0 %v1730, 64
        %v1738 = vpop.permute.xlu0 %1737
        %v1741 = vadd.f32 %v1626, %v1736
        %v1742 = vadd.f32 %v1631, %v1738
        %v1743 = vtanh.pop %v1741
        %v1744 = vtanh.pop %v1742
        %v1745 = vsub.f32 1.0, %v1643
        %v1746 = vsub.f32 1.0, %v1645
        %v1747 = vmul.f32 %v1745, %v1428
        %v1748 = vmul.f32 %v1746, %v1429
        %1751 = vrot.lane.b32.xlu0 %v1743, 96
        %v1752 = vpop.permute.xlu0 %1751
        %1753 = vrot.lane.b32.xlu0 %v1744, 96
        %v1754 = vpop.permute.xlu0 %1753
        %v1757 = vmul.f32 %v1643, %v1752
        %v1758 = vmul.f32 %v1645, %v1754
        %1761 = vrot.lane.b32.xlu0 %v1757, 96
        %v1762 = vpop.permute.xlu0 %1761
        %1763 = vrot.lane.b32.xlu0 %v1758, 96
        %v1764 = vpop.permute.xlu0 %1763
        %v1767 = vadd.f32 %v1747, %v1762
        %v1768 = vadd.f32 %v1748, %v1764
        %1771 = vrot.lane.b32.xlu0 %v1767, 32
        %v1772 = vpop.permute.xlu0 %1771
        %1773 = vrot.lane.b32.xlu0 %v1768, 32
        %v1774 = vpop.permute.xlu0 %1773
        %1777 = vrot.lane.b32.xlu0 %v1767, 64
        %v1778 = vpop.permute.xlu0 %1777
        %1779 = vrot.lane.b32.xlu0 %v1768, 64
        %v1780 = vpop.permute.xlu0 %1779
        %1783 = vrot.lane.b32.xlu0 %v1767, 96
        %v1784 = vpop.permute.xlu0 %1783
        %1785 = vrot.lane.b32.xlu0 %v1768, 96
        %v1786 = vpop.permute.xlu0 %1785
        %v1789 = vsel %vm419, %v1767, %v1772
        %v1790 = vsel %vm419, %v1768, %v1774
        %v1791 = vsel %vm422, %v1789, %v1778
        %v1792 = vsel %vm422, %v1790, %v1780
        %v1793 = vsel %vm425, %v1791, %v1784
        %v1794 = vsel %vm425, %v1792, %v1786
        %v1795 = vmul.f32 %v1793, %v377
        %v1796 = vmul.f32 %v1767, %v378
        %v1797 = vmul.f32 %v1794, %v379
        %v1798 = vmul.f32 %v1768, %v380
        %v1799 = vmul.f32 %v1793, %v381
        %v1800 = vmul.f32 %v1767, %v382
        %v1801 = vmul.f32 %v1794, %v383
        %v1802 = vmul.f32 %v1768, %v384
        %v1803 = vmul.f32 %v1793, %v385
        %v1804 = vmul.f32 %v1767, %v386
        %v1805 = vmul.f32 %v1794, %v387
        %v1806 = vmul.f32 %v1768, %v388
        %v1807 = vmul.f32 %v1793, %v389
        %v1808 = vmul.f32 %v1767, %v390
        %v1809 = vmul.f32 %v1794, %v391
        %v1810 = vmul.f32 %v1768, %v392
        %v1811 = vmul.f32 %v1793, %v393
        %v1812 = vmul.f32 %v1767, %v394
        %v1813 = vmul.f32 %v1794, %v395
        %v1814 = vmul.f32 %v1768, %v396
        %1815 = vmatprep.subr.mxu0 %v1796
        %1816 = vmatpush1.msra.mxu0 %v1795
        %1817 = vmatprep.subr.mxu0 %v1798
        %1818 = vmatpush1.msra.mxu0 %v1797
        %1819 = vmatprep.subr.mxu0 %v1800
        %1820 = vmatpush1.msra.mxu0 %v1799
        %1821 = vmatprep.subr.mxu0 %v1802
        %1822 = vmatpush1.msra.mxu0 %v1801
        %1823 = vmatprep.subr.mxu0 %v1804
        %1824 = vmatpush1.msra.mxu0 %v1803
        %1825 = vmatprep.subr.mxu0 %v1806
        %1826 = vmatpush1.msra.mxu0 %v1805
        %1827 = vmatprep.subr.mxu0 %v1808
        %1828 = vmatpush1.msra.mxu0 %v1807
        %1829 = vmatprep.subr.mxu0 %v1810
        %1830 = vmatpush1.msra.mxu0 %v1809
        %1831 = vmatprep.subr.mxu0 %v1812
        %1832 = vmatpush1.msra.mxu0 %v1811
        %1833 = vmatprep.subr.mxu0 %v1814
        %1834 = vmatpush1.msra.mxu0 %v1813
        %1835 = vmatprep.subr.mxu0 0.0
        %1836 = vmatpush1.msra.mxu0 0.0
        %1837 = vmatprep.subr.mxu0 0.0
        %1838 = vmatpush1.msra.mxu0 0.0
        %1839 = vmatprep.subr.mxu0 0.0
        %1840 = vmatpush1.msra.mxu0 0.0
        %1841 = vmatprep.subr.mxu0 0.0
        %1842 = vmatpush1.msra.mxu0 0.0
        %1843 = vmatprep.subr.mxu0 0.0
        %1844 = vmatpush1.msra.mxu0 0.0
        %1845 = vmatprep.subr.mxu0 0.0
        %1846 = vmatpush1.msra.mxu0 0.0
        %1847 = vmatprep.subr.mxu0 0.0
        %1848 = vmatpush1.msra.mxu0 0.0
        %1849 = vmatprep.subr.mxu0 0.0
        %1850 = vmatpush1.msra.mxu0 0.0
        %1851 = vmatprep.subr.mxu0 0.0
        %1852 = vmatpush1.msra.mxu0 0.0
        %1853 = vmatprep.subr.mxu0 0.0
        %1854 = vmatpush1.msra.mxu0 0.0
        %1855 = vmatprep.subr.mxu0 0.0
        %1856 = vmatpush1.msra.mxu0 0.0
        %1857 = vmatprep.subr.mxu0 0.0
        %1858 = vmatpush1.msra.mxu0 0.0
        %1859 = vmatprep.subr.mxu0 0.0
        %1860 = vmatpush1.msra.mxu0 0.0
        %1861 = vmatprep.subr.mxu0 0.0
        %1862 = vmatpush1.msra.mxu0 0.0
        %1863 = vmatprep.subr.mxu0 0.0
        %1864 = vmatpush1.msra.mxu0 0.0
        %1865 = vmatprep.subr.mxu0 0.0
        %1866 = vmatpush1.msra.mxu0 0.0
        %1867 = vmatprep.subr.mxu0 0.0
        %1868 = vmatpush1.msra.mxu0 0.0
        %1869 = vmatprep.subr.mxu0 0.0
        %1870 = vmatpush1.msra.mxu0 0.0
        %1871 = vmatprep.subr.mxu0 0.0
        %1872 = vmatpush1.msra.mxu0 0.0
        %1873 = vmatprep.subr.mxu0 0.0
        %1874 = vmatpush1.msra.mxu0 0.0
        %1875 = vmatprep.subr.mxu0 0.0
        %1876 = vmatpush1.msra.mxu0 0.0
        %1877 = vmatprep.subr.mxu0 0.0
        %1878 = vmatpush1.msra.mxu0 0.0
        %1879 = vmatprep.mubr.f32.mxu0 0.0
        %1880 = vmatmul.mubr.f32.gmra.mrb[0].mxu0 %v450
        %v1881 = vpop.f32.mrb[0].mxu0
        %v1882 = vadd.f32 0.0, %v1881
        %v1883 = vpop.f32.mrb[0].mxu0
        %v1884 = vadd.f32 0.0, %v1883
        %1885 = vmatprep.mubr.f32.mxu0 0.0
        %1886 = vmatmul.mubr.f32.gmra.mrb[0].mxu0 %v453
        %v1887 = vpop.f32.mrb[0].mxu0
        %v1888 = vadd.f32 0.0, %v1887
        %v1889 = vpop.f32.mrb[0].mxu0
        %v1890 = vadd.f32 0.0, %v1889
        %1891 = vdwg.mxu0
        %v1893 = vsel %vm419, %v1884, 0
        %v1896 = vsel %vm419, %v1890, 0
        %1898 = vmatprep.subr.mxu0 0.0
        %1899 = vmatpush1.msra.mxu0 %v357
        %1900 = vmatprep.subr.mxu0 0.0
        %1901 = vmatpush1.msra.mxu0 %v358
        %1902 = vmatprep.subr.mxu0 0.0
        %1903 = vmatpush1.msra.mxu0 %v359
        %1904 = vmatprep.subr.mxu0 0.0
        %1905 = vmatpush1.msra.mxu0 %v360
        %1906 = vmatprep.subr.mxu0 0.0
        %1907 = vmatpush1.msra.mxu0 %v361
        %1908 = vmatprep.subr.mxu0 0.0
        %1909 = vmatpush1.msra.mxu0 %v362
        %1910 = vmatprep.subr.mxu0 0.0
        %1911 = vmatpush1.msra.mxu0 %v363
        %1912 = vmatprep.subr.mxu0 0.0
        %1913 = vmatpush1.msra.mxu0 %v364
        %1914 = vmatprep.subr.mxu0 0.0
        %1915 = vmatpush1.msra.mxu0 %v365
        %1916 = vmatprep.subr.mxu0 0.0
        %1917 = vmatpush1.msra.mxu0 %v366
        %1918 = vmatprep.subr.mxu0 0.0
        %1919 = vmatpush1.msra.mxu0 %v367
        %1920 = vmatprep.subr.mxu0 0.0
        %1921 = vmatpush1.msra.mxu0 %v368
        %1922 = vmatprep.subr.mxu0 0.0
        %1923 = vmatpush1.msra.mxu0 %v369
        %1924 = vmatprep.subr.mxu0 0.0
        %1925 = vmatpush1.msra.mxu0 %v370
        %1926 = vmatprep.subr.mxu0 0.0
        %1927 = vmatpush1.msra.mxu0 %v371
        %1928 = vmatprep.subr.mxu0 0.0
        %1929 = vmatpush1.msra.mxu0 %v372
        %1930 = vmatprep.subr.mxu0 0.0
        %1931 = vmatpush1.msra.mxu0 %v373
        %1932 = vmatprep.subr.mxu0 0.0
        %1933 = vmatpush1.msra.mxu0 %v374
        %1934 = vmatprep.subr.mxu0 0.0
        %1935 = vmatpush1.msra.mxu0 %v375
        %1936 = vmatprep.subr.mxu0 0.0
        %1937 = vmatpush1.msra.mxu0 %v376
        %1938 = vmatprep.subr.mxu0 0.0
        %1939 = vmatpush1.msra.mxu0 0.0
        %1940 = vmatprep.subr.mxu0 0.0
        %1941 = vmatpush1.msra.mxu0 0.0
        %1942 = vmatprep.subr.mxu0 0.0
        %1943 = vmatpush1.msra.mxu0 0.0
        %1944 = vmatprep.subr.mxu0 0.0
        %1945 = vmatpush1.msra.mxu0 0.0
        %1946 = vmatprep.subr.mxu0 0.0
        %1947 = vmatpush1.msra.mxu0 0.0
        %1948 = vmatprep.subr.mxu0 0.0
        %1949 = vmatpush1.msra.mxu0 0.0
        %1950 = vmatprep.subr.mxu0 0.0
        %1951 = vmatpush1.msra.mxu0 0.0
        %1952 = vmatprep.subr.mxu0 0.0
        %1953 = vmatpush1.msra.mxu0 0.0
        %1954 = vmatprep.subr.mxu0 0.0
        %1955 = vmatpush1.msra.mxu0 0.0
        %1956 = vmatprep.subr.mxu0 0.0
        %1957 = vmatpush1.msra.mxu0 0.0
        %1958 = vmatprep.subr.mxu0 0.0
        %1959 = vmatpush1.msra.mxu0 0.0
        %1960 = vmatprep.subr.mxu0 0.0
        %1961 = vmatpush1.msra.mxu0 0.0
        %1962 = vmatprep.mubr.f32.mxu0 %v1893
        %1963 = vmatmul.mubr.f32.gmra.mrb[0].mxu0 %v1882
        %v1964 = vpop.f32.mrb[0].mxu0
        %v1965 = vadd.f32 %v397, %v1964
        %v1966 = vpop.f32.mrb[0].mxu0
        %1967 = vmatprep.mubr.f32.mxu0 %v1896
        %1968 = vmatmul.mubr.f32.gmra.mrb[0].mxu0 %v1888
        %v1969 = vpop.f32.mrb[0].mxu0
        %v1970 = vadd.f32 %v398, %v1969
        %v1971 = vpop.f32.mrb[0].mxu0
        %1972 = vdwg.mxu0
        %v1973 = vxor.u32 %v1965, 2147483648
        %v1974 = vxor.u32 %v1970, 2147483648
        %v1975 = vmul.f32 %v1973, 1.442695
        %v1976 = vpow.pop %v1975
        %v1977 = vmul.f32 %v1974, 1.442695
        %v1978 = vpow.pop %v1977
        %v1979 = vadd.f32 %v1976, 1.0
        %v1980 = vadd.f32 %v1978, 1.0
        %v1981 = vrcp.pop %v1979
        %v1982 = vmul.f32 1.0, %v1981
        %v1983 = vrcp.pop %v1980
        %v1984 = vmul.f32 1.0, %v1983
        %v1985 = vmul.f32 %v1982, %v1772
        %v1986 = vmul.f32 %v1984, %v1774
        %1989 = vrot.lane.b32.xlu0 %v1985, 96
        %v1990 = vpop.permute.xlu0 %1989
        %1991 = vrot.lane.b32.xlu0 %v1986, 96
        %v1992 = vpop.permute.xlu0 %1991
        %v1993 = vsel %vm419, %v1990, 0
        %v1995 = vsel %vm419, %v1992, 0
        %1997 = vmatprep.subr.mxu0 0.0
        %1998 = vmatpush1.msra.mxu0 %v627
        %1999 = vmatprep.subr.mxu0 0.0
        %2000 = vmatpush1.msra.mxu0 %v628
        %2001 = vmatprep.subr.mxu0 0.0
        %2002 = vmatpush1.msra.mxu0 %v629
        %2003 = vmatprep.subr.mxu0 0.0
        %2004 = vmatpush1.msra.mxu0 %v630
        %2005 = vmatprep.subr.mxu0 0.0
        %2006 = vmatpush1.msra.mxu0 0.0
        %2007 = vmatprep.subr.mxu0 0.0
        %2008 = vmatpush1.msra.mxu0 0.0
        %2009 = vmatprep.subr.mxu0 0.0
        %2010 = vmatpush1.msra.mxu0 0.0
        %2011 = vmatprep.subr.mxu0 0.0
        %2012 = vmatpush1.msra.mxu0 0.0
        %2013 = vmatprep.subr.mxu0 0.0
        %2014 = vmatpush1.msra.mxu0 0.0
        %2015 = vmatprep.subr.mxu0 0.0
        %2016 = vmatpush1.msra.mxu0 0.0
        %2017 = vmatprep.subr.mxu0 0.0
        %2018 = vmatpush1.msra.mxu0 0.0
        %2019 = vmatprep.subr.mxu0 0.0
        %2020 = vmatpush1.msra.mxu0 0.0
        %2021 = vmatprep.subr.mxu0 0.0
        %2022 = vmatpush1.msra.mxu0 0.0
        %2023 = vmatprep.subr.mxu0 0.0
        %2024 = vmatpush1.msra.mxu0 0.0
        %2025 = vmatprep.subr.mxu0 0.0
        %2026 = vmatpush1.msra.mxu0 0.0
        %2027 = vmatprep.subr.mxu0 0.0
        %2028 = vmatpush1.msra.mxu0 0.0
        %2029 = vmatprep.subr.mxu0 0.0
        %2030 = vmatpush1.msra.mxu0 0.0
        %2031 = vmatprep.subr.mxu0 0.0
        %2032 = vmatpush1.msra.mxu0 0.0
        %2033 = vmatprep.subr.mxu0 0.0
        %2034 = vmatpush1.msra.mxu0 0.0
        %2035 = vmatprep.subr.mxu0 0.0
        %2036 = vmatpush1.msra.mxu0 0.0
        %2037 = vmatprep.subr.mxu0 0.0
        %2038 = vmatpush1.msra.mxu0 0.0
        %2039 = vmatprep.subr.mxu0 0.0
        %2040 = vmatpush1.msra.mxu0 0.0
        %2041 = vmatprep.subr.mxu0 0.0
        %2042 = vmatpush1.msra.mxu0 0.0
        %2043 = vmatprep.subr.mxu0 0.0
        %2044 = vmatpush1.msra.mxu0 0.0
        %2045 = vmatprep.subr.mxu0 0.0
        %2046 = vmatpush1.msra.mxu0 0.0
        %2047 = vmatprep.subr.mxu0 0.0
        %2048 = vmatpush1.msra.mxu0 0.0
        %2049 = vmatprep.subr.mxu0 0.0
        %2050 = vmatpush1.msra.mxu0 0.0
        %2051 = vmatprep.subr.mxu0 0.0
        %2052 = vmatpush1.msra.mxu0 0.0
        %2053 = vmatprep.subr.mxu0 0.0
        %2054 = vmatpush1.msra.mxu0 0.0
        %2055 = vmatprep.subr.mxu0 0.0
        %2056 = vmatpush1.msra.mxu0 0.0
        %2057 = vmatprep.subr.mxu0 0.0
        %2058 = vmatpush1.msra.mxu0 0.0
        %2059 = vmatprep.subr.mxu0 0.0
        %2060 = vmatpush1.msra.mxu0 0.0
        %2061 = vmatprep.mubr.f32.mxu0 0.0
        %2062 = vmatmul.mubr.f32.gmra.mrb[0].mxu0 %v1993
        %v2063 = vpop.f32.mrb[0].mxu0
        %v2064 = vadd.f32 0.0, %v2063
        %v2065 = vpop.f32.mrb[0].mxu0
        %2066 = vmatprep.mubr.f32.mxu0 0.0
        %2067 = vmatmul.mubr.f32.gmra.mrb[0].mxu0 %v1995
        %v2068 = vpop.f32.mrb[0].mxu0
        %v2069 = vadd.f32 0.0, %v2068
        %v2070 = vpop.f32.mrb[0].mxu0
        %2071 = vdwg.mxu0
        %2074 = vrot.lane.b32.xlu0 %v2064, 64
        %v2075 = vpop.permute.xlu0 %2074
        %2076 = vrot.lane.b32.xlu0 %v2069, 64
        %v2077 = vpop.permute.xlu0 %2076
        %v2080 = vadd.f32 %v1965, %v2075
        %v2081 = vadd.f32 %v1970, %v2077
        %v2082 = vtanh.pop %v2080
        %v2083 = vtanh.pop %v2081
        %v2084 = vsub.f32 1.0, %v1982
        %v2085 = vsub.f32 1.0, %v1984
        %v2086 = vmul.f32 %v2084, %v1767
        %v2087 = vmul.f32 %v2085, %v1768
        %2090 = vrot.lane.b32.xlu0 %v2082, 96
        %v2091 = vpop.permute.xlu0 %2090
        %2092 = vrot.lane.b32.xlu0 %v2083, 96
        %v2093 = vpop.permute.xlu0 %2092
        %v2096 = vmul.f32 %v1982, %v2091
        %v2097 = vmul.f32 %v1984, %v2093
        %2100 = vrot.lane.b32.xlu0 %v2096, 96
        %v2101 = vpop.permute.xlu0 %2100
        %2102 = vrot.lane.b32.xlu0 %v2097, 96
        %v2103 = vpop.permute.xlu0 %2102
        %v2106 = vadd.f32 %v2086, %v2101
        %v2107 = vadd.f32 %v2087, %v2103
        %2110 = vrot.lane.b32.xlu0 %v2106, 32
        %v2111 = vpop.permute.xlu0 %2110
        %2112 = vrot.lane.b32.xlu0 %v2107, 32
        %v2113 = vpop.permute.xlu0 %2112
        %2116 = vrot.lane.b32.xlu0 %v2106, 64
        %v2117 = vpop.permute.xlu0 %2116
        %2118 = vrot.lane.b32.xlu0 %v2107, 64
        %v2119 = vpop.permute.xlu0 %2118
        %2122 = vrot.lane.b32.xlu0 %v2106, 96
        %v2123 = vpop.permute.xlu0 %2122
        %2124 = vrot.lane.b32.xlu0 %v2107, 96
        %v2125 = vpop.permute.xlu0 %2124
        %v2128 = vsel %vm419, %v2106, %v2111
        %v2129 = vsel %vm419, %v2107, %v2113
        %v2130 = vsel %vm422, %v2128, %v2117
        %v2131 = vsel %vm422, %v2129, %v2119
        %v2132 = vsel %vm425, %v2130, %v2123
        %v2133 = vsel %vm425, %v2131, %v2125
        %v2134 = vmul.f32 %v2132, %v377
        %v2135 = vmul.f32 %v2106, %v378
        %v2136 = vmul.f32 %v2133, %v379
        %v2137 = vmul.f32 %v2107, %v380
        %v2138 = vmul.f32 %v2132, %v381
        %v2139 = vmul.f32 %v2106, %v382
        %v2140 = vmul.f32 %v2133, %v383
        %v2141 = vmul.f32 %v2107, %v384
        %v2142 = vmul.f32 %v2132, %v385
        %v2143 = vmul.f32 %v2106, %v386
        %v2144 = vmul.f32 %v2133, %v387
        %v2145 = vmul.f32 %v2107, %v388
        %v2146 = vmul.f32 %v2132, %v389
        %v2147 = vmul.f32 %v2106, %v390
        %v2148 = vmul.f32 %v2133, %v391
        %v2149 = vmul.f32 %v2107, %v392
        %v2150 = vmul.f32 %v2132, %v393
        %v2151 = vmul.f32 %v2106, %v394
        %v2152 = vmul.f32 %v2133, %v395
        %v2153 = vmul.f32 %v2107, %v396
        %2154 = vmatprep.subr.mxu0 %v2135
        %2155 = vmatpush1.msra.mxu0 %v2134
        %2156 = vmatprep.subr.mxu0 %v2137
        %2157 = vmatpush1.msra.mxu0 %v2136
        %2158 = vmatprep.subr.mxu0 %v2139
        %2159 = vmatpush1.msra.mxu0 %v2138
        %2160 = vmatprep.subr.mxu0 %v2141
        %2161 = vmatpush1.msra.mxu0 %v2140
        %2162 = vmatprep.subr.mxu0 %v2143
        %2163 = vmatpush1.msra.mxu0 %v2142
        %2164 = vmatprep.subr.mxu0 %v2145
        %2165 = vmatpush1.msra.mxu0 %v2144
        %2166 = vmatprep.subr.mxu0 %v2147
        %2167 = vmatpush1.msra.mxu0 %v2146
        %2168 = vmatprep.subr.mxu0 %v2149
        %2169 = vmatpush1.msra.mxu0 %v2148
        %2170 = vmatprep.subr.mxu0 %v2151
        %2171 = vmatpush1.msra.mxu0 %v2150
        %2172 = vmatprep.subr.mxu0 %v2153
        %2173 = vmatpush1.msra.mxu0 %v2152
        %2174 = vmatprep.subr.mxu0 0.0
        %2175 = vmatpush1.msra.mxu0 0.0
        %2176 = vmatprep.subr.mxu0 0.0
        %2177 = vmatpush1.msra.mxu0 0.0
        %2178 = vmatprep.subr.mxu0 0.0
        %2179 = vmatpush1.msra.mxu0 0.0
        %2180 = vmatprep.subr.mxu0 0.0
        %2181 = vmatpush1.msra.mxu0 0.0
        %2182 = vmatprep.subr.mxu0 0.0
        %2183 = vmatpush1.msra.mxu0 0.0
        %2184 = vmatprep.subr.mxu0 0.0
        %2185 = vmatpush1.msra.mxu0 0.0
        %2186 = vmatprep.subr.mxu0 0.0
        %2187 = vmatpush1.msra.mxu0 0.0
        %2188 = vmatprep.subr.mxu0 0.0
        %2189 = vmatpush1.msra.mxu0 0.0
        %2190 = vmatprep.subr.mxu0 0.0
        %2191 = vmatpush1.msra.mxu0 0.0
        %2192 = vmatprep.subr.mxu0 0.0
        %2193 = vmatpush1.msra.mxu0 0.0
        %2194 = vmatprep.subr.mxu0 0.0
        %2195 = vmatpush1.msra.mxu0 0.0
        %2196 = vmatprep.subr.mxu0 0.0
        %2197 = vmatpush1.msra.mxu0 0.0
        %2198 = vmatprep.subr.mxu0 0.0
        %2199 = vmatpush1.msra.mxu0 0.0
        %2200 = vmatprep.subr.mxu0 0.0
        %2201 = vmatpush1.msra.mxu0 0.0
        %2202 = vmatprep.subr.mxu0 0.0
        %2203 = vmatpush1.msra.mxu0 0.0
        %2204 = vmatprep.subr.mxu0 0.0
        %2205 = vmatpush1.msra.mxu0 0.0
        %2206 = vmatprep.subr.mxu0 0.0
        %2207 = vmatpush1.msra.mxu0 0.0
        %2208 = vmatprep.subr.mxu0 0.0
        %2209 = vmatpush1.msra.mxu0 0.0
        %2210 = vmatprep.subr.mxu0 0.0
        %2211 = vmatpush1.msra.mxu0 0.0
        %2212 = vmatprep.subr.mxu0 0.0
        %2213 = vmatpush1.msra.mxu0 0.0
        %2214 = vmatprep.subr.mxu0 0.0
        %2215 = vmatpush1.msra.mxu0 0.0
        %2216 = vmatprep.subr.mxu0 0.0
        %2217 = vmatpush1.msra.mxu0 0.0
        %2218 = vmatprep.mubr.f32.mxu0 0.0
        %2219 = vmatmul.mubr.f32.gmra.mrb[0].mxu0 %v450
        %v2220 = vpop.f32.mrb[0].mxu0
        %v2221 = vadd.f32 0.0, %v2220
        %v2222 = vpop.f32.mrb[0].mxu0
        %v2223 = vadd.f32 0.0, %v2222
        %2224 = vmatprep.mubr.f32.mxu0 0.0
        %2225 = vmatmul.mubr.f32.gmra.mrb[0].mxu0 %v453
        %v2226 = vpop.f32.mrb[0].mxu0
        %v2227 = vadd.f32 0.0, %v2226
        %v2228 = vpop.f32.mrb[0].mxu0
        %v2229 = vadd.f32 0.0, %v2228
        %2230 = vdwg.mxu0
        %v2232 = vsel %vm419, %v2223, 0
        %v2235 = vsel %vm419, %v2229, 0
        %2237 = vmatprep.subr.mxu0 0.0
        %2238 = vmatpush1.msra.mxu0 %v357
        %2239 = vmatprep.subr.mxu0 0.0
        %2240 = vmatpush1.msra.mxu0 %v358
        %2241 = vmatprep.subr.mxu0 0.0
        %2242 = vmatpush1.msra.mxu0 %v359
        %2243 = vmatprep.subr.mxu0 0.0
        %2244 = vmatpush1.msra.mxu0 %v360
        %2245 = vmatprep.subr.mxu0 0.0
        %2246 = vmatpush1.msra.mxu0 %v361
        %2247 = vmatprep.subr.mxu0 0.0
        %2248 = vmatpush1.msra.mxu0 %v362
        %2249 = vmatprep.subr.mxu0 0.0
        %2250 = vmatpush1.msra.mxu0 %v363
        %2251 = vmatprep.subr.mxu0 0.0
        %2252 = vmatpush1.msra.mxu0 %v364
        %2253 = vmatprep.subr.mxu0 0.0
        %2254 = vmatpush1.msra.mxu0 %v365
        %2255 = vmatprep.subr.mxu0 0.0
        %2256 = vmatpush1.msra.mxu0 %v366
        %2257 = vmatprep.subr.mxu0 0.0
        %2258 = vmatpush1.msra.mxu0 %v367
        %2259 = vmatprep.subr.mxu0 0.0
        %2260 = vmatpush1.msra.mxu0 %v368
        %2261 = vmatprep.subr.mxu0 0.0
        %2262 = vmatpush1.msra.mxu0 %v369
        %2263 = vmatprep.subr.mxu0 0.0
        %2264 = vmatpush1.msra.mxu0 %v370
        %2265 = vmatprep.subr.mxu0 0.0
        %2266 = vmatpush1.msra.mxu0 %v371
        %2267 = vmatprep.subr.mxu0 0.0
        %2268 = vmatpush1.msra.mxu0 %v372
        %2269 = vmatprep.subr.mxu0 0.0
        %2270 = vmatpush1.msra.mxu0 %v373
        %2271 = vmatprep.subr.mxu0 0.0
        %2272 = vmatpush1.msra.mxu0 %v374
        %2273 = vmatprep.subr.mxu0 0.0
        %2274 = vmatpush1.msra.mxu0 %v375
        %2275 = vmatprep.subr.mxu0 0.0
        %2276 = vmatpush1.msra.mxu0 %v376
        %2277 = vmatprep.subr.mxu0 0.0
        %2278 = vmatpush1.msra.mxu0 0.0
        %2279 = vmatprep.subr.mxu0 0.0
        %2280 = vmatpush1.msra.mxu0 0.0
        %2281 = vmatprep.subr.mxu0 0.0
        %2282 = vmatpush1.msra.mxu0 0.0
        %2283 = vmatprep.subr.mxu0 0.0
        %2284 = vmatpush1.msra.mxu0 0.0
        %2285 = vmatprep.subr.mxu0 0.0
        %2286 = vmatpush1.msra.mxu0 0.0
        %2287 = vmatprep.subr.mxu0 0.0
        %2288 = vmatpush1.msra.mxu0 0.0
        %2289 = vmatprep.subr.mxu0 0.0
        %2290 = vmatpush1.msra.mxu0 0.0
        %2291 = vmatprep.subr.mxu0 0.0
        %2292 = vmatpush1.msra.mxu0 0.0
        %2293 = vmatprep.subr.mxu0 0.0
        %2294 = vmatpush1.msra.mxu0 0.0
        %2295 = vmatprep.subr.mxu0 0.0
        %2296 = vmatpush1.msra.mxu0 0.0
        %2297 = vmatprep.subr.mxu0 0.0
        %2298 = vmatpush1.msra.mxu0 0.0
        %2299 = vmatprep.subr.mxu0 0.0
        %2300 = vmatpush1.msra.mxu0 0.0
        %2301 = vmatprep.mubr.f32.mxu0 %v2232
        %2302 = vmatmul.mubr.f32.gmra.mrb[0].mxu0 %v2221
        %v2303 = vpop.f32.mrb[0].mxu0
        %v2304 = vadd.f32 %v397, %v2303
        %v2305 = vpop.f32.mrb[0].mxu0
        %2306 = vmatprep.mubr.f32.mxu0 %v2235
        %2307 = vmatmul.mubr.f32.gmra.mrb[0].mxu0 %v2227
        %v2308 = vpop.f32.mrb[0].mxu0
        %v2309 = vadd.f32 %v398, %v2308
        %v2310 = vpop.f32.mrb[0].mxu0
        %2311 = vdwg.mxu0
        %v2312 = vxor.u32 %v2304, 2147483648
        %v2313 = vxor.u32 %v2309, 2147483648
        %v2314 = vmul.f32 %v2312, 1.442695
        %v2315 = vpow.pop %v2314
        %v2316 = vmul.f32 %v2313, 1.442695
        %v2317 = vpow.pop %v2316
        %v2318 = vadd.f32 %v2315, 1.0
        %v2319 = vadd.f32 %v2317, 1.0
        %v2320 = vrcp.pop %v2318
        %v2321 = vmul.f32 1.0, %v2320
        %v2322 = vrcp.pop %v2319
        %v2323 = vmul.f32 1.0, %v2322
        %v2324 = vmul.f32 %v2321, %v2111
        %v2325 = vmul.f32 %v2323, %v2113
        %2328 = vrot.lane.b32.xlu0 %v2324, 96
        %v2329 = vpop.permute.xlu0 %2328
        %2330 = vrot.lane.b32.xlu0 %v2325, 96
        %v2331 = vpop.permute.xlu0 %2330
        %v2332 = vsel %vm419, %v2329, 0
        %v2334 = vsel %vm419, %v2331, 0
        %2336 = vmatprep.subr.mxu0 0.0
        %2337 = vmatpush1.msra.mxu0 %v627
        %2338 = vmatprep.subr.mxu0 0.0
        %2339 = vmatpush1.msra.mxu0 %v628
        %2340 = vmatprep.subr.mxu0 0.0
        %2341 = vmatpush1.msra.mxu0 %v629
        %2342 = vmatprep.subr.mxu0 0.0
        %2343 = vmatpush1.msra.mxu0 %v630
        %2344 = vmatprep.subr.mxu0 0.0
        %2345 = vmatpush1.msra.mxu0 0.0
        %2346 = vmatprep.subr.mxu0 0.0
        %2347 = vmatpush1.msra.mxu0 0.0
        %2348 = vmatprep.subr.mxu0 0.0
        %2349 = vmatpush1.msra.mxu0 0.0
        %2350 = vmatprep.subr.mxu0 0.0
        %2351 = vmatpush1.msra.mxu0 0.0
        %2352 = vmatprep.subr.mxu0 0.0
        %2353 = vmatpush1.msra.mxu0 0.0
        %2354 = vmatprep.subr.mxu0 0.0
        %2355 = vmatpush1.msra.mxu0 0.0
        %2356 = vmatprep.subr.mxu0 0.0
        %2357 = vmatpush1.msra.mxu0 0.0
        %2358 = vmatprep.subr.mxu0 0.0
        %2359 = vmatpush1.msra.mxu0 0.0
        %2360 = vmatprep.subr.mxu0 0.0
        %2361 = vmatpush1.msra.mxu0 0.0
        %2362 = vmatprep.subr.mxu0 0.0
        %2363 = vmatpush1.msra.mxu0 0.0
        %2364 = vmatprep.subr.mxu0 0.0
        %2365 = vmatpush1.msra.mxu0 0.0
        %2366 = vmatprep.subr.mxu0 0.0
        %2367 = vmatpush1.msra.mxu0 0.0
        %2368 = vmatprep.subr.mxu0 0.0
        %2369 = vmatpush1.msra.mxu0 0.0
        %2370 = vmatprep.subr.mxu0 0.0
        %2371 = vmatpush1.msra.mxu0 0.0
        %2372 = vmatprep.subr.mxu0 0.0
        %2373 = vmatpush1.msra.mxu0 0.0
        %2374 = vmatprep.subr.mxu0 0.0
        %2375 = vmatpush1.msra.mxu0 0.0
        %2376 = vmatprep.subr.mxu0 0.0
        %2377 = vmatpush1.msra.mxu0 0.0
        %2378 = vmatprep.subr.mxu0 0.0
        %2379 = vmatpush1.msra.mxu0 0.0
        %2380 = vmatprep.subr.mxu0 0.0
        %2381 = vmatpush1.msra.mxu0 0.0
        %2382 = vmatprep.subr.mxu0 0.0
        %2383 = vmatpush1.msra.mxu0 0.0
        %2384 = vmatprep.subr.mxu0 0.0
        %2385 = vmatpush1.msra.mxu0 0.0
        %2386 = vmatprep.subr.mxu0 0.0
        %2387 = vmatpush1.msra.mxu0 0.0
        %2388 = vmatprep.subr.mxu0 0.0
        %2389 = vmatpush1.msra.mxu0 0.0
        %2390 = vmatprep.subr.mxu0 0.0
        %2391 = vmatpush1.msra.mxu0 0.0
        %2392 = vmatprep.subr.mxu0 0.0
        %2393 = vmatpush1.msra.mxu0 0.0
        %2394 = vmatprep.subr.mxu0 0.0
        %2395 = vmatpush1.msra.mxu0 0.0
        %2396 = vmatprep.subr.mxu0 0.0
        %2397 = vmatpush1.msra.mxu0 0.0
        %2398 = vmatprep.subr.mxu0 0.0
        %2399 = vmatpush1.msra.mxu0 0.0
        %2400 = vmatprep.mubr.f32.mxu0 0.0
        %2401 = vmatmul.mubr.f32.gmra.mrb[0].mxu0 %v2332
        %v2402 = vpop.f32.mrb[0].mxu0
        %v2403 = vadd.f32 0.0, %v2402
        %v2404 = vpop.f32.mrb[0].mxu0
        %2405 = vmatprep.mubr.f32.mxu0 0.0
        %2406 = vmatmul.mubr.f32.gmra.mrb[0].mxu0 %v2334
        %v2407 = vpop.f32.mrb[0].mxu0
        %v2408 = vadd.f32 0.0, %v2407
        %v2409 = vpop.f32.mrb[0].mxu0
        %2410 = vdwg.mxu0
        %2413 = vrot.lane.b32.xlu0 %v2403, 64
        %v2414 = vpop.permute.xlu0 %2413
        %2415 = vrot.lane.b32.xlu0 %v2408, 64
        %v2416 = vpop.permute.xlu0 %2415
        %v2419 = vadd.f32 %v2304, %v2414
        %v2420 = vadd.f32 %v2309, %v2416
        %v2421 = vtanh.pop %v2419
        %v2422 = vtanh.pop %v2420
        %v2423 = vsub.f32 1.0, %v2321
        %v2424 = vsub.f32 1.0, %v2323
        %v2425 = vmul.f32 %v2423, %v2106
        %v2426 = vmul.f32 %v2424, %v2107
        %2429 = vrot.lane.b32.xlu0 %v2421, 96
        %v2430 = vpop.permute.xlu0 %2429
        %2431 = vrot.lane.b32.xlu0 %v2422, 96
        %v2432 = vpop.permute.xlu0 %2431
        %v2435 = vmul.f32 %v2321, %v2430
        %v2436 = vmul.f32 %v2323, %v2432
        %2439 = vrot.lane.b32.xlu0 %v2435, 96
        %v2440 = vpop.permute.xlu0 %2439
        %2441 = vrot.lane.b32.xlu0 %v2436, 96
        %v2442 = vpop.permute.xlu0 %2441
        %v2445 = vadd.f32 %v2425, %v2440
        %v2446 = vadd.f32 %v2426, %v2442
        %2449 = vrot.lane.b32.xlu0 %v2445, 32
        %v2450 = vpop.permute.xlu0 %2449
        %2451 = vrot.lane.b32.xlu0 %v2446, 32
        %v2452 = vpop.permute.xlu0 %2451
        %2455 = vrot.lane.b32.xlu0 %v2445, 64
        %v2456 = vpop.permute.xlu0 %2455
        %2457 = vrot.lane.b32.xlu0 %v2446, 64
        %v2458 = vpop.permute.xlu0 %2457
        %2461 = vrot.lane.b32.xlu0 %v2445, 96
        %v2462 = vpop.permute.xlu0 %2461
        %2463 = vrot.lane.b32.xlu0 %v2446, 96
        %v2464 = vpop.permute.xlu0 %2463
        %v2467 = vsel %vm419, %v2445, %v2450
        %v2468 = vsel %vm419, %v2446, %v2452
        %v2469 = vsel %vm422, %v2467, %v2456
        %v2470 = vsel %vm422, %v2468, %v2458
        %v2471 = vsel %vm425, %v2469, %v2462
        %v2472 = vsel %vm425, %v2470, %v2464
        %v2473 = vmul.f32 %v2471, %v377
        %v2474 = vmul.f32 %v2445, %v378
        %v2475 = vmul.f32 %v2472, %v379
        %v2476 = vmul.f32 %v2446, %v380
        %v2477 = vmul.f32 %v2471, %v381
        %v2478 = vmul.f32 %v2445, %v382
        %v2479 = vmul.f32 %v2472, %v383
        %v2480 = vmul.f32 %v2446, %v384
        %v2481 = vmul.f32 %v2471, %v385
        %v2482 = vmul.f32 %v2445, %v386
        %v2483 = vmul.f32 %v2472, %v387
        %v2484 = vmul.f32 %v2446, %v388
        %v2485 = vmul.f32 %v2471, %v389
        %v2486 = vmul.f32 %v2445, %v390
        %v2487 = vmul.f32 %v2472, %v391
        %v2488 = vmul.f32 %v2446, %v392
        %v2489 = vmul.f32 %v2471, %v393
        %v2490 = vmul.f32 %v2445, %v394
        %v2491 = vmul.f32 %v2472, %v395
        %v2492 = vmul.f32 %v2446, %v396
        %2493 = vmatprep.subr.mxu0 %v2474
        %2494 = vmatpush1.msra.mxu0 %v2473
        %2495 = vmatprep.subr.mxu0 %v2476
        %2496 = vmatpush1.msra.mxu0 %v2475
        %2497 = vmatprep.subr.mxu0 %v2478
        %2498 = vmatpush1.msra.mxu0 %v2477
        %2499 = vmatprep.subr.mxu0 %v2480
        %2500 = vmatpush1.msra.mxu0 %v2479
        %2501 = vmatprep.subr.mxu0 %v2482
        %2502 = vmatpush1.msra.mxu0 %v2481
        %2503 = vmatprep.subr.mxu0 %v2484
        %2504 = vmatpush1.msra.mxu0 %v2483
        %2505 = vmatprep.subr.mxu0 %v2486
        %2506 = vmatpush1.msra.mxu0 %v2485
        %2507 = vmatprep.subr.mxu0 %v2488
        %2508 = vmatpush1.msra.mxu0 %v2487
        %2509 = vmatprep.subr.mxu0 %v2490
        %2510 = vmatpush1.msra.mxu0 %v2489
        %2511 = vmatprep.subr.mxu0 %v2492
        %2512 = vmatpush1.msra.mxu0 %v2491
        %2513 = vmatprep.subr.mxu0 0.0
        %2514 = vmatpush1.msra.mxu0 0.0
        %2515 = vmatprep.subr.mxu0 0.0
        %2516 = vmatpush1.msra.mxu0 0.0
        %2517 = vmatprep.subr.mxu0 0.0
        %2518 = vmatpush1.msra.mxu0 0.0
        %2519 = vmatprep.subr.mxu0 0.0
        %2520 = vmatpush1.msra.mxu0 0.0
        %2521 = vmatprep.subr.mxu0 0.0
        %2522 = vmatpush1.msra.mxu0 0.0
        %2523 = vmatprep.subr.mxu0 0.0
        %2524 = vmatpush1.msra.mxu0 0.0
        %2525 = vmatprep.subr.mxu0 0.0
        %2526 = vmatpush1.msra.mxu0 0.0
        %2527 = vmatprep.subr.mxu0 0.0
        %2528 = vmatpush1.msra.mxu0 0.0
        %2529 = vmatprep.subr.mxu0 0.0
        %2530 = vmatpush1.msra.mxu0 0.0
        %2531 = vmatprep.subr.mxu0 0.0
        %2532 = vmatpush1.msra.mxu0 0.0
        %2533 = vmatprep.subr.mxu0 0.0
        %2534 = vmatpush1.msra.mxu0 0.0
        %2535 = vmatprep.subr.mxu0 0.0
        %2536 = vmatpush1.msra.mxu0 0.0
        %2537 = vmatprep.subr.mxu0 0.0
        %2538 = vmatpush1.msra.mxu0 0.0
        %2539 = vmatprep.subr.mxu0 0.0
        %2540 = vmatpush1.msra.mxu0 0.0
        %2541 = vmatprep.subr.mxu0 0.0
        %2542 = vmatpush1.msra.mxu0 0.0
        %2543 = vmatprep.subr.mxu0 0.0
        %2544 = vmatpush1.msra.mxu0 0.0
        %2545 = vmatprep.subr.mxu0 0.0
        %2546 = vmatpush1.msra.mxu0 0.0
        %2547 = vmatprep.subr.mxu0 0.0
        %2548 = vmatpush1.msra.mxu0 0.0
        %2549 = vmatprep.subr.mxu0 0.0
        %2550 = vmatpush1.msra.mxu0 0.0
        %2551 = vmatprep.subr.mxu0 0.0
        %2552 = vmatpush1.msra.mxu0 0.0
        %2553 = vmatprep.subr.mxu0 0.0
        %2554 = vmatpush1.msra.mxu0 0.0
        %2555 = vmatprep.subr.mxu0 0.0
        %2556 = vmatpush1.msra.mxu0 0.0
        %2557 = vmatprep.mubr.f32.mxu0 0.0
        %2558 = vmatmul.mubr.f32.gmra.mrb[0].mxu0 %v450
        %v2559 = vpop.f32.mrb[0].mxu0
        %v2560 = vadd.f32 0.0, %v2559
        %v2561 = vpop.f32.mrb[0].mxu0
        %v2562 = vadd.f32 0.0, %v2561
        %2563 = vmatprep.mubr.f32.mxu0 0.0
        %2564 = vmatmul.mubr.f32.gmra.mrb[0].mxu0 %v453
        %v2565 = vpop.f32.mrb[0].mxu0
        %v2566 = vadd.f32 0.0, %v2565
        %v2567 = vpop.f32.mrb[0].mxu0
        %v2568 = vadd.f32 0.0, %v2567
        %2569 = vdwg.mxu0
        %v2571 = vsel %vm419, %v2562, 0
        %v2574 = vsel %vm419, %v2568, 0
        %2576 = vmatprep.subr.mxu0 0.0
        %2577 = vmatpush1.msra.mxu0 %v357
        %2578 = vmatprep.subr.mxu0 0.0
        %2579 = vmatpush1.msra.mxu0 %v358
        %2580 = vmatprep.subr.mxu0 0.0
        %2581 = vmatpush1.msra.mxu0 %v359
        %2582 = vmatprep.subr.mxu0 0.0
        %2583 = vmatpush1.msra.mxu0 %v360
        %2584 = vmatprep.subr.mxu0 0.0
        %2585 = vmatpush1.msra.mxu0 %v361
        %2586 = vmatprep.subr.mxu0 0.0
        %2587 = vmatpush1.msra.mxu0 %v362
        %2588 = vmatprep.subr.mxu0 0.0
        %2589 = vmatpush1.msra.mxu0 %v363
        %2590 = vmatprep.subr.mxu0 0.0
        %2591 = vmatpush1.msra.mxu0 %v364
        %2592 = vmatprep.subr.mxu0 0.0
        %2593 = vmatpush1.msra.mxu0 %v365
        %2594 = vmatprep.subr.mxu0 0.0
        %2595 = vmatpush1.msra.mxu0 %v366
        %2596 = vmatprep.subr.mxu0 0.0
        %2597 = vmatpush1.msra.mxu0 %v367
        %2598 = vmatprep.subr.mxu0 0.0
        %2599 = vmatpush1.msra.mxu0 %v368
        %2600 = vmatprep.subr.mxu0 0.0
        %2601 = vmatpush1.msra.mxu0 %v369
        %2602 = vmatprep.subr.mxu0 0.0
        %2603 = vmatpush1.msra.mxu0 %v370
        %2604 = vmatprep.subr.mxu0 0.0
        %2605 = vmatpush1.msra.mxu0 %v371
        %2606 = vmatprep.subr.mxu0 0.0
        %2607 = vmatpush1.msra.mxu0 %v372
        %2608 = vmatprep.subr.mxu0 0.0
        %2609 = vmatpush1.msra.mxu0 %v373
        %2610 = vmatprep.subr.mxu0 0.0
        %2611 = vmatpush1.msra.mxu0 %v374
        %2612 = vmatprep.subr.mxu0 0.0
        %2613 = vmatpush1.msra.mxu0 %v375
        %2614 = vmatprep.subr.mxu0 0.0
        %2615 = vmatpush1.msra.mxu0 %v376
        %2616 = vmatprep.subr.mxu0 0.0
        %2617 = vmatpush1.msra.mxu0 0.0
        %2618 = vmatprep.subr.mxu0 0.0
        %2619 = vmatpush1.msra.mxu0 0.0
        %2620 = vmatprep.subr.mxu0 0.0
        %2621 = vmatpush1.msra.mxu0 0.0
        %2622 = vmatprep.subr.mxu0 0.0
        %2623 = vmatpush1.msra.mxu0 0.0
        %2624 = vmatprep.subr.mxu0 0.0
        %2625 = vmatpush1.msra.mxu0 0.0
        %2626 = vmatprep.subr.mxu0 0.0
        %2627 = vmatpush1.msra.mxu0 0.0
        %2628 = vmatprep.subr.mxu0 0.0
        %2629 = vmatpush1.msra.mxu0 0.0
        %2630 = vmatprep.subr.mxu0 0.0
        %2631 = vmatpush1.msra.mxu0 0.0
        %2632 = vmatprep.subr.mxu0 0.0
        %2633 = vmatpush1.msra.mxu0 0.0
        %2634 = vmatprep.subr.mxu0 0.0
        %2635 = vmatpush1.msra.mxu0 0.0
        %2636 = vmatprep.subr.mxu0 0.0
        %2637 = vmatpush1.msra.mxu0 0.0
        %2638 = vmatprep.subr.mxu0 0.0
        %2639 = vmatpush1.msra.mxu0 0.0
        %2640 = vmatprep.mubr.f32.mxu0 %v2571
        %2641 = vmatmul.mubr.f32.gmra.mrb[0].mxu0 %v2560
        %v2642 = vpop.f32.mrb[0].mxu0
        %v2643 = vadd.f32 %v397, %v2642
        %v2644 = vpop.f32.mrb[0].mxu0
        %2645 = vmatprep.mubr.f32.mxu0 %v2574
        %2646 = vmatmul.mubr.f32.gmra.mrb[0].mxu0 %v2566
        %v2647 = vpop.f32.mrb[0].mxu0
        %v2648 = vadd.f32 %v398, %v2647
        %v2649 = vpop.f32.mrb[0].mxu0
        %2650 = vdwg.mxu0
        %v2651 = vxor.u32 %v2643, 2147483648
        %v2652 = vxor.u32 %v2648, 2147483648
        %v2653 = vmul.f32 %v2651, 1.442695
        %v2654 = vpow.pop %v2653
        %v2655 = vmul.f32 %v2652, 1.442695
        %v2656 = vpow.pop %v2655
        %v2657 = vadd.f32 %v2654, 1.0
        %v2658 = vadd.f32 %v2656, 1.0
        %v2659 = vrcp.pop %v2657
        %v2660 = vmul.f32 1.0, %v2659
        %v2661 = vrcp.pop %v2658
        %v2662 = vmul.f32 1.0, %v2661
        %v2663 = vmul.f32 %v2660, %v2450
        %v2664 = vmul.f32 %v2662, %v2452
        %2667 = vrot.lane.b32.xlu0 %v2663, 96
        %v2668 = vpop.permute.xlu0 %2667
        %2669 = vrot.lane.b32.xlu0 %v2664, 96
        %v2670 = vpop.permute.xlu0 %2669
        %v2671 = vsel %vm419, %v2668, 0
        %v2673 = vsel %vm419, %v2670, 0
        %2675 = vmatprep.subr.mxu0 0.0
        %2676 = vmatpush1.msra.mxu0 %v627
        %2677 = vmatprep.subr.mxu0 0.0
        %2678 = vmatpush1.msra.mxu0 %v628
        %2679 = vmatprep.subr.mxu0 0.0
        %2680 = vmatpush1.msra.mxu0 %v629
        %2681 = vmatprep.subr.mxu0 0.0
        %2682 = vmatpush1.msra.mxu0 %v630
        %2683 = vmatprep.subr.mxu0 0.0
        %2684 = vmatpush1.msra.mxu0 0.0
        %2685 = vmatprep.subr.mxu0 0.0
        %2686 = vmatpush1.msra.mxu0 0.0
        %2687 = vmatprep.subr.mxu0 0.0
        %2688 = vmatpush1.msra.mxu0 0.0
        %2689 = vmatprep.subr.mxu0 0.0
        %2690 = vmatpush1.msra.mxu0 0.0
        %2691 = vmatprep.subr.mxu0 0.0
        %2692 = vmatpush1.msra.mxu0 0.0
        %2693 = vmatprep.subr.mxu0 0.0
        %2694 = vmatpush1.msra.mxu0 0.0
        %2695 = vmatprep.subr.mxu0 0.0
        %2696 = vmatpush1.msra.mxu0 0.0
        %2697 = vmatprep.subr.mxu0 0.0
        %2698 = vmatpush1.msra.mxu0 0.0
        %2699 = vmatprep.subr.mxu0 0.0
        %2700 = vmatpush1.msra.mxu0 0.0
        %2701 = vmatprep.subr.mxu0 0.0
        %2702 = vmatpush1.msra.mxu0 0.0
        %2703 = vmatprep.subr.mxu0 0.0
        %2704 = vmatpush1.msra.mxu0 0.0
        %2705 = vmatprep.subr.mxu0 0.0
        %2706 = vmatpush1.msra.mxu0 0.0
        %2707 = vmatprep.subr.mxu0 0.0
        %2708 = vmatpush1.msra.mxu0 0.0
        %2709 = vmatprep.subr.mxu0 0.0
        %2710 = vmatpush1.msra.mxu0 0.0
        %2711 = vmatprep.subr.mxu0 0.0
        %2712 = vmatpush1.msra.mxu0 0.0
        %2713 = vmatprep.subr.mxu0 0.0
        %2714 = vmatpush1.msra.mxu0 0.0
        %2715 = vmatprep.subr.mxu0 0.0
        %2716 = vmatpush1.msra.mxu0 0.0
        %2717 = vmatprep.subr.mxu0 0.0
        %2718 = vmatpush1.msra.mxu0 0.0
        %2719 = vmatprep.subr.mxu0 0.0
        %2720 = vmatpush1.msra.mxu0 0.0
        %2721 = vmatprep.subr.mxu0 0.0
        %2722 = vmatpush1.msra.mxu0 0.0
        %2723 = vmatprep.subr.mxu0 0.0
        %2724 = vmatpush1.msra.mxu0 0.0
        %2725 = vmatprep.subr.mxu0 0.0
        %2726 = vmatpush1.msra.mxu0 0.0
        %2727 = vmatprep.subr.mxu0 0.0
        %2728 = vmatpush1.msra.mxu0 0.0
        %2729 = vmatprep.subr.mxu0 0.0
        %2730 = vmatpush1.msra.mxu0 0.0
        %2731 = vmatprep.subr.mxu0 0.0
        %2732 = vmatpush1.msra.mxu0 0.0
        %2733 = vmatprep.subr.mxu0 0.0
        %2734 = vmatpush1.msra.mxu0 0.0
        %2735 = vmatprep.subr.mxu0 0.0
        %2736 = vmatpush1.msra.mxu0 0.0
        %2737 = vmatprep.subr.mxu0 0.0
        %2738 = vmatpush1.msra.mxu0 0.0
        %2739 = vmatprep.mubr.f32.mxu0 0.0
        %2740 = vmatmul.mubr.f32.gmra.mrb[0].mxu0 %v2671
        %v2741 = vpop.f32.mrb[0].mxu0
        %v2742 = vadd.f32 0.0, %v2741
        %v2743 = vpop.f32.mrb[0].mxu0
        %2744 = vmatprep.mubr.f32.mxu0 0.0
        %2745 = vmatmul.mubr.f32.gmra.mrb[0].mxu0 %v2673
        %v2746 = vpop.f32.mrb[0].mxu0
        %v2747 = vadd.f32 0.0, %v2746
        %v2748 = vpop.f32.mrb[0].mxu0
        %2749 = vdwg.mxu0
        %2752 = vrot.lane.b32.xlu0 %v2742, 64
        %v2753 = vpop.permute.xlu0 %2752
        %2754 = vrot.lane.b32.xlu0 %v2747, 64
        %v2755 = vpop.permute.xlu0 %2754
        %v2758 = vadd.f32 %v2643, %v2753
        %v2759 = vadd.f32 %v2648, %v2755
        %v2760 = vtanh.pop %v2758
        %v2761 = vtanh.pop %v2759
        %v2762 = vsub.f32 1.0, %v2660
        %v2763 = vsub.f32 1.0, %v2662
        %v2764 = vmul.f32 %v2762, %v2445
        %v2765 = vmul.f32 %v2763, %v2446
        %2768 = vrot.lane.b32.xlu0 %v2760, 96
        %v2769 = vpop.permute.xlu0 %2768
        %2770 = vrot.lane.b32.xlu0 %v2761, 96
        %v2771 = vpop.permute.xlu0 %2770
        %v2774 = vmul.f32 %v2660, %v2769
        %v2775 = vmul.f32 %v2662, %v2771
        %2778 = vrot.lane.b32.xlu0 %v2774, 96
        %v2779 = vpop.permute.xlu0 %2778
        %2780 = vrot.lane.b32.xlu0 %v2775, 96
        %v2781 = vpop.permute.xlu0 %2780
        %v2784 = vadd.f32 %v2764, %v2779
        %v2785 = vadd.f32 %v2765, %v2781
        %2788 = vrot.lane.b32.xlu0 %v2784, 32
        %v2789 = vpop.permute.xlu0 %2788
        %2790 = vrot.lane.b32.xlu0 %v2785, 32
        %v2791 = vpop.permute.xlu0 %2790
        %2794 = vrot.lane.b32.xlu0 %v2784, 64
        %v2795 = vpop.permute.xlu0 %2794
        %2796 = vrot.lane.b32.xlu0 %v2785, 64
        %v2797 = vpop.permute.xlu0 %2796
        %2800 = vrot.lane.b32.xlu0 %v2784, 96
        %v2801 = vpop.permute.xlu0 %2800
        %2802 = vrot.lane.b32.xlu0 %v2785, 96
        %v2803 = vpop.permute.xlu0 %2802
        %v2806 = vsel %vm419, %v2784, %v2789
        %v2807 = vsel %vm419, %v2785, %v2791
        %v2808 = vsel %vm422, %v2806, %v2795
        %v2809 = vsel %vm422, %v2807, %v2797
        %v2810 = vsel %vm425, %v2808, %v2801
        %v2811 = vsel %vm425, %v2809, %v2803
        %v2812 = vmul.f32 %v2810, %v377
        %v2813 = vmul.f32 %v2784, %v378
        %v2814 = vmul.f32 %v2811, %v379
        %v2815 = vmul.f32 %v2785, %v380
        %v2816 = vmul.f32 %v2810, %v381
        %v2817 = vmul.f32 %v2784, %v382
        %v2818 = vmul.f32 %v2811, %v383
        %v2819 = vmul.f32 %v2785, %v384
        %v2820 = vmul.f32 %v2810, %v385
        %v2821 = vmul.f32 %v2784, %v386
        %v2822 = vmul.f32 %v2811, %v387
        %v2823 = vmul.f32 %v2785, %v388
        %v2824 = vmul.f32 %v2810, %v389
        %v2825 = vmul.f32 %v2784, %v390
        %v2826 = vmul.f32 %v2811, %v391
        %v2827 = vmul.f32 %v2785, %v392
        %v2828 = vmul.f32 %v2810, %v393
        %v2829 = vmul.f32 %v2784, %v394
        %v2830 = vmul.f32 %v2811, %v395
        %v2831 = vmul.f32 %v2785, %v396
        %2832 = vmatprep.subr.mxu0 %v2813
        %2833 = vmatpush1.msra.mxu0 %v2812
        %2834 = vmatprep.subr.mxu0 %v2815
        %2835 = vmatpush1.msra.mxu0 %v2814
        %2836 = vmatprep.subr.mxu0 %v2817
        %2837 = vmatpush1.msra.mxu0 %v2816
        %2838 = vmatprep.subr.mxu0 %v2819
        %2839 = vmatpush1.msra.mxu0 %v2818
        %2840 = vmatprep.subr.mxu0 %v2821
        %2841 = vmatpush1.msra.mxu0 %v2820
        %2842 = vmatprep.subr.mxu0 %v2823
        %2843 = vmatpush1.msra.mxu0 %v2822
        %2844 = vmatprep.subr.mxu0 %v2825
        %2845 = vmatpush1.msra.mxu0 %v2824
        %2846 = vmatprep.subr.mxu0 %v2827
        %2847 = vmatpush1.msra.mxu0 %v2826
        %2848 = vmatprep.subr.mxu0 %v2829
        %2849 = vmatpush1.msra.mxu0 %v2828
        %2850 = vmatprep.subr.mxu0 %v2831
        %2851 = vmatpush1.msra.mxu0 %v2830
        %2852 = vmatprep.subr.mxu0 0.0
        %2853 = vmatpush1.msra.mxu0 0.0
        %2854 = vmatprep.subr.mxu0 0.0
        %2855 = vmatpush1.msra.mxu0 0.0
        %2856 = vmatprep.subr.mxu0 0.0
        %2857 = vmatpush1.msra.mxu0 0.0
        %2858 = vmatprep.subr.mxu0 0.0
        %2859 = vmatpush1.msra.mxu0 0.0
        %2860 = vmatprep.subr.mxu0 0.0
        %2861 = vmatpush1.msra.mxu0 0.0
        %2862 = vmatprep.subr.mxu0 0.0
        %2863 = vmatpush1.msra.mxu0 0.0
        %2864 = vmatprep.subr.mxu0 0.0
        %2865 = vmatpush1.msra.mxu0 0.0
        %2866 = vmatprep.subr.mxu0 0.0
        %2867 = vmatpush1.msra.mxu0 0.0
        %2868 = vmatprep.subr.mxu0 0.0
        %2869 = vmatpush1.msra.mxu0 0.0
        %2870 = vmatprep.subr.mxu0 0.0
        %2871 = vmatpush1.msra.mxu0 0.0
        %2872 = vmatprep.subr.mxu0 0.0
        %2873 = vmatpush1.msra.mxu0 0.0
        %2874 = vmatprep.subr.mxu0 0.0
        %2875 = vmatpush1.msra.mxu0 0.0
        %2876 = vmatprep.subr.mxu0 0.0
        %2877 = vmatpush1.msra.mxu0 0.0
        %2878 = vmatprep.subr.mxu0 0.0
        %2879 = vmatpush1.msra.mxu0 0.0
        %2880 = vmatprep.subr.mxu0 0.0
        %2881 = vmatpush1.msra.mxu0 0.0
        %2882 = vmatprep.subr.mxu0 0.0
        %2883 = vmatpush1.msra.mxu0 0.0
        %2884 = vmatprep.subr.mxu0 0.0
        %2885 = vmatpush1.msra.mxu0 0.0
        %2886 = vmatprep.subr.mxu0 0.0
        %2887 = vmatpush1.msra.mxu0 0.0
        %2888 = vmatprep.subr.mxu0 0.0
        %2889 = vmatpush1.msra.mxu0 0.0
        %2890 = vmatprep.subr.mxu0 0.0
        %2891 = vmatpush1.msra.mxu0 0.0
        %2892 = vmatprep.subr.mxu0 0.0
        %2893 = vmatpush1.msra.mxu0 0.0
        %2894 = vmatprep.subr.mxu0 0.0
        %2895 = vmatpush1.msra.mxu0 0.0
        %2896 = vmatprep.mubr.f32.mxu0 0.0
        %2897 = vmatmul.mubr.f32.gmra.mrb[0].mxu0 %v450
        %v2898 = vpop.f32.mrb[0].mxu0
        %v2899 = vadd.f32 0.0, %v2898
        %v2900 = vpop.f32.mrb[0].mxu0
        %v2901 = vadd.f32 0.0, %v2900
        %2902 = vmatprep.mubr.f32.mxu0 0.0
        %2903 = vmatmul.mubr.f32.gmra.mrb[0].mxu0 %v453
        %v2904 = vpop.f32.mrb[0].mxu0
        %v2905 = vadd.f32 0.0, %v2904
        %v2906 = vpop.f32.mrb[0].mxu0
        %v2907 = vadd.f32 0.0, %v2906
        %2908 = vdwg.mxu0
        %v2910 = vsel %vm419, %v2901, 0
        %v2913 = vsel %vm419, %v2907, 0
        %2915 = vmatprep.subr.mxu0 0.0
        %2916 = vmatpush1.msra.mxu0 %v357
        %2917 = vmatprep.subr.mxu0 0.0
        %2918 = vmatpush1.msra.mxu0 %v358
        %2919 = vmatprep.subr.mxu0 0.0
        %2920 = vmatpush1.msra.mxu0 %v359
        %2921 = vmatprep.subr.mxu0 0.0
        %2922 = vmatpush1.msra.mxu0 %v360
        %2923 = vmatprep.subr.mxu0 0.0
        %2924 = vmatpush1.msra.mxu0 %v361
        %2925 = vmatprep.subr.mxu0 0.0
        %2926 = vmatpush1.msra.mxu0 %v362
        %2927 = vmatprep.subr.mxu0 0.0
        %2928 = vmatpush1.msra.mxu0 %v363
        %2929 = vmatprep.subr.mxu0 0.0
        %2930 = vmatpush1.msra.mxu0 %v364
        %2931 = vmatprep.subr.mxu0 0.0
        %2932 = vmatpush1.msra.mxu0 %v365
        %2933 = vmatprep.subr.mxu0 0.0
        %2934 = vmatpush1.msra.mxu0 %v366
        %2935 = vmatprep.subr.mxu0 0.0
        %2936 = vmatpush1.msra.mxu0 %v367
        %2937 = vmatprep.subr.mxu0 0.0
        %2938 = vmatpush1.msra.mxu0 %v368
        %2939 = vmatprep.subr.mxu0 0.0
        %2940 = vmatpush1.msra.mxu0 %v369
        %2941 = vmatprep.subr.mxu0 0.0
        %2942 = vmatpush1.msra.mxu0 %v370
        %2943 = vmatprep.subr.mxu0 0.0
        %2944 = vmatpush1.msra.mxu0 %v371
        %2945 = vmatprep.subr.mxu0 0.0
        %2946 = vmatpush1.msra.mxu0 %v372
        %2947 = vmatprep.subr.mxu0 0.0
        %2948 = vmatpush1.msra.mxu0 %v373
        %2949 = vmatprep.subr.mxu0 0.0
        %2950 = vmatpush1.msra.mxu0 %v374
        %2951 = vmatprep.subr.mxu0 0.0
        %2952 = vmatpush1.msra.mxu0 %v375
        %2953 = vmatprep.subr.mxu0 0.0
        %2954 = vmatpush1.msra.mxu0 %v376
        %2955 = vmatprep.subr.mxu0 0.0
        %2956 = vmatpush1.msra.mxu0 0.0
        %2957 = vmatprep.subr.mxu0 0.0
        %2958 = vmatpush1.msra.mxu0 0.0
        %2959 = vmatprep.subr.mxu0 0.0
        %2960 = vmatpush1.msra.mxu0 0.0
        %2961 = vmatprep.subr.mxu0 0.0
        %2962 = vmatpush1.msra.mxu0 0.0
        %2963 = vmatprep.subr.mxu0 0.0
        %2964 = vmatpush1.msra.mxu0 0.0
        %2965 = vmatprep.subr.mxu0 0.0
        %2966 = vmatpush1.msra.mxu0 0.0
        %2967 = vmatprep.subr.mxu0 0.0
        %2968 = vmatpush1.msra.mxu0 0.0
        %2969 = vmatprep.subr.mxu0 0.0
        %2970 = vmatpush1.msra.mxu0 0.0
        %2971 = vmatprep.subr.mxu0 0.0
        %2972 = vmatpush1.msra.mxu0 0.0
        %2973 = vmatprep.subr.mxu0 0.0
        %2974 = vmatpush1.msra.mxu0 0.0
        %2975 = vmatprep.subr.mxu0 0.0
        %2976 = vmatpush1.msra.mxu0 0.0
        %2977 = vmatprep.subr.mxu0 0.0
        %2978 = vmatpush1.msra.mxu0 0.0
        %2979 = vmatprep.mubr.f32.mxu0 %v2910
        %2980 = vmatmul.mubr.f32.gmra.mrb[0].mxu0 %v2899
        %v2981 = vpop.f32.mrb[0].mxu0
        %v2982 = vadd.f32 %v397, %v2981
        %v2983 = vpop.f32.mrb[0].mxu0
        %2984 = vmatprep.mubr.f32.mxu0 %v2913
        %2985 = vmatmul.mubr.f32.gmra.mrb[0].mxu0 %v2905
        %v2986 = vpop.f32.mrb[0].mxu0
        %v2987 = vadd.f32 %v398, %v2986
        %v2988 = vpop.f32.mrb[0].mxu0
        %2989 = vdwg.mxu0
        %v2990 = vxor.u32 %v2982, 2147483648
        %v2991 = vxor.u32 %v2987, 2147483648
        %v2992 = vmul.f32 %v2990, 1.442695
        %v2993 = vpow.pop %v2992
        %v2994 = vmul.f32 %v2991, 1.442695
        %v2995 = vpow.pop %v2994
        %v2996 = vadd.f32 %v2993, 1.0
        %v2997 = vadd.f32 %v2995, 1.0
        %v2998 = vrcp.pop %v2996
        %v2999 = vmul.f32 1.0, %v2998
        %v3000 = vrcp.pop %v2997
        %v3001 = vmul.f32 1.0, %v3000
        %v3002 = vmul.f32 %v2999, %v2789
        %v3003 = vmul.f32 %v3001, %v2791
        %3006 = vrot.lane.b32.xlu0 %v3002, 96
        %v3007 = vpop.permute.xlu0 %3006
        %3008 = vrot.lane.b32.xlu0 %v3003, 96
        %v3009 = vpop.permute.xlu0 %3008
        %v3010 = vsel %vm419, %v3007, 0
        %v3012 = vsel %vm419, %v3009, 0
        %3014 = vmatprep.subr.mxu0 0.0
        %3015 = vmatpush1.msra.mxu0 %v627
        %3016 = vmatprep.subr.mxu0 0.0
        %3017 = vmatpush1.msra.mxu0 %v628
        %3018 = vmatprep.subr.mxu0 0.0
        %3019 = vmatpush1.msra.mxu0 %v629
        %3020 = vmatprep.subr.mxu0 0.0
        %3021 = vmatpush1.msra.mxu0 %v630
        %3022 = vmatprep.subr.mxu0 0.0
        %3023 = vmatpush1.msra.mxu0 0.0
        %3024 = vmatprep.subr.mxu0 0.0
        %3025 = vmatpush1.msra.mxu0 0.0
        %3026 = vmatprep.subr.mxu0 0.0
        %3027 = vmatpush1.msra.mxu0 0.0
        %3028 = vmatprep.subr.mxu0 0.0
        %3029 = vmatpush1.msra.mxu0 0.0
        %3030 = vmatprep.subr.mxu0 0.0
        %3031 = vmatpush1.msra.mxu0 0.0
        %3032 = vmatprep.subr.mxu0 0.0
        %3033 = vmatpush1.msra.mxu0 0.0
        %3034 = vmatprep.subr.mxu0 0.0
        %3035 = vmatpush1.msra.mxu0 0.0
        %3036 = vmatprep.subr.mxu0 0.0
        %3037 = vmatpush1.msra.mxu0 0.0
        %3038 = vmatprep.subr.mxu0 0.0
        %3039 = vmatpush1.msra.mxu0 0.0
        %3040 = vmatprep.subr.mxu0 0.0
        %3041 = vmatpush1.msra.mxu0 0.0
        %3042 = vmatprep.subr.mxu0 0.0
        %3043 = vmatpush1.msra.mxu0 0.0
        %3044 = vmatprep.subr.mxu0 0.0
        %3045 = vmatpush1.msra.mxu0 0.0
        %3046 = vmatprep.subr.mxu0 0.0
        %3047 = vmatpush1.msra.mxu0 0.0
        %3048 = vmatprep.subr.mxu0 0.0
        %3049 = vmatpush1.msra.mxu0 0.0
        %3050 = vmatprep.subr.mxu0 0.0
        %3051 = vmatpush1.msra.mxu0 0.0
        %3052 = vmatprep.subr.mxu0 0.0
        %3053 = vmatpush1.msra.mxu0 0.0
        %3054 = vmatprep.subr.mxu0 0.0
        %3055 = vmatpush1.msra.mxu0 0.0
        %3056 = vmatprep.subr.mxu0 0.0
        %3057 = vmatpush1.msra.mxu0 0.0
        %3058 = vmatprep.subr.mxu0 0.0
        %3059 = vmatpush1.msra.mxu0 0.0
        %3060 = vmatprep.subr.mxu0 0.0
        %3061 = vmatpush1.msra.mxu0 0.0
        %3062 = vmatprep.subr.mxu0 0.0
        %3063 = vmatpush1.msra.mxu0 0.0
        %3064 = vmatprep.subr.mxu0 0.0
        %3065 = vmatpush1.msra.mxu0 0.0
        %3066 = vmatprep.subr.mxu0 0.0
        %3067 = vmatpush1.msra.mxu0 0.0
        %3068 = vmatprep.subr.mxu0 0.0
        %3069 = vmatpush1.msra.mxu0 0.0
        %3070 = vmatprep.subr.mxu0 0.0
        %3071 = vmatpush1.msra.mxu0 0.0
        %3072 = vmatprep.subr.mxu0 0.0
        %3073 = vmatpush1.msra.mxu0 0.0
        %3074 = vmatprep.subr.mxu0 0.0
        %3075 = vmatpush1.msra.mxu0 0.0
        %3076 = vmatprep.subr.mxu0 0.0
        %3077 = vmatpush1.msra.mxu0 0.0
        %3078 = vmatprep.mubr.f32.mxu0 0.0
        %3079 = vmatmul.mubr.f32.gmra.mrb[0].mxu0 %v3010
        %v3080 = vpop.f32.mrb[0].mxu0
        %v3081 = vadd.f32 0.0, %v3080
        %v3082 = vpop.f32.mrb[0].mxu0
        %3083 = vmatprep.mubr.f32.mxu0 0.0
        %3084 = vmatmul.mubr.f32.gmra.mrb[0].mxu0 %v3012
        %v3085 = vpop.f32.mrb[0].mxu0
        %v3086 = vadd.f32 0.0, %v3085
        %v3087 = vpop.f32.mrb[0].mxu0
        %3088 = vdwg.mxu0
        %3091 = vrot.lane.b32.xlu0 %v3081, 64
        %v3092 = vpop.permute.xlu0 %3091
        %3093 = vrot.lane.b32.xlu0 %v3086, 64
        %v3094 = vpop.permute.xlu0 %3093
        %v3097 = vadd.f32 %v2982, %v3092
        %v3098 = vadd.f32 %v2987, %v3094
        %v3099 = vtanh.pop %v3097
        %v3100 = vtanh.pop %v3098
        %v3101 = vsub.f32 1.0, %v2999
        %v3102 = vsub.f32 1.0, %v3001
        %v3103 = vmul.f32 %v3101, %v2784
        %v3104 = vmul.f32 %v3102, %v2785
        %3107 = vrot.lane.b32.xlu0 %v3099, 96
        %v3108 = vpop.permute.xlu0 %3107
        %3109 = vrot.lane.b32.xlu0 %v3100, 96
        %v3110 = vpop.permute.xlu0 %3109
        %v3113 = vmul.f32 %v2999, %v3108
        %v3114 = vmul.f32 %v3001, %v3110
        %3117 = vrot.lane.b32.xlu0 %v3113, 96
        %v3118 = vpop.permute.xlu0 %3117
        %3119 = vrot.lane.b32.xlu0 %v3114, 96
        %v3120 = vpop.permute.xlu0 %3119
        %v3123 = vadd.f32 %v3103, %v3118
        %v3124 = vadd.f32 %v3104, %v3120
        %3127 = vrot.lane.b32.xlu0 %v3123, 32
        %v3128 = vpop.permute.xlu0 %3127
        %3129 = vrot.lane.b32.xlu0 %v3124, 32
        %v3130 = vpop.permute.xlu0 %3129
        %3133 = vrot.lane.b32.xlu0 %v3123, 64
        %v3134 = vpop.permute.xlu0 %3133
        %3135 = vrot.lane.b32.xlu0 %v3124, 64
        %v3136 = vpop.permute.xlu0 %3135
        %3139 = vrot.lane.b32.xlu0 %v3123, 96
        %v3140 = vpop.permute.xlu0 %3139
        %3141 = vrot.lane.b32.xlu0 %v3124, 96
        %v3142 = vpop.permute.xlu0 %3141
        %v3145 = vsel %vm419, %v3123, %v3128
        %v3146 = vsel %vm419, %v3124, %v3130
        %v3147 = vsel %vm422, %v3145, %v3134
        %v3148 = vsel %vm422, %v3146, %v3136
        %v3149 = vsel %vm425, %v3147, %v3140
        %v3150 = vsel %vm425, %v3148, %v3142
        %v3151 = vmul.f32 %v3149, %v377
        %v3152 = vmul.f32 %v3123, %v378
        %v3153 = vmul.f32 %v3150, %v379
        %v3154 = vmul.f32 %v3124, %v380
        %v3155 = vmul.f32 %v3149, %v381
        %v3156 = vmul.f32 %v3123, %v382
        %v3157 = vmul.f32 %v3150, %v383
        %v3158 = vmul.f32 %v3124, %v384
        %v3159 = vmul.f32 %v3149, %v385
        %v3160 = vmul.f32 %v3123, %v386
        %v3161 = vmul.f32 %v3150, %v387
        %v3162 = vmul.f32 %v3124, %v388
        %v3163 = vmul.f32 %v3149, %v389
        %v3164 = vmul.f32 %v3123, %v390
        %v3165 = vmul.f32 %v3150, %v391
        %v3166 = vmul.f32 %v3124, %v392
        %v3167 = vmul.f32 %v3149, %v393
        %v3168 = vmul.f32 %v3123, %v394
        %v3169 = vmul.f32 %v3150, %v395
        %v3170 = vmul.f32 %v3124, %v396
        %3171 = vmatprep.subr.mxu0 %v3152
        %3172 = vmatpush1.msra.mxu0 %v3151
        %3173 = vmatprep.subr.mxu0 %v3154
        %3174 = vmatpush1.msra.mxu0 %v3153
        %3175 = vmatprep.subr.mxu0 %v3156
        %3176 = vmatpush1.msra.mxu0 %v3155
        %3177 = vmatprep.subr.mxu0 %v3158
        %3178 = vmatpush1.msra.mxu0 %v3157
        %3179 = vmatprep.subr.mxu0 %v3160
        %3180 = vmatpush1.msra.mxu0 %v3159
        %3181 = vmatprep.subr.mxu0 %v3162
        %3182 = vmatpush1.msra.mxu0 %v3161
        %3183 = vmatprep.subr.mxu0 %v3164
        %3184 = vmatpush1.msra.mxu0 %v3163
        %3185 = vmatprep.subr.mxu0 %v3166
        %3186 = vmatpush1.msra.mxu0 %v3165
        %3187 = vmatprep.subr.mxu0 %v3168
        %3188 = vmatpush1.msra.mxu0 %v3167
        %3189 = vmatprep.subr.mxu0 %v3170
        %3190 = vmatpush1.msra.mxu0 %v3169
        %3191 = vmatprep.subr.mxu0 0.0
        %3192 = vmatpush1.msra.mxu0 0.0
        %3193 = vmatprep.subr.mxu0 0.0
        %3194 = vmatpush1.msra.mxu0 0.0
        %3195 = vmatprep.subr.mxu0 0.0
        %3196 = vmatpush1.msra.mxu0 0.0
        %3197 = vmatprep.subr.mxu0 0.0
        %3198 = vmatpush1.msra.mxu0 0.0
        %3199 = vmatprep.subr.mxu0 0.0
        %3200 = vmatpush1.msra.mxu0 0.0
        %3201 = vmatprep.subr.mxu0 0.0
        %3202 = vmatpush1.msra.mxu0 0.0
        %3203 = vmatprep.subr.mxu0 0.0
        %3204 = vmatpush1.msra.mxu0 0.0
        %3205 = vmatprep.subr.mxu0 0.0
        %3206 = vmatpush1.msra.mxu0 0.0
        %3207 = vmatprep.subr.mxu0 0.0
        %3208 = vmatpush1.msra.mxu0 0.0
        %3209 = vmatprep.subr.mxu0 0.0
        %3210 = vmatpush1.msra.mxu0 0.0
        %3211 = vmatprep.subr.mxu0 0.0
        %3212 = vmatpush1.msra.mxu0 0.0
        %3213 = vmatprep.subr.mxu0 0.0
        %3214 = vmatpush1.msra.mxu0 0.0
        %3215 = vmatprep.subr.mxu0 0.0
        %3216 = vmatpush1.msra.mxu0 0.0
        %3217 = vmatprep.subr.mxu0 0.0
        %3218 = vmatpush1.msra.mxu0 0.0
        %3219 = vmatprep.subr.mxu0 0.0
        %3220 = vmatpush1.msra.mxu0 0.0
        %3221 = vmatprep.subr.mxu0 0.0
        %3222 = vmatpush1.msra.mxu0 0.0
        %3223 = vmatprep.subr.mxu0 0.0
        %3224 = vmatpush1.msra.mxu0 0.0
        %3225 = vmatprep.subr.mxu0 0.0
        %3226 = vmatpush1.msra.mxu0 0.0
        %3227 = vmatprep.subr.mxu0 0.0
        %3228 = vmatpush1.msra.mxu0 0.0
        %3229 = vmatprep.subr.mxu0 0.0
        %3230 = vmatpush1.msra.mxu0 0.0
        %3231 = vmatprep.subr.mxu0 0.0
        %3232 = vmatpush1.msra.mxu0 0.0
        %3233 = vmatprep.subr.mxu0 0.0
        %3234 = vmatpush1.msra.mxu0 0.0
        %3235 = vmatprep.mubr.f32.mxu0 0.0
        %3236 = vmatmul.mubr.f32.gmra.mrb[0].mxu0 %v450
        %v3237 = vpop.f32.mrb[0].mxu0
        %v3238 = vadd.f32 0.0, %v3237
        %v3239 = vpop.f32.mrb[0].mxu0
        %v3240 = vadd.f32 0.0, %v3239
        %3241 = vmatprep.mubr.f32.mxu0 0.0
        %3242 = vmatmul.mubr.f32.gmra.mrb[0].mxu0 %v453
        %v3243 = vpop.f32.mrb[0].mxu0
        %v3244 = vadd.f32 0.0, %v3243
        %v3245 = vpop.f32.mrb[0].mxu0
        %v3246 = vadd.f32 0.0, %v3245
        %3247 = vdwg.mxu0
        %v3249 = vsel %vm419, %v3240, 0
        %v3252 = vsel %vm419, %v3246, 0
        %3254 = vmatprep.subr.mxu0 0.0
        %3255 = vmatpush1.msra.mxu0 %v357
        %3256 = vmatprep.subr.mxu0 0.0
        %3257 = vmatpush1.msra.mxu0 %v358
        %3258 = vmatprep.subr.mxu0 0.0
        %3259 = vmatpush1.msra.mxu0 %v359
        %3260 = vmatprep.subr.mxu0 0.0
        %3261 = vmatpush1.msra.mxu0 %v360
        %3262 = vmatprep.subr.mxu0 0.0
        %3263 = vmatpush1.msra.mxu0 %v361
        %3264 = vmatprep.subr.mxu0 0.0
        %3265 = vmatpush1.msra.mxu0 %v362
        %3266 = vmatprep.subr.mxu0 0.0
        %3267 = vmatpush1.msra.mxu0 %v363
        %3268 = vmatprep.subr.mxu0 0.0
        %3269 = vmatpush1.msra.mxu0 %v364
        %3270 = vmatprep.subr.mxu0 0.0
        %3271 = vmatpush1.msra.mxu0 %v365
        %3272 = vmatprep.subr.mxu0 0.0
        %3273 = vmatpush1.msra.mxu0 %v366
        %3274 = vmatprep.subr.mxu0 0.0
        %3275 = vmatpush1.msra.mxu0 %v367
        %3276 = vmatprep.subr.mxu0 0.0
        %3277 = vmatpush1.msra.mxu0 %v368
        %3278 = vmatprep.subr.mxu0 0.0
        %3279 = vmatpush1.msra.mxu0 %v369
        %3280 = vmatprep.subr.mxu0 0.0
        %3281 = vmatpush1.msra.mxu0 %v370
        %3282 = vmatprep.subr.mxu0 0.0
        %3283 = vmatpush1.msra.mxu0 %v371
        %3284 = vmatprep.subr.mxu0 0.0
        %3285 = vmatpush1.msra.mxu0 %v372
        %3286 = vmatprep.subr.mxu0 0.0
        %3287 = vmatpush1.msra.mxu0 %v373
        %3288 = vmatprep.subr.mxu0 0.0
        %3289 = vmatpush1.msra.mxu0 %v374
        %3290 = vmatprep.subr.mxu0 0.0
        %3291 = vmatpush1.msra.mxu0 %v375
        %3292 = vmatprep.subr.mxu0 0.0
        %3293 = vmatpush1.msra.mxu0 %v376
        %3294 = vmatprep.subr.mxu0 0.0
        %3295 = vmatpush1.msra.mxu0 0.0
        %3296 = vmatprep.subr.mxu0 0.0
        %3297 = vmatpush1.msra.mxu0 0.0
        %3298 = vmatprep.subr.mxu0 0.0
        %3299 = vmatpush1.msra.mxu0 0.0
        %3300 = vmatprep.subr.mxu0 0.0
        %3301 = vmatpush1.msra.mxu0 0.0
        %3302 = vmatprep.subr.mxu0 0.0
        %3303 = vmatpush1.msra.mxu0 0.0
        %3304 = vmatprep.subr.mxu0 0.0
        %3305 = vmatpush1.msra.mxu0 0.0
        %3306 = vmatprep.subr.mxu0 0.0
        %3307 = vmatpush1.msra.mxu0 0.0
        %3308 = vmatprep.subr.mxu0 0.0
        %3309 = vmatpush1.msra.mxu0 0.0
        %3310 = vmatprep.subr.mxu0 0.0
        %3311 = vmatpush1.msra.mxu0 0.0
        %3312 = vmatprep.subr.mxu0 0.0
        %3313 = vmatpush1.msra.mxu0 0.0
        %3314 = vmatprep.subr.mxu0 0.0
        %3315 = vmatpush1.msra.mxu0 0.0
        %3316 = vmatprep.subr.mxu0 0.0
        %3317 = vmatpush1.msra.mxu0 0.0
        %3318 = vmatprep.mubr.f32.mxu0 %v3249
        %3319 = vmatmul.mubr.f32.gmra.mrb[0].mxu0 %v3238
        %v3320 = vpop.f32.mrb[0].mxu0
        %v3321 = vadd.f32 %v397, %v3320
        %v3322 = vpop.f32.mrb[0].mxu0
        %3323 = vmatprep.mubr.f32.mxu0 %v3252
        %3324 = vmatmul.mubr.f32.gmra.mrb[0].mxu0 %v3244
        %v3325 = vpop.f32.mrb[0].mxu0
        %v3326 = vadd.f32 %v398, %v3325
        %v3327 = vpop.f32.mrb[0].mxu0
        %3328 = vdwg.mxu0
        %v3329 = vxor.u32 %v3321, 2147483648
        %v3330 = vxor.u32 %v3326, 2147483648
        %v3331 = vmul.f32 %v3329, 1.442695
        %v3332 = vpow.pop %v3331
        %v3333 = vmul.f32 %v3330, 1.442695
        %v3334 = vpow.pop %v3333
        %v3335 = vadd.f32 %v3332, 1.0
        %v3336 = vadd.f32 %v3334, 1.0
        %v3337 = vrcp.pop %v3335
        %v3338 = vmul.f32 1.0, %v3337
        %v3339 = vrcp.pop %v3336
        %v3340 = vmul.f32 1.0, %v3339
        %v3341 = vmul.f32 %v3338, %v3128
        %v3342 = vmul.f32 %v3340, %v3130
        %3345 = vrot.lane.b32.xlu0 %v3341, 96
        %v3346 = vpop.permute.xlu0 %3345
        %3347 = vrot.lane.b32.xlu0 %v3342, 96
        %v3348 = vpop.permute.xlu0 %3347
        %v3349 = vsel %vm419, %v3346, 0
        %v3351 = vsel %vm419, %v3348, 0
        %3353 = vmatprep.subr.mxu0 0.0
        %3354 = vmatpush1.msra.mxu0 %v627
        %3355 = vmatprep.subr.mxu0 0.0
        %3356 = vmatpush1.msra.mxu0 %v628
        %3357 = vmatprep.subr.mxu0 0.0
        %3358 = vmatpush1.msra.mxu0 %v629
        %3359 = vmatprep.subr.mxu0 0.0
        %3360 = vmatpush1.msra.mxu0 %v630
        %3361 = vmatprep.subr.mxu0 0.0
        %3362 = vmatpush1.msra.mxu0 0.0
        %3363 = vmatprep.subr.mxu0 0.0
        %3364 = vmatpush1.msra.mxu0 0.0
        %3365 = vmatprep.subr.mxu0 0.0
        %3366 = vmatpush1.msra.mxu0 0.0
        %3367 = vmatprep.subr.mxu0 0.0
        %3368 = vmatpush1.msra.mxu0 0.0
        %3369 = vmatprep.subr.mxu0 0.0
        %3370 = vmatpush1.msra.mxu0 0.0
        %3371 = vmatprep.subr.mxu0 0.0
        %3372 = vmatpush1.msra.mxu0 0.0
        %3373 = vmatprep.subr.mxu0 0.0
        %3374 = vmatpush1.msra.mxu0 0.0
        %3375 = vmatprep.subr.mxu0 0.0
        %3376 = vmatpush1.msra.mxu0 0.0
        %3377 = vmatprep.subr.mxu0 0.0
        %3378 = vmatpush1.msra.mxu0 0.0
        %3379 = vmatprep.subr.mxu0 0.0
        %3380 = vmatpush1.msra.mxu0 0.0
        %3381 = vmatprep.subr.mxu0 0.0
        %3382 = vmatpush1.msra.mxu0 0.0
        %3383 = vmatprep.subr.mxu0 0.0
        %3384 = vmatpush1.msra.mxu0 0.0
        %3385 = vmatprep.subr.mxu0 0.0
        %3386 = vmatpush1.msra.mxu0 0.0
        %3387 = vmatprep.subr.mxu0 0.0
        %3388 = vmatpush1.msra.mxu0 0.0
        %3389 = vmatprep.subr.mxu0 0.0
        %3390 = vmatpush1.msra.mxu0 0.0
        %3391 = vmatprep.subr.mxu0 0.0
        %3392 = vmatpush1.msra.mxu0 0.0
        %3393 = vmatprep.subr.mxu0 0.0
        %3394 = vmatpush1.msra.mxu0 0.0
        %3395 = vmatprep.subr.mxu0 0.0
        %3396 = vmatpush1.msra.mxu0 0.0
        %3397 = vmatprep.subr.mxu0 0.0
        %3398 = vmatpush1.msra.mxu0 0.0
        %3399 = vmatprep.subr.mxu0 0.0
        %3400 = vmatpush1.msra.mxu0 0.0
        %3401 = vmatprep.subr.mxu0 0.0
        %3402 = vmatpush1.msra.mxu0 0.0
        %3403 = vmatprep.subr.mxu0 0.0
        %3404 = vmatpush1.msra.mxu0 0.0
        %3405 = vmatprep.subr.mxu0 0.0
        %3406 = vmatpush1.msra.mxu0 0.0
        %3407 = vmatprep.subr.mxu0 0.0
        %3408 = vmatpush1.msra.mxu0 0.0
        %3409 = vmatprep.subr.mxu0 0.0
        %3410 = vmatpush1.msra.mxu0 0.0
        %3411 = vmatprep.subr.mxu0 0.0
        %3412 = vmatpush1.msra.mxu0 0.0
        %3413 = vmatprep.subr.mxu0 0.0
        %3414 = vmatpush1.msra.mxu0 0.0
        %3415 = vmatprep.subr.mxu0 0.0
        %3416 = vmatpush1.msra.mxu0 0.0
        %3417 = vmatprep.mubr.f32.mxu0 0.0
        %3418 = vmatmul.mubr.f32.gmra.mrb[0].mxu0 %v3349
        %v3419 = vpop.f32.mrb[0].mxu0
        %v3420 = vadd.f32 0.0, %v3419
        %v3421 = vpop.f32.mrb[0].mxu0
        %3422 = vmatprep.mubr.f32.mxu0 0.0
        %3423 = vmatmul.mubr.f32.gmra.mrb[0].mxu0 %v3351
        %v3424 = vpop.f32.mrb[0].mxu0
        %v3425 = vadd.f32 0.0, %v3424
        %v3426 = vpop.f32.mrb[0].mxu0
        %3427 = vdwg.mxu0
        %3430 = vrot.lane.b32.xlu0 %v3420, 64
        %v3431 = vpop.permute.xlu0 %3430
        %3432 = vrot.lane.b32.xlu0 %v3425, 64
        %v3433 = vpop.permute.xlu0 %3432
        %v3436 = vadd.f32 %v3321, %v3431
        %v3437 = vadd.f32 %v3326, %v3433
        %v3438 = vtanh.pop %v3436
        %v3439 = vtanh.pop %v3437
        %v3440 = vsub.f32 1.0, %v3338
        %v3441 = vsub.f32 1.0, %v3340
        %v3442 = vmul.f32 %v3440, %v3123
        %v3443 = vmul.f32 %v3441, %v3124
        %3446 = vrot.lane.b32.xlu0 %v3438, 96
        %v3447 = vpop.permute.xlu0 %3446
        %3448 = vrot.lane.b32.xlu0 %v3439, 96
        %v3449 = vpop.permute.xlu0 %3448
        %v3452 = vmul.f32 %v3338, %v3447
        %v3453 = vmul.f32 %v3340, %v3449
        %3456 = vrot.lane.b32.xlu0 %v3452, 96
        %v3457 = vpop.permute.xlu0 %3456
        %3458 = vrot.lane.b32.xlu0 %v3453, 96
        %v3459 = vpop.permute.xlu0 %3458
        %v3462 = vadd.f32 %v3442, %v3457
        %v3463 = vadd.f32 %v3443, %v3459
        %3466 = vrot.lane.b32.xlu0 %v3462, 32
        %v3467 = vpop.permute.xlu0 %3466
        %3468 = vrot.lane.b32.xlu0 %v3463, 32
        %v3469 = vpop.permute.xlu0 %3468
        %3472 = vrot.lane.b32.xlu0 %v3462, 64
        %v3473 = vpop.permute.xlu0 %3472
        %3474 = vrot.lane.b32.xlu0 %v3463, 64
        %v3475 = vpop.permute.xlu0 %3474
        %3478 = vrot.lane.b32.xlu0 %v3462, 96
        %v3479 = vpop.permute.xlu0 %3478
        %3480 = vrot.lane.b32.xlu0 %v3463, 96
        %v3481 = vpop.permute.xlu0 %3480
        %v3484 = vsel %vm419, %v3462, %v3467
        %v3485 = vsel %vm419, %v3463, %v3469
        %v3486 = vsel %vm422, %v3484, %v3473
        %v3487 = vsel %vm422, %v3485, %v3475
        %v3488 = vsel %vm425, %v3486, %v3479
        %v3489 = vsel %vm425, %v3487, %v3481
        %v3490 = vmul.f32 %v3488, %v377
        %v3491 = vmul.f32 %v3462, %v378
        %v3492 = vmul.f32 %v3489, %v379
        %v3493 = vmul.f32 %v3463, %v380
        %v3494 = vmul.f32 %v3488, %v381
        %v3495 = vmul.f32 %v3462, %v382
        %v3496 = vmul.f32 %v3489, %v383
        %v3497 = vmul.f32 %v3463, %v384
        %v3498 = vmul.f32 %v3488, %v385
        %v3499 = vmul.f32 %v3462, %v386
        %v3500 = vmul.f32 %v3489, %v387
        %v3501 = vmul.f32 %v3463, %v388
        %v3502 = vmul.f32 %v3488, %v389
        %v3503 = vmul.f32 %v3462, %v390
        %v3504 = vmul.f32 %v3489, %v391
        %v3505 = vmul.f32 %v3463, %v392
        %v3506 = vmul.f32 %v3488, %v393
        %v3507 = vmul.f32 %v3462, %v394
        %v3508 = vmul.f32 %v3489, %v395
        %v3509 = vmul.f32 %v3463, %v396
        %3510 = vmatprep.subr.mxu0 %v3491
        %3511 = vmatpush1.msra.mxu0 %v3490
        %3512 = vmatprep.subr.mxu0 %v3493
        %3513 = vmatpush1.msra.mxu0 %v3492
        %3514 = vmatprep.subr.mxu0 %v3495
        %3515 = vmatpush1.msra.mxu0 %v3494
        %3516 = vmatprep.subr.mxu0 %v3497
        %3517 = vmatpush1.msra.mxu0 %v3496
        %3518 = vmatprep.subr.mxu0 %v3499
        %3519 = vmatpush1.msra.mxu0 %v3498
        %3520 = vmatprep.subr.mxu0 %v3501
        %3521 = vmatpush1.msra.mxu0 %v3500
        %3522 = vmatprep.subr.mxu0 %v3503
        %3523 = vmatpush1.msra.mxu0 %v3502
        %3524 = vmatprep.subr.mxu0 %v3505
        %3525 = vmatpush1.msra.mxu0 %v3504
        %3526 = vmatprep.subr.mxu0 %v3507
        %3527 = vmatpush1.msra.mxu0 %v3506
        %3528 = vmatprep.subr.mxu0 %v3509
        %3529 = vmatpush1.msra.mxu0 %v3508
        %3530 = vmatprep.subr.mxu0 0.0
        %3531 = vmatpush1.msra.mxu0 0.0
        %3532 = vmatprep.subr.mxu0 0.0
        %3533 = vmatpush1.msra.mxu0 0.0
        %3534 = vmatprep.subr.mxu0 0.0
        %3535 = vmatpush1.msra.mxu0 0.0
        %3536 = vmatprep.subr.mxu0 0.0
        %3537 = vmatpush1.msra.mxu0 0.0
        %3538 = vmatprep.subr.mxu0 0.0
        %3539 = vmatpush1.msra.mxu0 0.0
        %3540 = vmatprep.subr.mxu0 0.0
        %3541 = vmatpush1.msra.mxu0 0.0
        %3542 = vmatprep.subr.mxu0 0.0
        %3543 = vmatpush1.msra.mxu0 0.0
        %3544 = vmatprep.subr.mxu0 0.0
        %3545 = vmatpush1.msra.mxu0 0.0
        %3546 = vmatprep.subr.mxu0 0.0
        %3547 = vmatpush1.msra.mxu0 0.0
        %3548 = vmatprep.subr.mxu0 0.0
        %3549 = vmatpush1.msra.mxu0 0.0
        %3550 = vmatprep.subr.mxu0 0.0
        %3551 = vmatpush1.msra.mxu0 0.0
        %3552 = vmatprep.subr.mxu0 0.0
        %3553 = vmatpush1.msra.mxu0 0.0
        %3554 = vmatprep.subr.mxu0 0.0
        %3555 = vmatpush1.msra.mxu0 0.0
        %3556 = vmatprep.subr.mxu0 0.0
        %3557 = vmatpush1.msra.mxu0 0.0
        %3558 = vmatprep.subr.mxu0 0.0
        %3559 = vmatpush1.msra.mxu0 0.0
        %3560 = vmatprep.subr.mxu0 0.0
        %3561 = vmatpush1.msra.mxu0 0.0
        %3562 = vmatprep.subr.mxu0 0.0
        %3563 = vmatpush1.msra.mxu0 0.0
        %3564 = vmatprep.subr.mxu0 0.0
        %3565 = vmatpush1.msra.mxu0 0.0
        %3566 = vmatprep.subr.mxu0 0.0
        %3567 = vmatpush1.msra.mxu0 0.0
        %3568 = vmatprep.subr.mxu0 0.0
        %3569 = vmatpush1.msra.mxu0 0.0
        %3570 = vmatprep.subr.mxu0 0.0
        %3571 = vmatpush1.msra.mxu0 0.0
        %3572 = vmatprep.subr.mxu0 0.0
        %3573 = vmatpush1.msra.mxu0 0.0
        %3574 = vmatprep.mubr.f32.mxu0 0.0
        %3575 = vmatmul.mubr.f32.gmra.mrb[0].mxu0 %v450
        %v3576 = vpop.f32.mrb[0].mxu0
        %v3577 = vadd.f32 0.0, %v3576
        %v3578 = vpop.f32.mrb[0].mxu0
        %v3579 = vadd.f32 0.0, %v3578
        %3580 = vmatprep.mubr.f32.mxu0 0.0
        %3581 = vmatmul.mubr.f32.gmra.mrb[0].mxu0 %v453
        %v3582 = vpop.f32.mrb[0].mxu0
        %v3583 = vadd.f32 0.0, %v3582
        %v3584 = vpop.f32.mrb[0].mxu0
        %v3585 = vadd.f32 0.0, %v3584
        %3586 = vdwg.mxu0
        %v3588 = vsel %vm419, %v3579, 0
        %v3591 = vsel %vm419, %v3585, 0
        %3593 = vmatprep.subr.mxu0 0.0
        %3594 = vmatpush1.msra.mxu0 %v357
        %3595 = vmatprep.subr.mxu0 0.0
        %3596 = vmatpush1.msra.mxu0 %v358
        %3597 = vmatprep.subr.mxu0 0.0
        %3598 = vmatpush1.msra.mxu0 %v359
        %3599 = vmatprep.subr.mxu0 0.0
        %3600 = vmatpush1.msra.mxu0 %v360
        %3601 = vmatprep.subr.mxu0 0.0
        %3602 = vmatpush1.msra.mxu0 %v361
        %3603 = vmatprep.subr.mxu0 0.0
        %3604 = vmatpush1.msra.mxu0 %v362
        %3605 = vmatprep.subr.mxu0 0.0
        %3606 = vmatpush1.msra.mxu0 %v363
        %3607 = vmatprep.subr.mxu0 0.0
        %3608 = vmatpush1.msra.mxu0 %v364
        %3609 = vmatprep.subr.mxu0 0.0
        %3610 = vmatpush1.msra.mxu0 %v365
        %3611 = vmatprep.subr.mxu0 0.0
        %3612 = vmatpush1.msra.mxu0 %v366
        %3613 = vmatprep.subr.mxu0 0.0
        %3614 = vmatpush1.msra.mxu0 %v367
        %3615 = vmatprep.subr.mxu0 0.0
        %3616 = vmatpush1.msra.mxu0 %v368
        %3617 = vmatprep.subr.mxu0 0.0
        %3618 = vmatpush1.msra.mxu0 %v369
        %3619 = vmatprep.subr.mxu0 0.0
        %3620 = vmatpush1.msra.mxu0 %v370
        %3621 = vmatprep.subr.mxu0 0.0
        %3622 = vmatpush1.msra.mxu0 %v371
        %3623 = vmatprep.subr.mxu0 0.0
        %3624 = vmatpush1.msra.mxu0 %v372
        %3625 = vmatprep.subr.mxu0 0.0
        %3626 = vmatpush1.msra.mxu0 %v373
        %3627 = vmatprep.subr.mxu0 0.0
        %3628 = vmatpush1.msra.mxu0 %v374
        %3629 = vmatprep.subr.mxu0 0.0
        %3630 = vmatpush1.msra.mxu0 %v375
        %3631 = vmatprep.subr.mxu0 0.0
        %3632 = vmatpush1.msra.mxu0 %v376
        %3633 = vmatprep.subr.mxu0 0.0
        %3634 = vmatpush1.msra.mxu0 0.0
        %3635 = vmatprep.subr.mxu0 0.0
        %3636 = vmatpush1.msra.mxu0 0.0
        %3637 = vmatprep.subr.mxu0 0.0
        %3638 = vmatpush1.msra.mxu0 0.0
        %3639 = vmatprep.subr.mxu0 0.0
        %3640 = vmatpush1.msra.mxu0 0.0
        %3641 = vmatprep.subr.mxu0 0.0
        %3642 = vmatpush1.msra.mxu0 0.0
        %3643 = vmatprep.subr.mxu0 0.0
        %3644 = vmatpush1.msra.mxu0 0.0
        %3645 = vmatprep.subr.mxu0 0.0
        %3646 = vmatpush1.msra.mxu0 0.0
        %3647 = vmatprep.subr.mxu0 0.0
        %3648 = vmatpush1.msra.mxu0 0.0
        %3649 = vmatprep.subr.mxu0 0.0
        %3650 = vmatpush1.msra.mxu0 0.0
        %3651 = vmatprep.subr.mxu0 0.0
        %3652 = vmatpush1.msra.mxu0 0.0
        %3653 = vmatprep.subr.mxu0 0.0
        %3654 = vmatpush1.msra.mxu0 0.0
        %3655 = vmatprep.subr.mxu0 0.0
        %3656 = vmatpush1.msra.mxu0 0.0
        %3657 = vmatprep.mubr.f32.mxu0 %v3588
        %3658 = vmatmul.mubr.f32.gmra.mrb[0].mxu0 %v3577
        %v3659 = vpop.f32.mrb[0].mxu0
        %v3660 = vadd.f32 %v397, %v3659
        %v3661 = vpop.f32.mrb[0].mxu0
        %3662 = vmatprep.mubr.f32.mxu0 %v3591
        %3663 = vmatmul.mubr.f32.gmra.mrb[0].mxu0 %v3583
        %v3664 = vpop.f32.mrb[0].mxu0
        %v3665 = vadd.f32 %v398, %v3664
        %v3666 = vpop.f32.mrb[0].mxu0
        %3667 = vdwg.mxu0
        %v3668 = vxor.u32 %v3660, 2147483648
        %v3669 = vxor.u32 %v3665, 2147483648
        %v3670 = vmul.f32 %v3668, 1.442695
        %v3671 = vpow.pop %v3670
        %v3672 = vmul.f32 %v3669, 1.442695
        %v3673 = vpow.pop %v3672
        %v3674 = vadd.f32 %v3671, 1.0
        %v3675 = vadd.f32 %v3673, 1.0
        %v3676 = vrcp.pop %v3674
        %v3677 = vmul.f32 1.0, %v3676
        %v3678 = vrcp.pop %v3675
        %v3679 = vmul.f32 1.0, %v3678
        %v3680 = vmul.f32 %v3677, %v3467
        %v3681 = vmul.f32 %v3679, %v3469
        %3684 = vrot.lane.b32.xlu0 %v3680, 96
        %v3685 = vpop.permute.xlu0 %3684
        %3686 = vrot.lane.b32.xlu0 %v3681, 96
        %v3687 = vpop.permute.xlu0 %3686
        %v3688 = vsel %vm419, %v3685, 0
        %v3690 = vsel %vm419, %v3687, 0
        %3692 = vmatprep.subr.mxu0 0.0
        %3693 = vmatpush1.msra.mxu0 %v627
        %3694 = vmatprep.subr.mxu0 0.0
        %3695 = vmatpush1.msra.mxu0 %v628
        %3696 = vmatprep.subr.mxu0 0.0
        %3697 = vmatpush1.msra.mxu0 %v629
        %3698 = vmatprep.subr.mxu0 0.0
        %3699 = vmatpush1.msra.mxu0 %v630
        %3700 = vmatprep.subr.mxu0 0.0
        %3701 = vmatpush1.msra.mxu0 0.0
        %3702 = vmatprep.subr.mxu0 0.0
        %3703 = vmatpush1.msra.mxu0 0.0
        %3704 = vmatprep.subr.mxu0 0.0
        %3705 = vmatpush1.msra.mxu0 0.0
        %3706 = vmatprep.subr.mxu0 0.0
        %3707 = vmatpush1.msra.mxu0 0.0
        %3708 = vmatprep.subr.mxu0 0.0
        %3709 = vmatpush1.msra.mxu0 0.0
        %3710 = vmatprep.subr.mxu0 0.0
        %3711 = vmatpush1.msra.mxu0 0.0
        %3712 = vmatprep.subr.mxu0 0.0
        %3713 = vmatpush1.msra.mxu0 0.0
        %3714 = vmatprep.subr.mxu0 0.0
        %3715 = vmatpush1.msra.mxu0 0.0
        %3716 = vmatprep.subr.mxu0 0.0
        %3717 = vmatpush1.msra.mxu0 0.0
        %3718 = vmatprep.subr.mxu0 0.0
        %3719 = vmatpush1.msra.mxu0 0.0
        %3720 = vmatprep.subr.mxu0 0.0
        %3721 = vmatpush1.msra.mxu0 0.0
        %3722 = vmatprep.subr.mxu0 0.0
        %3723 = vmatpush1.msra.mxu0 0.0
        %3724 = vmatprep.subr.mxu0 0.0
        %3725 = vmatpush1.msra.mxu0 0.0
        %3726 = vmatprep.subr.mxu0 0.0
        %3727 = vmatpush1.msra.mxu0 0.0
        %3728 = vmatprep.subr.mxu0 0.0
        %3729 = vmatpush1.msra.mxu0 0.0
        %3730 = vmatprep.subr.mxu0 0.0
        %3731 = vmatpush1.msra.mxu0 0.0
        %3732 = vmatprep.subr.mxu0 0.0
        %3733 = vmatpush1.msra.mxu0 0.0
        %3734 = vmatprep.subr.mxu0 0.0
        %3735 = vmatpush1.msra.mxu0 0.0
        %3736 = vmatprep.subr.mxu0 0.0
        %3737 = vmatpush1.msra.mxu0 0.0
        %3738 = vmatprep.subr.mxu0 0.0
        %3739 = vmatpush1.msra.mxu0 0.0
        %3740 = vmatprep.subr.mxu0 0.0
        %3741 = vmatpush1.msra.mxu0 0.0
        %3742 = vmatprep.subr.mxu0 0.0
        %3743 = vmatpush1.msra.mxu0 0.0
        %3744 = vmatprep.subr.mxu0 0.0
        %3745 = vmatpush1.msra.mxu0 0.0
        %3746 = vmatprep.subr.mxu0 0.0
        %3747 = vmatpush1.msra.mxu0 0.0
        %3748 = vmatprep.subr.mxu0 0.0
        %3749 = vmatpush1.msra.mxu0 0.0
        %3750 = vmatprep.subr.mxu0 0.0
        %3751 = vmatpush1.msra.mxu0 0.0
        %3752 = vmatprep.subr.mxu0 0.0
        %3753 = vmatpush1.msra.mxu0 0.0
        %3754 = vmatprep.subr.mxu0 0.0
        %3755 = vmatpush1.msra.mxu0 0.0
        %3756 = vmatprep.mubr.f32.mxu0 0.0
        %3757 = vmatmul.mubr.f32.gmra.mrb[0].mxu0 %v3688
        %v3758 = vpop.f32.mrb[0].mxu0
        %v3759 = vadd.f32 0.0, %v3758
        %v3760 = vpop.f32.mrb[0].mxu0
        %3761 = vmatprep.mubr.f32.mxu0 0.0
        %3762 = vmatmul.mubr.f32.gmra.mrb[0].mxu0 %v3690
        %v3763 = vpop.f32.mrb[0].mxu0
        %v3764 = vadd.f32 0.0, %v3763
        %v3765 = vpop.f32.mrb[0].mxu0
        %3766 = vdwg.mxu0
        %3769 = vrot.lane.b32.xlu0 %v3759, 64
        %v3770 = vpop.permute.xlu0 %3769
        %3771 = vrot.lane.b32.xlu0 %v3764, 64
        %v3772 = vpop.permute.xlu0 %3771
        %v3775 = vadd.f32 %v3660, %v3770
        %v3776 = vadd.f32 %v3665, %v3772
        %v3777 = vtanh.pop %v3775
        %v3778 = vtanh.pop %v3776
        %v3779 = vsub.f32 1.0, %v3677
        %v3780 = vsub.f32 1.0, %v3679
        %v3781 = vmul.f32 %v3779, %v3462
        %v3782 = vmul.f32 %v3780, %v3463
        %3785 = vrot.lane.b32.xlu0 %v3777, 96
        %v3786 = vpop.permute.xlu0 %3785
        %3787 = vrot.lane.b32.xlu0 %v3778, 96
        %v3788 = vpop.permute.xlu0 %3787
        %v3791 = vmul.f32 %v3677, %v3786
        %v3792 = vmul.f32 %v3679, %v3788
        %3795 = vrot.lane.b32.xlu0 %v3791, 96
        %v3796 = vpop.permute.xlu0 %3795
        %3797 = vrot.lane.b32.xlu0 %v3792, 96
        %v3798 = vpop.permute.xlu0 %3797
        %v3801 = vadd.f32 %v3781, %v3796
        %v3802 = vadd.f32 %v3782, %v3798
        %3803 = vst.msk [vmem:[%s352] sm:$0xff] %vm419, %v3801
        %3804 = vst.msk [vmem:[%s352 + $0x8] sm:$0xff] %vm419, %v3802
        %s3805 = sand.u32 %s171, 1
        %s3806 = scalar_lea.sflag [#allocation4], %s3805
        %s3807 = sand.u32 %s171, 1
        %s3808 = smul.addr %s3807, 16
        %s3809 = scalar_lea.vmem [#allocation11], %s3808
        // Predicated region
        $region65: #{tpu_custom_call.1} parent=43 // pred_check
          %p3810 = pneg %p181
        $region66: #{tpu_custom_call.1} parent=43 // pred_check_branch
          %3812 = sbr.rel (%p3810) target = $region68
        $region67: #{tpu_custom_call.1} parent=43 // pred_region
          %s3814 = ssub.s32 256, 256
          %3815 = vsyncadd %s3806, %s3814
          %s3816 = smul.addr %s27, 2
          %s3817 = smul.addr %s3816, 128
          %s3818 = scalar_lea.hbm %s6, %s3817
          %s3819 = sshll.u32 %s3809, 4
          %s3820 = int_to_ptr.vmem [resolvable:$true] %s3819
          %3825 = dma.vmem_to_hbm [thread:$0]  %s3820, 256, %s3818, %s3806, 128, 128, 8
        $region68: #{tpu_custom_call.1} parent=43 // pred_fallthru
          _
      $region44: #{tpu_custom_call.1} parent=5 // pred_fallthru
        _
      %p3826 = scmp.le.s32.totalorder 2, %s22
      // Predicated region
      $region69: #{tpu_custom_call.1} parent=5 // pred_check
        %p3827 = pneg %p3826
      $region70: #{tpu_custom_call.1} parent=5 // pred_check_branch
        %3829 = sbr.rel (%p3827) target = $region72
      $region71: #{tpu_custom_call.1} parent=5 // pred_region
        %s3830 = ssub.s32 %s22, 2
        // Predicated region
        $region73: #{tpu_custom_call.1} parent=71 // pred_check
          %p3831 = pneg %p187
        $region74: #{tpu_custom_call.1} parent=71 // pred_check_branch
          %3833 = sbr.rel (%p3831) target = $region76
        $region75: #{tpu_custom_call.1} parent=71 // pred_region
          %s3834 = sand.u32 %s172, 1
          %s3835 = scalar_lea.sflag [#allocation4], %s3834
          %s3836 = sand.u32 %s172, 1
          %s3837 = smul.addr %s3836, 16
          %s3838 = scalar_lea.vmem [#allocation11], %s3837
          %3839 = dma.done %s3835, 256
        $region76: #{tpu_custom_call.1} parent=71 // pred_fallthru
          _
      $region72: #{tpu_custom_call.1} parent=5 // pred_fallthru
        _
    $region6: #{tpu_custom_call.1} parent=1 // loop_footer
      %s26 = sadd.s32 1, %s22
    $region7: #{tpu_custom_call.1} parent=1 // loop_footer_branch
      %21 = sbr.rel target = $region3
    $region8: #{tpu_custom_call.1} parent=1 // loop_exit
      _
    %3840 = vsyncpa [#allocation3], 1
    %s3841 = scalar_lea.sflag [#allocation3], 1
    %3842 = vsyncpa %s3841, 1
    %3843 = vsyncpa [#allocation6], 1
    %s3844 = scalar_lea.sflag [#allocation6], 1
    %3845 = vsyncpa %s3844, 1
    %3846 = vsyncpa [#allocation9], 1
    %3847 = vsyncpa [#allocation4], 1
    %s3848 = scalar_lea.sflag [#allocation4], 1
    %3849 = vsyncpa %s3848, 1

</llo_original>
